<compile_context>
chip_gen: v7x
topology: tpu7x:2x2x1
jax: 0.10.0
libtpu: 0.0.40
codegen_flags: <defaults>
</compile_context>

<pallas_src>
import numpy as np
import jax
import jax.numpy as jnp
from jax import lax
from jax.experimental import pallas as pl
from jax.experimental.pallas import tpu as pltpu

EPS_GN = 1e-5   # nn.GroupNorm default eps
EPS_BN = 1e-5   # nn.BatchNorm default eps
PATCH = 2


# --------------------------------------------------------------------------
# Fused Pallas kernel: whole MobileVitV2Block for one batch element
# --------------------------------------------------------------------------
def mobilevit_block_kernel(xp_ref, dww_ref, dwb_ref, w1x1_ref, masks_ref,
                           wqkv_ref, bqkv_ref, wo_ref, bo_ref,
                           wm1_ref, bm1_ref, wm2_ref, bm2_ref,
                           wproj_ref, bproj_ref, o_ref):
    Hp, Wp, C = xp_ref.shape          # zero-padded NHWC input for this sample
    H, W = Hp - 2, Wp - 2
    HW = H * W
    d = w1x1_ref.shape[0]             # transformer embed dim
    L = wqkv_ref.shape[0]             # transformer depth
    cdt = jnp.bfloat16                # MXU operand dtype
    NEG = jnp.finfo(jnp.float32).min  # softmax sentinel (f32 path)

    # ---------- conv_kxk: depthwise 3x3 (BN scale folded into weights) + shift + ReLU
    acc = jnp.zeros((H, W, C), jnp.float32)
    for kh in range(3):
        for kw in range(3):
            acc = acc + xp_ref[kh:kh + H, kw:kw + W, :] * dww_ref[kh, kw, :]
    y = jnp.maximum(acc + dwb_ref[0, :], 0.0)                            # (H, W, C)

    # ---------- conv_1x1 -> channels-first (d, HW): lane-dense from here on
    y2d = y.reshape(HW, C).astype(cdt)
    x = lax.dot_general(w1x1_ref[...], y2d, (((1,), (1,)), ((), ())),
                        preferred_element_type=jnp.float32)              # (d, HW) f32

    masks = masks_ref[...]                                               # (P, HW) {0,1}
    mbool = masks > 0.5
    masks_c = masks.astype(cdt)

    def standardize(z):
        # GroupNorm(num_groups=1) statistics, single pass; affine is folded
        # into the following 1x1 weights at prep time.
        m1 = jnp.mean(z, axis=(0, 1), keepdims=True)
        m2 = jnp.mean(z * z, axis=(0, 1), keepdims=True)
        return (z - m1) * lax.rsqrt(m2 - m1 * m1 + EPS_GN)

    for l in range(L):
        # ---------- LinearSelfAttention (norm1 affine folded into wqkv/bqkv)
        xn = standardize(x).astype(cdt)                                  # (d, HW)
        qkv = jnp.dot(wqkv_ref[l], xn,
                      preferred_element_type=jnp.float32) + bqkv_ref[l]  # (2d+1, HW) f32
        k = qkv[0:d, :]
        v = qkv[d:2 * d, :]
        q = qkv[2 * d:2 * d + 1, :]                                      # (1, HW)

        # vectorized per-group softmax over patches (groups = within-patch pixel)
        qm = jnp.max(jnp.where(mbool, q, NEG), axis=1, keepdims=True)    # (P, 1)
        e = jnp.exp(jnp.where(mbool, q - qm, NEG))                       # (P, HW), 0 off-group
        inv = pl.reciprocal(jnp.sum(e, axis=1, keepdims=True), approx=True)
        scores = (e * inv).astype(cdt)                                   # (P, HW)

        # context: two small MXU matmuls instead of the unrolled P-loop
        ctx = lax.dot_general(k.astype(cdt), scores, (((1,), (1,)), ((), ())),
                              preferred_element_type=jnp.float32)        # (d, P)
        ctx_map = jnp.dot(ctx.astype(cdt), masks_c,
                          preferred_element_type=jnp.float32)            # (d, HW)

        attn = (jnp.maximum(v, 0.0) * ctx_map).astype(cdt)               # relu(v) * ctx
        x = x + jnp.dot(wo_ref[l], attn,
                        preferred_element_type=jnp.float32) + bo_ref[l]  # out_proj + res

        # ---------- ConvMlp (norm2 affine folded into wm1/bm1)
        xm = standardize(x).astype(cdt)
        h = jnp.dot(wm1_ref[l], xm,
                    preferred_element_type=jnp.float32) + bm1_ref[l]     # (hidden, HW)
        h = h * (0.5 * jnp.tanh(0.5 * h) + 0.5)                          # SiLU, single EUP op
        x = x + jnp.dot(wm2_ref[l], h.astype(cdt),
                        preferred_element_type=jnp.float32) + bm2_ref[l] # + residual

    # ---------- final GroupNorm (affine folded) + conv_proj (BN folded)
    xg = standardize(x).astype(cdt)
    o_ref[...] = jnp.dot(wproj_ref[...], xg,
                         preferred_element_type=jnp.float32) + bproj_ref[...]


# --------------------------------------------------------------------------
# Wrapper
# --------------------------------------------------------------------------
def _const_spec(shape):
    n = len(shape)
    return pl.BlockSpec(shape, lambda *_, _n=n: (0,) * _n)


_WEIGHT_ORDER = ('dw_w', 'dw_shift', 'w1x1', 'masks',
                 'wqkv', 'bqkv', 'wo', 'bo',
                 'wm1', 'bm1', 'wm2', 'bm2',
                 'wproj', 'bproj')


def mobilevit_v2_block(x_nchw, kp, patch=PATCH):
    B, C, H, W = x_nchw.shape
    ph = pw = patch
    assert H % ph == 0 and W % pw == 0  # TODO(synk): bilinear resize branch not implemented
    HW = H * W
    d = kp['w1x1'].shape[0]
    C_out = kp['wproj'].shape[0]

    # NCHW -> NHWC + zero pad for the 3x3 depthwise conv.
    xh = jnp.transpose(x_nchw, (0, 2, 3, 1))
    xp = jnp.pad(xh, ((0, 0), (1, 1), (1, 1), (0, 0)))

    weights = [kp[nm] for nm in _WEIGHT_ORDER]
    out = pl.pallas_call(
        mobilevit_block_kernel,
        grid=(B,),
        in_specs=[pl.BlockSpec((None, H + 2, W + 2, C), lambda b: (b, 0, 0, 0))]
                 + [_const_spec(w.shape) for w in weights],
        out_specs=pl.BlockSpec((None, C_out, HW), lambda b: (b, 0, 0)),
        out_shape=jax.ShapeDtypeStruct((B, C_out, HW), jnp.float32),
        compiler_params=pltpu.CompilerParams(
            dimension_semantics=("parallel",),
            vmem_limit_bytes=32 * 1024 * 1024),
    )(xp, *weights)
    return out.reshape(B, C_out, H, W)                                   # NCHW


# --------------------------------------------------------------------------
# Parameter construction (logical / PyTorch-style) + kernel-layout prep
# --------------------------------------------------------------------------
def init_params(key, C_in, d, hidden, C_out, depth):
    keys = iter(jax.random.split(key, 64))

    def nrm(shape, s=0.1):
        return jax.random.normal(next(keys), shape, jnp.float32) * s

    def uni(shape, lo=0.5, hi=1.5):
        return jax.random.uniform(next(keys), shape, jnp.float32, lo, hi)

    p = {}
    # conv_kxk: depthwise 3x3 (no bias) + BatchNorm(eval) + ReLU
    p['dw_w'] = nrm((3, 3, C_in), 0.3)
    bn_g, bn_b = uni((C_in,)), nrm((C_in,), 0.1)
    bn_rm, bn_rv = nrm((C_in,), 0.1), uni((C_in,))
    scale = bn_g / jnp.sqrt(bn_rv + EPS_BN)
    p['dw_scale'] = scale.reshape(1, C_in)
    p['dw_shift'] = (bn_b - bn_rm * scale).reshape(1, C_in)
    # conv_1x1 (no bias): weight stored as (C_in, d)
    p['w_1x1'] = nrm((C_in, d), 0.2)
    # transformer blocks
    blocks = []
    for _ in range(depth):
        blocks.append(dict(
            g1=uni((1, d)), be1=nrm((1, d)),
            wq=nrm((1, d), 0.2), bq=nrm((1, 1), 0.1),
            wk=nrm((d, d), 0.2), bk=nrm((1, d), 0.1),
            wv=nrm((d, d), 0.2), bv=nrm((1, d), 0.1),
            wo=nrm((d, d), 0.2), bo=nrm((1, d), 0.1),
            g2=uni((1, d)), be2=nrm((1, d)),
            w1=nrm((d, hidden), 0.2), b1=nrm((1, hidden), 0.1),
            w2=nrm((hidden, d), 0.2), b2=nrm((1, d), 0.1),
        ))
    p['blocks'] = blocks
    # final GroupNorm
    p['gn_g'] = uni((1, d))
    p['gn_b'] = nrm((1, d))
    # conv_proj: 1x1 (no bias) + BatchNorm(eval), exactly folded into W / bias
    w_proj = nrm((d, C_out), 0.2)
    pg, pb = uni((C_out,)), nrm((C_out,), 0.1)
    prm, prv = nrm((C_out,), 0.1), uni((C_out,))
    ps = pg / jnp.sqrt(prv + EPS_BN)
    p['w_proj'] = w_proj * ps[None, :]
    p['b_proj'] = (pb - prm * ps).reshape(1, C_out)
    return p


def make_patch_masks(H, W, ph, pw):
    hh, ww = np.meshgrid(np.arange(H), np.arange(W), indexing='ij')
    pid = (hh % ph) * pw + (ww % pw)                       # within-patch pixel id
    masks = (pid.reshape(1, -1) == np.arange(ph * pw).reshape(-1, 1))
    return jnp.asarray(masks.astype(np.float32))           # (P, H*W)


def prepare_kernel_params(p, H, W, patch=PATCH):
    """Repack logical params into channels-first / stacked kernel layout.

    GroupNorm affines are folded into the following 1x1 weights/biases
    (W' = W*diag(g), b' = b + W @ beta), the dwconv BN scale is folded into
    the 3x3 weights, and all matmul weights are cast to bf16."""
    cdt = jnp.bfloat16
    scale = p['dw_scale'][0]                                # (C,)
    kp = {
        'dw_w': p['dw_w'] * scale[None, None, :],           # (3, 3, C) f32
        'dw_shift': p['dw_shift'],                          # (1, C)    f32
        'w1x1': p['w_1x1'].T.astype(cdt),                   # (d, C_in) bf16
        'masks': make_patch_masks(H, W, patch, patch),      # (P, HW)   f32
    }
    # final GroupNorm affine folded into conv_proj (which already has BN folded)
    wproj = p['w_proj'].T                                   # (C_out, d)
    gn_g, gn_b = p['gn_g'][0], p['gn_b'][0]
    kp['wproj'] = (wproj * gn_g[None, :]).astype(cdt)
    kp['bproj'] = p['b_proj'][0][:, None] + wproj @ gn_b[:, None]        # (C_out, 1) f32

    wqkv_l, bqkv_l, wo_l, bo_l, wm1_l, bm1_l, wm2_l, bm2_l = ([] for _ in range(8))
    for b in p['blocks']:
        # fused qkv weight, rows = [k | v | q]  ->  (2d+1, d) channels-first
        wqkv = jnp.concatenate([b['wk'].T, b['wv'].T, b['wq']], axis=0)
        bqkv = jnp.concatenate([b['bk'][0], b['bv'][0], b['bq'][0]])[:, None]
        g1, be1 = b['g1'][0], b['be1'][0]
        wqkv_l.append((wqkv * g1[None, :]).astype(cdt))
        bqkv_l.append(bqkv + wqkv @ be1[:, None])
        wo_l.append(b['wo'].T.astype(cdt))
        bo_l.append(b['bo'][0][:, None])
        wm1 = b['w1'].T                                      # (hidden, d)
        g2, be2 = b['g2'][0], b['be2'][0]
        wm1_l.append((wm1 * g2[None, :]).astype(cdt))
        bm1_l.append(b['b1'][0][:, None] + wm1 @ be2[:, None])
        wm2_l.append(b['w2'].T.astype(cdt))
        bm2_l.append(b['b2'][0][:, None])
    kp['wqkv'] = jnp.stack(wqkv_l); kp['bqkv'] = jnp.stack(bqkv_l)
    kp['wo'] = jnp.stack(wo_l);     kp['bo'] = jnp.stack(bo_l)
    kp['wm1'] = jnp.stack(wm1_l);   kp['bm1'] = jnp.stack(bm1_l)
    kp['wm2'] = jnp.stack(wm2_l);   kp['bm2'] = jnp.stack(bm2_l)
    return kp


# --------------------------------------------------------------------------
# Pure-JAX reference (mirrors the PyTorch forward op-for-op, NCHW, f32)
# --------------------------------------------------------------------------
def ref_forward(x, p):
    B, C, H, W = x.shape
    ph = pw = PATCH
    nph, npw = H // ph, W // pw

    def gn(z, g, b):
        mean = jnp.mean(z, axis=(1, 2, 3), keepdims=True)
        var = jnp.mean(jnp.square(z - mean), axis=(1, 2, 3), keepdims=True)
        return ((z - mean) / jnp.sqrt(var + EPS_GN)
                * g[0][None, :, None, None] + b[0][None, :, None, None])

    # conv_kxk (depthwise) + BN + ReLU
    w_oihw = jnp.transpose(p['dw_w'], (2, 0, 1))[:, None, :, :]
    y = lax.conv_general_dilated(x, w_oihw, (1, 1), ((1, 1), (1, 1)),
                                 feature_group_count=C,
                                 dimension_numbers=('NCHW', 'OIHW', 'NCHW'))
    y = y * p['dw_scale'][0][None, :, None, None] + p['dw_shift'][0][None, :, None, None]
    y = jnp.maximum(y, 0.0)
    # conv_1x1
    y = jnp.einsum('bchw,cd->bdhw', y, p['w_1x1'])
    d = y.shape[1]
    # unfold
    t = (y.reshape(B, d, nph, ph, npw, pw).transpose(0, 1, 3, 5, 2, 4)
         .reshape(B, d, ph * pw, nph * npw))
    # transformer
    for blk in p['blocks']:
        z = gn(t, blk['g1'], blk['be1'])
        q = jnp.einsum('bcpn,c->bpn', z, blk['wq'][0])[:, None] + blk['bq'][0, 0]
        k = jnp.einsum('bcpn,ce->bepn', z, blk['wk']) + blk['bk'][0][None, :, None, None]
        v = jnp.einsum('bcpn,ce->bepn', z, blk['wv']) + blk['bv'][0][None, :, None, None]
        scores = jax.nn.softmax(q, axis=-1)
        ctx = jnp.sum(k * scores, axis=-1, keepdims=True)
        a = jnp.maximum(v, 0.0) * ctx
        a = jnp.einsum('bcpn,ce->bepn', a, blk['wo']) + blk['bo'][0][None, :, None, None]
        t = t + a
        z = gn(t, blk['g2'], blk['be2'])
        h = jnp.einsum('bcpn,ch->bhpn', z, blk['w1']) + blk['b1'][0][None, :, None, None]
        h = h * jax.nn.sigmoid(h)
        m = jnp.einsum('bhpn,hc->bcpn', h, blk['w2']) + blk['b2'][0][None, :, None, None]
        t = t + m
    t = gn(t, p['gn_g'], p['gn_b'])
    # fold
    y = (t.reshape(B, d, ph, pw, nph, npw).transpose(0, 1, 4, 2, 5, 3)
         .reshape(B, d, H, W))
    # conv_proj (+ folded BN)
    out = jnp.einsum('bdhw,dc->bchw', y, p['w_proj']) + p['b_proj'][0][None, :, None, None]
    return out


# --------------------------------------------------------------------------
if __name__ == "__main__":
    B, C_in, H, W = 2, 32, 16, 16
    C_out = C_in
    d = 32                      # makedivisible(1.0 * in_channels, 8)
    hidden = int(d * 2.0)       # mlp_ratio = 2.0
    depth = 2                   # transformer_depth

    key = jax.random.PRNGKey(0)
    kx, kparam = jax.random.split(key)
    x = jax.random.normal(kx, (B, C_in, H, W), jnp.float32)
    params = init_params(kparam, C_in, d, hidden, C_out, depth)
    kparams = prepare_kernel_params(params, H, W)

    fwd = jax.jit(mobilevit_v2_block)
    out = jax.block_until_ready(fwd(x, kparams))
    ref = jax.block_until_ready(ref_forward(x, params))

    assert out.shape == (B, C_out, H, W)
    # Kernel uses bf16 MXU operands (per perf review) + approx reciprocal, so
    # compare with a bf16-appropriate tolerance (a logic bug gives rel ~ O(1)).
    diff = out - ref
    err = float(jnp.max(jnp.abs(diff)))
    ref_max = float(jnp.max(jnp.abs(ref)))
    rel = float(jnp.linalg.norm(diff.ravel()) / (jnp.linalg.norm(ref.ravel()) + 1e-12))
    tol_abs = 3e-2 * max(1.0, ref_max)
    if not bool(jnp.isfinite(out).all()) or err > tol_abs or rel > 2e-2:
        raise SystemExit(f"mismatch: max_abs={err:.5f} (tol {tol_abs:.5f}) rel_l2={rel:.6f}")
    print("KERNEL_OK")
</pallas_src>

<mosaic_0001>
module attributes {stable_mosaic.version = 11 : i64} {
  func.func @mobilevit_block_kernel(%arg0: i32, %arg1: memref<1x18x18x32xf32, #tpu.memory_space<vmem>>, %arg2: memref<3x3x32xf32, #tpu.memory_space<vmem>>, %arg3: memref<1x32xf32, #tpu.memory_space<vmem>>, %arg4: memref<32x32xbf16, #tpu.memory_space<vmem>>, %arg5: memref<4x256xf32, #tpu.memory_space<vmem>>, %arg6: memref<2x65x32xbf16, #tpu.memory_space<vmem>>, %arg7: memref<2x65x1xf32, #tpu.memory_space<vmem>>, %arg8: memref<2x32x32xbf16, #tpu.memory_space<vmem>>, %arg9: memref<2x32x1xf32, #tpu.memory_space<vmem>>, %arg10: memref<2x64x32xbf16, #tpu.memory_space<vmem>>, %arg11: memref<2x64x1xf32, #tpu.memory_space<vmem>>, %arg12: memref<2x32x64xbf16, #tpu.memory_space<vmem>>, %arg13: memref<2x32x1xf32, #tpu.memory_space<vmem>>, %arg14: memref<32x32xbf16, #tpu.memory_space<vmem>>, %arg15: memref<32x1xf32, #tpu.memory_space<vmem>>, %arg16: memref<1x32x256xf32, #tpu.memory_space<vmem>>) attributes {dimension_semantics = [#tpu.dimension_semantics<parallel>], iteration_bounds = array<i64: 2>, scalar_prefetch = 0 : i64, scratch_operands = 0 : i64, tpu.core_type = #tpu.core_type<tc>, window_params = [{transform_indices = @transform_0, window_bounds = array<i64: 1, 18, 18, 32>}, {pipeline_mode = #tpu.pipeline_mode<synchronous>, transform_indices = @transform_1, window_bounds = array<i64: 3, 3, 32>}, {pipeline_mode = #tpu.pipeline_mode<synchronous>, transform_indices = @transform_2, window_bounds = array<i64: 1, 32>}, {pipeline_mode = #tpu.pipeline_mode<synchronous>, transform_indices = @transform_3, window_bounds = array<i64: 32, 32>}, {pipeline_mode = #tpu.pipeline_mode<synchronous>, transform_indices = @transform_4, window_bounds = array<i64: 4, 256>}, {pipeline_mode = #tpu.pipeline_mode<synchronous>, transform_indices = @transform_5, window_bounds = array<i64: 2, 65, 32>}, {pipeline_mode = #tpu.pipeline_mode<synchronous>, transform_indices = @transform_6, window_bounds = array<i64: 2, 65, 1>}, {pipeline_mode = #tpu.pipeline_mode<synchronous>, transform_indices = @transform_7, window_bounds = array<i64: 2, 32, 32>}, {pipeline_mode = #tpu.pipeline_mode<synchronous>, transform_indices = @transform_8, window_bounds = array<i64: 2, 32, 1>}, {pipeline_mode = #tpu.pipeline_mode<synchronous>, transform_indices = @transform_9, window_bounds = array<i64: 2, 64, 32>}, {pipeline_mode = #tpu.pipeline_mode<synchronous>, transform_indices = @transform_10, window_bounds = array<i64: 2, 64, 1>}, {pipeline_mode = #tpu.pipeline_mode<synchronous>, transform_indices = @transform_11, window_bounds = array<i64: 2, 32, 64>}, {pipeline_mode = #tpu.pipeline_mode<synchronous>, transform_indices = @transform_12, window_bounds = array<i64: 2, 32, 1>}, {pipeline_mode = #tpu.pipeline_mode<synchronous>, transform_indices = @transform_13, window_bounds = array<i64: 32, 32>}, {pipeline_mode = #tpu.pipeline_mode<synchronous>, transform_indices = @transform_14, window_bounds = array<i64: 32, 1>}, {transform_indices = @transform_15, window_bounds = array<i64: 1, 32, 256>}]} {
    %cst = arith.constant 0.000000e+00 : f32
    %0 = vector.broadcast %cst : f32 to vector<16x16x32xf32>
    %c0 = arith.constant 0 : index
    %c0_0 = arith.constant 0 : index
    %c0_1 = arith.constant 0 : index
    %c0_2 = arith.constant 0 : index
    %1 = vector.load %arg1[%c0, %c0_0, %c0_1, %c0_2] : memref<1x18x18x32xf32, #tpu.memory_space<vmem>>, vector<1x16x16x32xf32>
    %2 = vector.shape_cast %1 : vector<1x16x16x32xf32> to vector<16x16x32xf32>
    %c0_3 = arith.constant 0 : index
    %c0_4 = arith.constant 0 : index
    %c0_5 = arith.constant 0 : index
    %3 = vector.load %arg2[%c0_3, %c0_4, %c0_5] : memref<3x3x32xf32, #tpu.memory_space<vmem>>, vector<1x1x32xf32>
    %4 = vector.shape_cast %3 : vector<1x1x32xf32> to vector<32xf32>
    %5 = vector.shape_cast %4 : vector<32xf32> to vector<1x1x32xf32>
    %6 = vector.broadcast %5 : vector<1x1x32xf32> to vector<16x16x32xf32>
    %7 = arith.mulf %2, %6 : vector<16x16x32xf32>
    %8 = arith.addf %0, %7 : vector<16x16x32xf32>
    %c0_6 = arith.constant 0 : index
    %c0_7 = arith.constant 0 : index
    %c1 = arith.constant 1 : index
    %c0_8 = arith.constant 0 : index
    %9 = vector.load %arg1[%c0_6, %c0_7, %c1, %c0_8] : memref<1x18x18x32xf32, #tpu.memory_space<vmem>>, vector<1x16x16x32xf32>
    %10 = vector.shape_cast %9 : vector<1x16x16x32xf32> to vector<16x16x32xf32>
    %c0_9 = arith.constant 0 : index
    %c1_10 = arith.constant 1 : index
    %c0_11 = arith.constant 0 : index
    %11 = vector.load %arg2[%c0_9, %c1_10, %c0_11] : memref<3x3x32xf32, #tpu.memory_space<vmem>>, vector<1x1x32xf32>
    %12 = vector.shape_cast %11 : vector<1x1x32xf32> to vector<32xf32>
    %13 = vector.shape_cast %12 : vector<32xf32> to vector<1x1x32xf32>
    %14 = vector.broadcast %13 : vector<1x1x32xf32> to vector<16x16x32xf32>
    %15 = arith.mulf %10, %14 : vector<16x16x32xf32>
    %16 = arith.addf %8, %15 : vector<16x16x32xf32>
    %c0_12 = arith.constant 0 : index
    %c0_13 = arith.constant 0 : index
    %c2 = arith.constant 2 : index
    %c0_14 = arith.constant 0 : index
    %17 = vector.load %arg1[%c0_12, %c0_13, %c2, %c0_14] : memref<1x18x18x32xf32, #tpu.memory_space<vmem>>, vector<1x16x16x32xf32>
    %18 = vector.shape_cast %17 : vector<1x16x16x32xf32> to vector<16x16x32xf32>
    %c0_15 = arith.constant 0 : index
    %c2_16 = arith.constant 2 : index
    %c0_17 = arith.constant 0 : index
    %19 = vector.load %arg2[%c0_15, %c2_16, %c0_17] : memref<3x3x32xf32, #tpu.memory_space<vmem>>, vector<1x1x32xf32>
    %20 = vector.shape_cast %19 : vector<1x1x32xf32> to vector<32xf32>
    %21 = vector.shape_cast %20 : vector<32xf32> to vector<1x1x32xf32>
    %22 = vector.broadcast %21 : vector<1x1x32xf32> to vector<16x16x32xf32>
    %23 = arith.mulf %18, %22 : vector<16x16x32xf32>
    %24 = arith.addf %16, %23 : vector<16x16x32xf32>
    %c0_18 = arith.constant 0 : index
    %c1_19 = arith.constant 1 : index
    %c0_20 = arith.constant 0 : index
    %c0_21 = arith.constant 0 : index
    %25 = vector.load %arg1[%c0_18, %c1_19, %c0_20, %c0_21] : memref<1x18x18x32xf32, #tpu.memory_space<vmem>>, vector<1x16x16x32xf32>
    %26 = vector.shape_cast %25 : vector<1x16x16x32xf32> to vector<16x16x32xf32>
    %c1_22 = arith.constant 1 : index
    %c0_23 = arith.constant 0 : index
    %c0_24 = arith.constant 0 : index
    %27 = vector.load %arg2[%c1_22, %c0_23, %c0_24] : memref<3x3x32xf32, #tpu.memory_space<vmem>>, vector<1x1x32xf32>
    %28 = vector.shape_cast %27 : vector<1x1x32xf32> to vector<32xf32>
    %29 = vector.shape_cast %28 : vector<32xf32> to vector<1x1x32xf32>
    %30 = vector.broadcast %29 : vector<1x1x32xf32> to vector<16x16x32xf32>
    %31 = arith.mulf %26, %30 : vector<16x16x32xf32>
    %32 = arith.addf %24, %31 : vector<16x16x32xf32>
    %c0_25 = arith.constant 0 : index
    %c1_26 = arith.constant 1 : index
    %c1_27 = arith.constant 1 : index
    %c0_28 = arith.constant 0 : index
    %33 = vector.load %arg1[%c0_25, %c1_26, %c1_27, %c0_28] : memref<1x18x18x32xf32, #tpu.memory_space<vmem>>, vector<1x16x16x32xf32>
    %34 = vector.shape_cast %33 : vector<1x16x16x32xf32> to vector<16x16x32xf32>
    %c1_29 = arith.constant 1 : index
    %c1_30 = arith.constant 1 : index
    %c0_31 = arith.constant 0 : index
    %35 = vector.load %arg2[%c1_29, %c1_30, %c0_31] : memref<3x3x32xf32, #tpu.memory_space<vmem>>, vector<1x1x32xf32>
    %36 = vector.shape_cast %35 : vector<1x1x32xf32> to vector<32xf32>
    %37 = vector.shape_cast %36 : vector<32xf32> to vector<1x1x32xf32>
    %38 = vector.broadcast %37 : vector<1x1x32xf32> to vector<16x16x32xf32>
    %39 = arith.mulf %34, %38 : vector<16x16x32xf32>
    %40 = arith.addf %32, %39 : vector<16x16x32xf32>
    %c0_32 = arith.constant 0 : index
    %c1_33 = arith.constant 1 : index
    %c2_34 = arith.constant 2 : index
    %c0_35 = arith.constant 0 : index
    %41 = vector.load %arg1[%c0_32, %c1_33, %c2_34, %c0_35] : memref<1x18x18x32xf32, #tpu.memory_space<vmem>>, vector<1x16x16x32xf32>
    %42 = vector.shape_cast %41 : vector<1x16x16x32xf32> to vector<16x16x32xf32>
    %c1_36 = arith.constant 1 : index
    %c2_37 = arith.constant 2 : index
    %c0_38 = arith.constant 0 : index
    %43 = vector.load %arg2[%c1_36, %c2_37, %c0_38] : memref<3x3x32xf32, #tpu.memory_space<vmem>>, vector<1x1x32xf32>
    %44 = vector.shape_cast %43 : vector<1x1x32xf32> to vector<32xf32>
    %45 = vector.shape_cast %44 : vector<32xf32> to vector<1x1x32xf32>
    %46 = vector.broadcast %45 : vector<1x1x32xf32> to vector<16x16x32xf32>
    %47 = arith.mulf %42, %46 : vector<16x16x32xf32>
    %48 = arith.addf %40, %47 : vector<16x16x32xf32>
    %c0_39 = arith.constant 0 : index
    %c2_40 = arith.constant 2 : index
    %c0_41 = arith.constant 0 : index
    %c0_42 = arith.constant 0 : index
    %49 = vector.load %arg1[%c0_39, %c2_40, %c0_41, %c0_42] : memref<1x18x18x32xf32, #tpu.memory_space<vmem>>, vector<1x16x16x32xf32>
    %50 = vector.shape_cast %49 : vector<1x16x16x32xf32> to vector<16x16x32xf32>
    %c2_43 = arith.constant 2 : index
    %c0_44 = arith.constant 0 : index
    %c0_45 = arith.constant 0 : index
    %51 = vector.load %arg2[%c2_43, %c0_44, %c0_45] : memref<3x3x32xf32, #tpu.memory_space<vmem>>, vector<1x1x32xf32>
    %52 = vector.shape_cast %51 : vector<1x1x32xf32> to vector<32xf32>
    %53 = vector.shape_cast %52 : vector<32xf32> to vector<1x1x32xf32>
    %54 = vector.broadcast %53 : vector<1x1x32xf32> to vector<16x16x32xf32>
    %55 = arith.mulf %50, %54 : vector<16x16x32xf32>
    %56 = arith.addf %48, %55 : vector<16x16x32xf32>
    %c0_46 = arith.constant 0 : index
    %c2_47 = arith.constant 2 : index
    %c1_48 = arith.constant 1 : index
    %c0_49 = arith.constant 0 : index
    %57 = vector.load %arg1[%c0_46, %c2_47, %c1_48, %c0_49] : memref<1x18x18x32xf32, #tpu.memory_space<vmem>>, vector<1x16x16x32xf32>
    %58 = vector.shape_cast %57 : vector<1x16x16x32xf32> to vector<16x16x32xf32>
    %c2_50 = arith.constant 2 : index
    %c1_51 = arith.constant 1 : index
    %c0_52 = arith.constant 0 : index
    %59 = vector.load %arg2[%c2_50, %c1_51, %c0_52] : memref<3x3x32xf32, #tpu.memory_space<vmem>>, vector<1x1x32xf32>
    %60 = vector.shape_cast %59 : vector<1x1x32xf32> to vector<32xf32>
    %61 = vector.shape_cast %60 : vector<32xf32> to vector<1x1x32xf32>
    %62 = vector.broadcast %61 : vector<1x1x32xf32> to vector<16x16x32xf32>
    %63 = arith.mulf %58, %62 : vector<16x16x32xf32>
    %64 = arith.addf %56, %63 : vector<16x16x32xf32>
    %c0_53 = arith.constant 0 : index
    %c2_54 = arith.constant 2 : index
    %c2_55 = arith.constant 2 : index
    %c0_56 = arith.constant 0 : index
    %65 = vector.load %arg1[%c0_53, %c2_54, %c2_55, %c0_56] : memref<1x18x18x32xf32, #tpu.memory_space<vmem>>, vector<1x16x16x32xf32>
    %66 = vector.shape_cast %65 : vector<1x16x16x32xf32> to vector<16x16x32xf32>
    %c2_57 = arith.constant 2 : index
    %c2_58 = arith.constant 2 : index
    %c0_59 = arith.constant 0 : index
    %67 = vector.load %arg2[%c2_57, %c2_58, %c0_59] : memref<3x3x32xf32, #tpu.memory_space<vmem>>, vector<1x1x32xf32>
    %68 = vector.shape_cast %67 : vector<1x1x32xf32> to vector<32xf32>
    %69 = vector.shape_cast %68 : vector<32xf32> to vector<1x1x32xf32>
    %70 = vector.broadcast %69 : vector<1x1x32xf32> to vector<16x16x32xf32>
    %71 = arith.mulf %66, %70 : vector<16x16x32xf32>
    %72 = arith.addf %64, %71 : vector<16x16x32xf32>
    %c0_60 = arith.constant 0 : index
    %c0_61 = arith.constant 0 : index
    %73 = vector.load %arg3[%c0_60, %c0_61] : memref<1x32xf32, #tpu.memory_space<vmem>>, vector<1x32xf32>
    %74 = vector.shape_cast %73 : vector<1x32xf32> to vector<32xf32>
    %75 = vector.shape_cast %74 : vector<32xf32> to vector<1x1x32xf32>
    %76 = vector.broadcast %75 : vector<1x1x32xf32> to vector<16x16x32xf32>
    %77 = arith.addf %72, %76 : vector<16x16x32xf32>
    %cst_62 = arith.constant 0.000000e+00 : f32
    %78 = vector.broadcast %cst_62 : f32 to vector<16x16x32xf32>
    %79 = arith.maximumf %77, %78 : vector<16x16x32xf32>
    %80 = vector.shape_cast %79 : vector<16x16x32xf32> to vector<256x32xf32>
    %81 = arith.truncf %80 : vector<256x32xf32> to vector<256x32xbf16>
    %c0_63 = arith.constant 0 : index
    %c0_64 = arith.constant 0 : index
    %82 = vector.load %arg4[%c0_63, %c0_64] : memref<32x32xbf16, #tpu.memory_space<vmem>>, vector<32x32xbf16>
    %cst_65 = arith.constant dense<0.000000e+00> : vector<32x256xf32>
    %83 = tpu.matmul %82, %81, %cst_65 {dimension_numbers = #tpu.dot_dimension_numbers<[1], [1], [0], [0], [0, 0, 1, 0], [], []>} : vector<32x32xbf16>, vector<256x32xbf16>, vector<32x256xf32> -> vector<32x256xf32>
    %c0_66 = arith.constant 0 : index
    %c0_67 = arith.constant 0 : index
    %84 = vector.load %arg5[%c0_66, %c0_67] : memref<4x256xf32, #tpu.memory_space<vmem>>, vector<4x256xf32>
    %cst_68 = arith.constant 5.000000e-01 : f32
    %85 = vector.broadcast %cst_68 : f32 to vector<4x256xf32>
    %86 = arith.cmpf ogt, %84, %85 : vector<4x256xf32>
    %87 = arith.truncf %84 : vector<4x256xf32> to vector<4x256xbf16>
    %88 = vector.shape_cast %83 : vector<32x256xf32> to vector<1x32x256xf32>
    %cst_69 = arith.constant dense<0.000000e+00> : vector<1xf32>
    %89 = vector.multi_reduction <add>, %88, %cst_69 [1, 2] : vector<1x32x256xf32> to vector<1xf32>
    %90 = vector.shape_cast %89 : vector<1xf32> to vector<1x1x1xf32>
    %91 = vector.extract %90[0, 0, 0] : f32 from vector<1x1x1xf32>
    %92 = vector.broadcast %91 : f32 to vector<1x1xf32>
    %cst_70 = arith.constant 8.192000e+03 : f32
    %93 = vector.broadcast %cst_70 : f32 to vector<1x1xf32>
    %94 = arith.divf %92, %93 : vector<1x1xf32>
    %95 = arith.mulf %83, %83 : vector<32x256xf32>
    %96 = vector.shape_cast %95 : vector<32x256xf32> to vector<1x32x256xf32>
    %cst_71 = arith.constant dense<0.000000e+00> : vector<1xf32>
    %97 = vector.multi_reduction <add>, %96, %cst_71 [1, 2] : vector<1x32x256xf32> to vector<1xf32>
    %98 = vector.shape_cast %97 : vector<1xf32> to vector<1x1x1xf32>
    %99 = vector.extract %98[0, 0, 0] : f32 from vector<1x1x1xf32>
    %100 = vector.broadcast %99 : f32 to vector<1x1xf32>
    %cst_72 = arith.constant 8.192000e+03 : f32
    %101 = vector.broadcast %cst_72 : f32 to vector<1x1xf32>
    %102 = arith.divf %100, %101 : vector<1x1xf32>
    %103 = vector.broadcast %94 : vector<1x1xf32> to vector<32x256xf32>
    %104 = arith.subf %83, %103 : vector<32x256xf32>
    %105 = arith.mulf %94, %94 : vector<1x1xf32>
    %106 = arith.subf %102, %105 : vector<1x1xf32>
    %cst_73 = arith.constant 9.99999974E-6 : f32
    %107 = vector.broadcast %cst_73 : f32 to vector<1x1xf32>
    %108 = arith.addf %106, %107 : vector<1x1xf32>
    %109 = math.rsqrt %108 : vector<1x1xf32>
    %110 = vector.broadcast %109 : vector<1x1xf32> to vector<32x256xf32>
    %111 = arith.mulf %104, %110 : vector<32x256xf32>
    %112 = arith.truncf %111 : vector<32x256xf32> to vector<32x256xbf16>
    %c0_74 = arith.constant 0 : index
    %c0_75 = arith.constant 0 : index
    %c0_76 = arith.constant 0 : index
    %113 = vector.load %arg6[%c0_74, %c0_75, %c0_76] : memref<2x65x32xbf16, #tpu.memory_space<vmem>>, vector<1x65x32xbf16>
    %114 = vector.shape_cast %113 : vector<1x65x32xbf16> to vector<65x32xbf16>
    %cst_77 = arith.constant dense<0.000000e+00> : vector<65x256xf32>
    %115 = tpu.matmul %114, %112, %cst_77 {dimension_numbers = #tpu.dot_dimension_numbers<[1], [0], [0], [1], [0, 0, 1, 1], [], []>} : vector<65x32xbf16>, vector<32x256xbf16>, vector<65x256xf32> -> vector<65x256xf32>
    %c0_78 = arith.constant 0 : index
    %c0_79 = arith.constant 0 : index
    %c0_80 = arith.constant 0 : index
    %116 = vector.load %arg7[%c0_78, %c0_79, %c0_80] : memref<2x65x1xf32, #tpu.memory_space<vmem>>, vector<1x65x1xf32>
    %117 = vector.shape_cast %116 : vector<1x65x1xf32> to vector<65x1xf32>
    %118 = vector.broadcast %117 : vector<65x1xf32> to vector<65x256xf32>
    %119 = arith.addf %115, %118 : vector<65x256xf32>
    %120 = vector.extract_strided_slice %119 {offsets = [0, 0], sizes = [32, 256], strides = [1, 1]} : vector<65x256xf32> to vector<32x256xf32>
    %121 = vector.extract_strided_slice %119 {offsets = [32, 0], sizes = [32, 256], strides = [1, 1]} : vector<65x256xf32> to vector<32x256xf32>
    %122 = vector.extract_strided_slice %119 {offsets = [64, 0], sizes = [1, 256], strides = [1, 1]} : vector<65x256xf32> to vector<1x256xf32>
    %cst_81 = arith.constant -3.40282347E+38 : f32
    %123 = vector.shape_cast %122 : vector<1x256xf32> to vector<1x256xf32>
    %124 = vector.broadcast %123 : vector<1x256xf32> to vector<4x256xf32>
    %125 = vector.broadcast %cst_81 : f32 to vector<4x256xf32>
    %126 = arith.select %86, %124, %125 : vector<4x256xi1>, vector<4x256xf32>
    %cst_82 = arith.constant dense<0xFF800000> : vector<4xf32>
    %127 = vector.multi_reduction <maximumf>, %126, %cst_82 [1] : vector<4x256xf32> to vector<4xf32>
    %128 = vector.shape_cast %127 : vector<4xf32> to vector<4x1xf32>
    %129 = vector.broadcast %122 : vector<1x256xf32> to vector<4x256xf32>
    %130 = vector.broadcast %128 : vector<4x1xf32> to vector<4x256xf32>
    %131 = arith.subf %129, %130 : vector<4x256xf32>
    %cst_83 = arith.constant -3.40282347E+38 : f32
    %132 = vector.broadcast %cst_83 : f32 to vector<4x256xf32>
    %133 = arith.select %86, %131, %132 : vector<4x256xi1>, vector<4x256xf32>
    %134 = math.exp %133 : vector<4x256xf32>
    %cst_84 = arith.constant dense<0.000000e+00> : vector<4xf32>
    %135 = vector.multi_reduction <add>, %134, %cst_84 [1] : vector<4x256xf32> to vector<4xf32>
    %136 = vector.shape_cast %135 : vector<4xf32> to vector<4x1xf32>
    %137 = tpu.reciprocal %136 {approx = true} : vector<4x1xf32> -> vector<4x1xf32>
    %138 = vector.broadcast %137 : vector<4x1xf32> to vector<4x256xf32>
    %139 = arith.mulf %134, %138 : vector<4x256xf32>
    %140 = arith.truncf %139 : vector<4x256xf32> to vector<4x256xbf16>
    %141 = arith.truncf %120 : vector<32x256xf32> to vector<32x256xbf16>
    %cst_85 = arith.constant dense<0.000000e+00> : vector<32x4xf32>
    %142 = tpu.matmul %141, %140, %cst_85 {dimension_numbers = #tpu.dot_dimension_numbers<[1], [1], [0], [0], [0, 0, 1, 0], [], []>} : vector<32x256xbf16>, vector<4x256xbf16>, vector<32x4xf32> -> vector<32x4xf32>
    %143 = arith.truncf %142 : vector<32x4xf32> to vector<32x4xbf16>
    %cst_86 = arith.constant dense<0.000000e+00> : vector<32x256xf32>
    %144 = tpu.matmul %143, %87, %cst_86 {dimension_numbers = #tpu.dot_dimension_numbers<[1], [0], [0], [1], [0, 0, 1, 1], [], []>} : vector<32x4xbf16>, vector<4x256xbf16>, vector<32x256xf32> -> vector<32x256xf32>
    %cst_87 = arith.constant 0.000000e+00 : f32
    %145 = vector.broadcast %cst_87 : f32 to vector<32x256xf32>
    %146 = arith.maximumf %121, %145 : vector<32x256xf32>
    %147 = arith.mulf %146, %144 : vector<32x256xf32>
    %148 = arith.truncf %147 : vector<32x256xf32> to vector<32x256xbf16>
    %c0_88 = arith.constant 0 : index
    %c0_89 = arith.constant 0 : index
    %c0_90 = arith.constant 0 : index
    %149 = vector.load %arg8[%c0_88, %c0_89, %c0_90] : memref<2x32x32xbf16, #tpu.memory_space<vmem>>, vector<1x32x32xbf16>
    %150 = vector.shape_cast %149 : vector<1x32x32xbf16> to vector<32x32xbf16>
    %cst_91 = arith.constant dense<0.000000e+00> : vector<32x256xf32>
    %151 = tpu.matmul %150, %148, %cst_91 {dimension_numbers = #tpu.dot_dimension_numbers<[1], [0], [0], [1], [0, 0, 1, 1], [], []>} : vector<32x32xbf16>, vector<32x256xbf16>, vector<32x256xf32> -> vector<32x256xf32>
    %152 = arith.addf %83, %151 : vector<32x256xf32>
    %c0_92 = arith.constant 0 : index
    %c0_93 = arith.constant 0 : index
    %c0_94 = arith.constant 0 : index
    %153 = vector.load %arg9[%c0_92, %c0_93, %c0_94] : memref<2x32x1xf32, #tpu.memory_space<vmem>>, vector<1x32x1xf32>
    %154 = vector.shape_cast %153 : vector<1x32x1xf32> to vector<32x1xf32>
    %155 = vector.broadcast %154 : vector<32x1xf32> to vector<32x256xf32>
    %156 = arith.addf %152, %155 : vector<32x256xf32>
    %157 = vector.shape_cast %156 : vector<32x256xf32> to vector<1x32x256xf32>
    %cst_95 = arith.constant dense<0.000000e+00> : vector<1xf32>
    %158 = vector.multi_reduction <add>, %157, %cst_95 [1, 2] : vector<1x32x256xf32> to vector<1xf32>
    %159 = vector.shape_cast %158 : vector<1xf32> to vector<1x1x1xf32>
    %160 = vector.extract %159[0, 0, 0] : f32 from vector<1x1x1xf32>
    %161 = vector.broadcast %160 : f32 to vector<1x1xf32>
    %cst_96 = arith.constant 8.192000e+03 : f32
    %162 = vector.broadcast %cst_96 : f32 to vector<1x1xf32>
    %163 = arith.divf %161, %162 : vector<1x1xf32>
    %164 = arith.mulf %156, %156 : vector<32x256xf32>
    %165 = vector.shape_cast %164 : vector<32x256xf32> to vector<1x32x256xf32>
    %cst_97 = arith.constant dense<0.000000e+00> : vector<1xf32>
    %166 = vector.multi_reduction <add>, %165, %cst_97 [1, 2] : vector<1x32x256xf32> to vector<1xf32>
    %167 = vector.shape_cast %166 : vector<1xf32> to vector<1x1x1xf32>
    %168 = vector.extract %167[0, 0, 0] : f32 from vector<1x1x1xf32>
    %169 = vector.broadcast %168 : f32 to vector<1x1xf32>
    %cst_98 = arith.constant 8.192000e+03 : f32
    %170 = vector.broadcast %cst_98 : f32 to vector<1x1xf32>
    %171 = arith.divf %169, %170 : vector<1x1xf32>
    %172 = vector.broadcast %163 : vector<1x1xf32> to vector<32x256xf32>
    %173 = arith.subf %156, %172 : vector<32x256xf32>
    %174 = arith.mulf %163, %163 : vector<1x1xf32>
    %175 = arith.subf %171, %174 : vector<1x1xf32>
    %cst_99 = arith.constant 9.99999974E-6 : f32
    %176 = vector.broadcast %cst_99 : f32 to vector<1x1xf32>
    %177 = arith.addf %175, %176 : vector<1x1xf32>
    %178 = math.rsqrt %177 : vector<1x1xf32>
    %179 = vector.broadcast %178 : vector<1x1xf32> to vector<32x256xf32>
    %180 = arith.mulf %173, %179 : vector<32x256xf32>
    %181 = arith.truncf %180 : vector<32x256xf32> to vector<32x256xbf16>
    %c0_100 = arith.constant 0 : index
    %c0_101 = arith.constant 0 : index
    %c0_102 = arith.constant 0 : index
    %182 = vector.load %arg10[%c0_100, %c0_101, %c0_102] : memref<2x64x32xbf16, #tpu.memory_space<vmem>>, vector<1x64x32xbf16>
    %183 = vector.shape_cast %182 : vector<1x64x32xbf16> to vector<64x32xbf16>
    %cst_103 = arith.constant dense<0.000000e+00> : vector<64x256xf32>
    %184 = tpu.matmul %183, %181, %cst_103 {dimension_numbers = #tpu.dot_dimension_numbers<[1], [0], [0], [1], [0, 0, 1, 1], [], []>} : vector<64x32xbf16>, vector<32x256xbf16>, vector<64x256xf32> -> vector<64x256xf32>
    %c0_104 = arith.constant 0 : index
    %c0_105 = arith.constant 0 : index
    %c0_106 = arith.constant 0 : index
    %185 = vector.load %arg11[%c0_104, %c0_105, %c0_106] : memref<2x64x1xf32, #tpu.memory_space<vmem>>, vector<1x64x1xf32>
    %186 = vector.shape_cast %185 : vector<1x64x1xf32> to vector<64x1xf32>
    %187 = vector.broadcast %186 : vector<64x1xf32> to vector<64x256xf32>
    %188 = arith.addf %184, %187 : vector<64x256xf32>
    %cst_107 = arith.constant 5.000000e-01 : f32
    %189 = vector.broadcast %cst_107 : f32 to vector<64x256xf32>
    %190 = arith.mulf %189, %188 : vector<64x256xf32>
    %191 = math.tanh %190 : vector<64x256xf32>
    %cst_108 = arith.constant 5.000000e-01 : f32
    %192 = vector.broadcast %cst_108 : f32 to vector<64x256xf32>
    %193 = arith.mulf %192, %191 : vector<64x256xf32>
    %cst_109 = arith.constant 5.000000e-01 : f32
    %194 = vector.broadcast %cst_109 : f32 to vector<64x256xf32>
    %195 = arith.addf %193, %194 : vector<64x256xf32>
    %196 = arith.mulf %188, %195 : vector<64x256xf32>
    %c0_110 = arith.constant 0 : index
    %c0_111 = arith.constant 0 : index
    %c0_112 = arith.constant 0 : index
    %197 = vector.load %arg12[%c0_110, %c0_111, %c0_112] : memref<2x32x64xbf16, #tpu.memory_space<vmem>>, vector<1x32x64xbf16>
    %198 = vector.shape_cast %197 : vector<1x32x64xbf16> to vector<32x64xbf16>
    %199 = arith.truncf %196 : vector<64x256xf32> to vector<64x256xbf16>
    %cst_113 = arith.constant dense<0.000000e+00> : vector<32x256xf32>
    %200 = tpu.matmul %198, %199, %cst_113 {dimension_numbers = #tpu.dot_dimension_numbers<[1], [0], [0], [1], [0, 0, 1, 1], [], []>} : vector<32x64xbf16>, vector<64x256xbf16>, vector<32x256xf32> -> vector<32x256xf32>
    %201 = arith.addf %156, %200 : vector<32x256xf32>
    %c0_114 = arith.constant 0 : index
    %c0_115 = arith.constant 0 : index
    %c0_116 = arith.constant 0 : index
    %202 = vector.load %arg13[%c0_114, %c0_115, %c0_116] : memref<2x32x1xf32, #tpu.memory_space<vmem>>, vector<1x32x1xf32>
    %203 = vector.shape_cast %202 : vector<1x32x1xf32> to vector<32x1xf32>
    %204 = vector.broadcast %203 : vector<32x1xf32> to vector<32x256xf32>
    %205 = arith.addf %201, %204 : vector<32x256xf32>
    %206 = vector.shape_cast %205 : vector<32x256xf32> to vector<1x32x256xf32>
    %cst_117 = arith.constant dense<0.000000e+00> : vector<1xf32>
    %207 = vector.multi_reduction <add>, %206, %cst_117 [1, 2] : vector<1x32x256xf32> to vector<1xf32>
    %208 = vector.shape_cast %207 : vector<1xf32> to vector<1x1x1xf32>
    %209 = vector.extract %208[0, 0, 0] : f32 from vector<1x1x1xf32>
    %210 = vector.broadcast %209 : f32 to vector<1x1xf32>
    %cst_118 = arith.constant 8.192000e+03 : f32
    %211 = vector.broadcast %cst_118 : f32 to vector<1x1xf32>
    %212 = arith.divf %210, %211 : vector<1x1xf32>
    %213 = arith.mulf %205, %205 : vector<32x256xf32>
    %214 = vector.shape_cast %213 : vector<32x256xf32> to vector<1x32x256xf32>
    %cst_119 = arith.constant dense<0.000000e+00> : vector<1xf32>
    %215 = vector.multi_reduction <add>, %214, %cst_119 [1, 2] : vector<1x32x256xf32> to vector<1xf32>
    %216 = vector.shape_cast %215 : vector<1xf32> to vector<1x1x1xf32>
    %217 = vector.extract %216[0, 0, 0] : f32 from vector<1x1x1xf32>
    %218 = vector.broadcast %217 : f32 to vector<1x1xf32>
    %cst_120 = arith.constant 8.192000e+03 : f32
    %219 = vector.broadcast %cst_120 : f32 to vector<1x1xf32>
    %220 = arith.divf %218, %219 : vector<1x1xf32>
    %221 = vector.broadcast %212 : vector<1x1xf32> to vector<32x256xf32>
    %222 = arith.subf %205, %221 : vector<32x256xf32>
    %223 = arith.mulf %212, %212 : vector<1x1xf32>
    %224 = arith.subf %220, %223 : vector<1x1xf32>
    %cst_121 = arith.constant 9.99999974E-6 : f32
    %225 = vector.broadcast %cst_121 : f32 to vector<1x1xf32>
    %226 = arith.addf %224, %225 : vector<1x1xf32>
    %227 = math.rsqrt %226 : vector<1x1xf32>
    %228 = vector.broadcast %227 : vector<1x1xf32> to vector<32x256xf32>
    %229 = arith.mulf %222, %228 : vector<32x256xf32>
    %230 = arith.truncf %229 : vector<32x256xf32> to vector<32x256xbf16>
    %c1_122 = arith.constant 1 : index
    %c0_123 = arith.constant 0 : index
    %c0_124 = arith.constant 0 : index
    %231 = vector.load %arg6[%c1_122, %c0_123, %c0_124] : memref<2x65x32xbf16, #tpu.memory_space<vmem>>, vector<1x65x32xbf16>
    %232 = vector.shape_cast %231 : vector<1x65x32xbf16> to vector<65x32xbf16>
    %cst_125 = arith.constant dense<0.000000e+00> : vector<65x256xf32>
    %233 = tpu.matmul %232, %230, %cst_125 {dimension_numbers = #tpu.dot_dimension_numbers<[1], [0], [0], [1], [0, 0, 1, 1], [], []>} : vector<65x32xbf16>, vector<32x256xbf16>, vector<65x256xf32> -> vector<65x256xf32>
    %c1_126 = arith.constant 1 : index
    %c0_127 = arith.constant 0 : index
    %c0_128 = arith.constant 0 : index
    %234 = vector.load %arg7[%c1_126, %c0_127, %c0_128] : memref<2x65x1xf32, #tpu.memory_space<vmem>>, vector<1x65x1xf32>
    %235 = vector.shape_cast %234 : vector<1x65x1xf32> to vector<65x1xf32>
    %236 = vector.broadcast %235 : vector<65x1xf32> to vector<65x256xf32>
    %237 = arith.addf %233, %236 : vector<65x256xf32>
    %238 = vector.extract_strided_slice %237 {offsets = [0, 0], sizes = [32, 256], strides = [1, 1]} : vector<65x256xf32> to vector<32x256xf32>
    %239 = vector.extract_strided_slice %237 {offsets = [32, 0], sizes = [32, 256], strides = [1, 1]} : vector<65x256xf32> to vector<32x256xf32>
    %240 = vector.extract_strided_slice %237 {offsets = [64, 0], sizes = [1, 256], strides = [1, 1]} : vector<65x256xf32> to vector<1x256xf32>
    %cst_129 = arith.constant -3.40282347E+38 : f32
    %241 = vector.shape_cast %240 : vector<1x256xf32> to vector<1x256xf32>
    %242 = vector.broadcast %241 : vector<1x256xf32> to vector<4x256xf32>
    %243 = vector.broadcast %cst_129 : f32 to vector<4x256xf32>
    %244 = arith.select %86, %242, %243 : vector<4x256xi1>, vector<4x256xf32>
    %cst_130 = arith.constant dense<0xFF800000> : vector<4xf32>
    %245 = vector.multi_reduction <maximumf>, %244, %cst_130 [1] : vector<4x256xf32> to vector<4xf32>
    %246 = vector.shape_cast %245 : vector<4xf32> to vector<4x1xf32>
    %247 = vector.broadcast %240 : vector<1x256xf32> to vector<4x256xf32>
    %248 = vector.broadcast %246 : vector<4x1xf32> to vector<4x256xf32>
    %249 = arith.subf %247, %248 : vector<4x256xf32>
    %cst_131 = arith.constant -3.40282347E+38 : f32
    %250 = vector.broadcast %cst_131 : f32 to vector<4x256xf32>
    %251 = arith.select %86, %249, %250 : vector<4x256xi1>, vector<4x256xf32>
    %252 = math.exp %251 : vector<4x256xf32>
    %cst_132 = arith.constant dense<0.000000e+00> : vector<4xf32>
    %253 = vector.multi_reduction <add>, %252, %cst_132 [1] : vector<4x256xf32> to vector<4xf32>
    %254 = vector.shape_cast %253 : vector<4xf32> to vector<4x1xf32>
    %255 = tpu.reciprocal %254 {approx = true} : vector<4x1xf32> -> vector<4x1xf32>
    %256 = vector.broadcast %255 : vector<4x1xf32> to vector<4x256xf32>
    %257 = arith.mulf %252, %256 : vector<4x256xf32>
    %258 = arith.truncf %257 : vector<4x256xf32> to vector<4x256xbf16>
    %259 = arith.truncf %238 : vector<32x256xf32> to vector<32x256xbf16>
    %cst_133 = arith.constant dense<0.000000e+00> : vector<32x4xf32>
    %260 = tpu.matmul %259, %258, %cst_133 {dimension_numbers = #tpu.dot_dimension_numbers<[1], [1], [0], [0], [0, 0, 1, 0], [], []>} : vector<32x256xbf16>, vector<4x256xbf16>, vector<32x4xf32> -> vector<32x4xf32>
    %261 = arith.truncf %260 : vector<32x4xf32> to vector<32x4xbf16>
    %cst_134 = arith.constant dense<0.000000e+00> : vector<32x256xf32>
    %262 = tpu.matmul %261, %87, %cst_134 {dimension_numbers = #tpu.dot_dimension_numbers<[1], [0], [0], [1], [0, 0, 1, 1], [], []>} : vector<32x4xbf16>, vector<4x256xbf16>, vector<32x256xf32> -> vector<32x256xf32>
    %cst_135 = arith.constant 0.000000e+00 : f32
    %263 = vector.broadcast %cst_135 : f32 to vector<32x256xf32>
    %264 = arith.maximumf %239, %263 : vector<32x256xf32>
    %265 = arith.mulf %264, %262 : vector<32x256xf32>
    %266 = arith.truncf %265 : vector<32x256xf32> to vector<32x256xbf16>
    %c1_136 = arith.constant 1 : index
    %c0_137 = arith.constant 0 : index
    %c0_138 = arith.constant 0 : index
    %267 = vector.load %arg8[%c1_136, %c0_137, %c0_138] : memref<2x32x32xbf16, #tpu.memory_space<vmem>>, vector<1x32x32xbf16>
    %268 = vector.shape_cast %267 : vector<1x32x32xbf16> to vector<32x32xbf16>
    %cst_139 = arith.constant dense<0.000000e+00> : vector<32x256xf32>
    %269 = tpu.matmul %268, %266, %cst_139 {dimension_numbers = #tpu.dot_dimension_numbers<[1], [0], [0], [1], [0, 0, 1, 1], [], []>} : vector<32x32xbf16>, vector<32x256xbf16>, vector<32x256xf32> -> vector<32x256xf32>
    %270 = arith.addf %205, %269 : vector<32x256xf32>
    %c1_140 = arith.constant 1 : index
    %c0_141 = arith.constant 0 : index
    %c0_142 = arith.constant 0 : index
    %271 = vector.load %arg9[%c1_140, %c0_141, %c0_142] : memref<2x32x1xf32, #tpu.memory_space<vmem>>, vector<1x32x1xf32>
    %272 = vector.shape_cast %271 : vector<1x32x1xf32> to vector<32x1xf32>
    %273 = vector.broadcast %272 : vector<32x1xf32> to vector<32x256xf32>
    %274 = arith.addf %270, %273 : vector<32x256xf32>
    %275 = vector.shape_cast %274 : vector<32x256xf32> to vector<1x32x256xf32>
    %cst_143 = arith.constant dense<0.000000e+00> : vector<1xf32>
    %276 = vector.multi_reduction <add>, %275, %cst_143 [1, 2] : vector<1x32x256xf32> to vector<1xf32>
    %277 = vector.shape_cast %276 : vector<1xf32> to vector<1x1x1xf32>
    %278 = vector.extract %277[0, 0, 0] : f32 from vector<1x1x1xf32>
    %279 = vector.broadcast %278 : f32 to vector<1x1xf32>
    %cst_144 = arith.constant 8.192000e+03 : f32
    %280 = vector.broadcast %cst_144 : f32 to vector<1x1xf32>
    %281 = arith.divf %279, %280 : vector<1x1xf32>
    %282 = arith.mulf %274, %274 : vector<32x256xf32>
    %283 = vector.shape_cast %282 : vector<32x256xf32> to vector<1x32x256xf32>
    %cst_145 = arith.constant dense<0.000000e+00> : vector<1xf32>
    %284 = vector.multi_reduction <add>, %283, %cst_145 [1, 2] : vector<1x32x256xf32> to vector<1xf32>
    %285 = vector.shape_cast %284 : vector<1xf32> to vector<1x1x1xf32>
    %286 = vector.extract %285[0, 0, 0] : f32 from vector<1x1x1xf32>
    %287 = vector.broadcast %286 : f32 to vector<1x1xf32>
    %cst_146 = arith.constant 8.192000e+03 : f32
    %288 = vector.broadcast %cst_146 : f32 to vector<1x1xf32>
    %289 = arith.divf %287, %288 : vector<1x1xf32>
    %290 = vector.broadcast %281 : vector<1x1xf32> to vector<32x256xf32>
    %291 = arith.subf %274, %290 : vector<32x256xf32>
    %292 = arith.mulf %281, %281 : vector<1x1xf32>
    %293 = arith.subf %289, %292 : vector<1x1xf32>
    %cst_147 = arith.constant 9.99999974E-6 : f32
    %294 = vector.broadcast %cst_147 : f32 to vector<1x1xf32>
    %295 = arith.addf %293, %294 : vector<1x1xf32>
    %296 = math.rsqrt %295 : vector<1x1xf32>
    %297 = vector.broadcast %296 : vector<1x1xf32> to vector<32x256xf32>
    %298 = arith.mulf %291, %297 : vector<32x256xf32>
    %299 = arith.truncf %298 : vector<32x256xf32> to vector<32x256xbf16>
    %c1_148 = arith.constant 1 : index
    %c0_149 = arith.constant 0 : index
    %c0_150 = arith.constant 0 : index
    %300 = vector.load %arg10[%c1_148, %c0_149, %c0_150] : memref<2x64x32xbf16, #tpu.memory_space<vmem>>, vector<1x64x32xbf16>
    %301 = vector.shape_cast %300 : vector<1x64x32xbf16> to vector<64x32xbf16>
    %cst_151 = arith.constant dense<0.000000e+00> : vector<64x256xf32>
    %302 = tpu.matmul %301, %299, %cst_151 {dimension_numbers = #tpu.dot_dimension_numbers<[1], [0], [0], [1], [0, 0, 1, 1], [], []>} : vector<64x32xbf16>, vector<32x256xbf16>, vector<64x256xf32> -> vector<64x256xf32>
    %c1_152 = arith.constant 1 : index
    %c0_153 = arith.constant 0 : index
    %c0_154 = arith.constant 0 : index
    %303 = vector.load %arg11[%c1_152, %c0_153, %c0_154] : memref<2x64x1xf32, #tpu.memory_space<vmem>>, vector<1x64x1xf32>
    %304 = vector.shape_cast %303 : vector<1x64x1xf32> to vector<64x1xf32>
    %305 = vector.broadcast %304 : vector<64x1xf32> to vector<64x256xf32>
    %306 = arith.addf %302, %305 : vector<64x256xf32>
    %cst_155 = arith.constant 5.000000e-01 : f32
    %307 = vector.broadcast %cst_155 : f32 to vector<64x256xf32>
    %308 = arith.mulf %307, %306 : vector<64x256xf32>
    %309 = math.tanh %308 : vector<64x256xf32>
    %cst_156 = arith.constant 5.000000e-01 : f32
    %310 = vector.broadcast %cst_156 : f32 to vector<64x256xf32>
    %311 = arith.mulf %310, %309 : vector<64x256xf32>
    %cst_157 = arith.constant 5.000000e-01 : f32
    %312 = vector.broadcast %cst_157 : f32 to vector<64x256xf32>
    %313 = arith.addf %311, %312 : vector<64x256xf32>
    %314 = arith.mulf %306, %313 : vector<64x256xf32>
    %c1_158 = arith.constant 1 : index
    %c0_159 = arith.constant 0 : index
    %c0_160 = arith.constant 0 : index
    %315 = vector.load %arg12[%c1_158, %c0_159, %c0_160] : memref<2x32x64xbf16, #tpu.memory_space<vmem>>, vector<1x32x64xbf16>
    %316 = vector.shape_cast %315 : vector<1x32x64xbf16> to vector<32x64xbf16>
    %317 = arith.truncf %314 : vector<64x256xf32> to vector<64x256xbf16>
    %cst_161 = arith.constant dense<0.000000e+00> : vector<32x256xf32>
    %318 = tpu.matmul %316, %317, %cst_161 {dimension_numbers = #tpu.dot_dimension_numbers<[1], [0], [0], [1], [0, 0, 1, 1], [], []>} : vector<32x64xbf16>, vector<64x256xbf16>, vector<32x256xf32> -> vector<32x256xf32>
    %319 = arith.addf %274, %318 : vector<32x256xf32>
    %c1_162 = arith.constant 1 : index
    %c0_163 = arith.constant 0 : index
    %c0_164 = arith.constant 0 : index
    %320 = vector.load %arg13[%c1_162, %c0_163, %c0_164] : memref<2x32x1xf32, #tpu.memory_space<vmem>>, vector<1x32x1xf32>
    %321 = vector.shape_cast %320 : vector<1x32x1xf32> to vector<32x1xf32>
    %322 = vector.broadcast %321 : vector<32x1xf32> to vector<32x256xf32>
    %323 = arith.addf %319, %322 : vector<32x256xf32>
    %324 = vector.shape_cast %323 : vector<32x256xf32> to vector<1x32x256xf32>
    %cst_165 = arith.constant dense<0.000000e+00> : vector<1xf32>
    %325 = vector.multi_reduction <add>, %324, %cst_165 [1, 2] : vector<1x32x256xf32> to vector<1xf32>
    %326 = vector.shape_cast %325 : vector<1xf32> to vector<1x1x1xf32>
    %327 = vector.extract %326[0, 0, 0] : f32 from vector<1x1x1xf32>
    %328 = vector.broadcast %327 : f32 to vector<1x1xf32>
    %cst_166 = arith.constant 8.192000e+03 : f32
    %329 = vector.broadcast %cst_166 : f32 to vector<1x1xf32>
    %330 = arith.divf %328, %329 : vector<1x1xf32>
    %331 = arith.mulf %323, %323 : vector<32x256xf32>
    %332 = vector.shape_cast %331 : vector<32x256xf32> to vector<1x32x256xf32>
    %cst_167 = arith.constant dense<0.000000e+00> : vector<1xf32>
    %333 = vector.multi_reduction <add>, %332, %cst_167 [1, 2] : vector<1x32x256xf32> to vector<1xf32>
    %334 = vector.shape_cast %333 : vector<1xf32> to vector<1x1x1xf32>
    %335 = vector.extract %334[0, 0, 0] : f32 from vector<1x1x1xf32>
    %336 = vector.broadcast %335 : f32 to vector<1x1xf32>
    %cst_168 = arith.constant 8.192000e+03 : f32
    %337 = vector.broadcast %cst_168 : f32 to vector<1x1xf32>
    %338 = arith.divf %336, %337 : vector<1x1xf32>
    %339 = vector.broadcast %330 : vector<1x1xf32> to vector<32x256xf32>
    %340 = arith.subf %323, %339 : vector<32x256xf32>
    %341 = arith.mulf %330, %330 : vector<1x1xf32>
    %342 = arith.subf %338, %341 : vector<1x1xf32>
    %cst_169 = arith.constant 9.99999974E-6 : f32
    %343 = vector.broadcast %cst_169 : f32 to vector<1x1xf32>
    %344 = arith.addf %342, %343 : vector<1x1xf32>
    %345 = math.rsqrt %344 : vector<1x1xf32>
    %346 = vector.broadcast %345 : vector<1x1xf32> to vector<32x256xf32>
    %347 = arith.mulf %340, %346 : vector<32x256xf32>
    %348 = arith.truncf %347 : vector<32x256xf32> to vector<32x256xbf16>
    %c0_170 = arith.constant 0 : index
    %c0_171 = arith.constant 0 : index
    %349 = vector.load %arg14[%c0_170, %c0_171] : memref<32x32xbf16, #tpu.memory_space<vmem>>, vector<32x32xbf16>
    %cst_172 = arith.constant dense<0.000000e+00> : vector<32x256xf32>
    %350 = tpu.matmul %349, %348, %cst_172 {dimension_numbers = #tpu.dot_dimension_numbers<[1], [0], [0], [1], [0, 0, 1, 1], [], []>} : vector<32x32xbf16>, vector<32x256xbf16>, vector<32x256xf32> -> vector<32x256xf32>
    %c0_173 = arith.constant 0 : index
    %c0_174 = arith.constant 0 : index
    %351 = vector.load %arg15[%c0_173, %c0_174] : memref<32x1xf32, #tpu.memory_space<vmem>>, vector<32x1xf32>
    %352 = vector.broadcast %351 : vector<32x1xf32> to vector<32x256xf32>
    %353 = arith.addf %350, %352 : vector<32x256xf32>
    %c0_175 = arith.constant 0 : index
    %c0_176 = arith.constant 0 : index
    %c0_177 = arith.constant 0 : index
    %354 = vector.load %arg16[%c0_175, %c0_176, %c0_177] : memref<1x32x256xf32, #tpu.memory_space<vmem>>, vector<1x32x256xf32>
    %355 = vector.shape_cast %354 : vector<1x32x256xf32> to vector<32x256xf32>
    %356 = vector.shape_cast %353 : vector<32x256xf32> to vector<1x32x256xf32>
    tpu.vector_store %arg16[%c0_175, %c0_176, %c0_177], %356 {strides = array<i32>} : memref<1x32x256xf32, #tpu.memory_space<vmem>>, vector<1x32x256xf32>,
    return
  }
  func.func @transform_0(%arg0: i32) -> (i32, i32, i32, i32) {
    %c0_i32 = arith.constant 0 : i32
    %c0_i32_0 = arith.constant 0 : i32
    %c0_i32_1 = arith.constant 0 : i32
    %c0_i32_2 = arith.constant 0 : i32
    return %arg0, %c0_i32, %c0_i32_0, %c0_i32_1 : i32, i32, i32, i32
  }
  func.func @transform_1(%arg0: i32) -> (i32, i32, i32) {
    %c0_i32 = arith.constant 0 : i32
    %c0_i32_0 = arith.constant 0 : i32
    %c0_i32_1 = arith.constant 0 : i32
    %c0_i32_2 = arith.constant 0 : i32
    return %c0_i32, %c0_i32_0, %c0_i32_1 : i32, i32, i32
  }
  func.func @transform_2(%arg0: i32) -> (i32, i32) {
    %c0_i32 = arith.constant 0 : i32
    %c0_i32_0 = arith.constant 0 : i32
    %c0_i32_1 = arith.constant 0 : i32
    return %c0_i32, %c0_i32_0 : i32, i32
  }
  func.func @transform_3(%arg0: i32) -> (i32, i32) {
    %c0_i32 = arith.constant 0 : i32
    %c0_i32_0 = arith.constant 0 : i32
    %c0_i32_1 = arith.constant 0 : i32
    return %c0_i32, %c0_i32_0 : i32, i32
  }
  func.func @transform_4(%arg0: i32) -> (i32, i32) {
    %c0_i32 = arith.constant 0 : i32
    %c0_i32_0 = arith.constant 0 : i32
    %c0_i32_1 = arith.constant 0 : i32
    return %c0_i32, %c0_i32_0 : i32, i32
  }
  func.func @transform_5(%arg0: i32) -> (i32, i32, i32) {
    %c0_i32 = arith.constant 0 : i32
    %c0_i32_0 = arith.constant 0 : i32
    %c0_i32_1 = arith.constant 0 : i32
    %c0_i32_2 = arith.constant 0 : i32
    return %c0_i32, %c0_i32_0, %c0_i32_1 : i32, i32, i32
  }
  func.func @transform_6(%arg0: i32) -> (i32, i32, i32) {
    %c0_i32 = arith.constant 0 : i32
    %c0_i32_0 = arith.constant 0 : i32
    %c0_i32_1 = arith.constant 0 : i32
    %c0_i32_2 = arith.constant 0 : i32
    return %c0_i32, %c0_i32_0, %c0_i32_1 : i32, i32, i32
  }
  func.func @transform_7(%arg0: i32) -> (i32, i32, i32) {
    %c0_i32 = arith.constant 0 : i32
    %c0_i32_0 = arith.constant 0 : i32
    %c0_i32_1 = arith.constant 0 : i32
    %c0_i32_2 = arith.constant 0 : i32
    return %c0_i32, %c0_i32_0, %c0_i32_1 : i32, i32, i32
  }
  func.func @transform_8(%arg0: i32) -> (i32, i32, i32) {
    %c0_i32 = arith.constant 0 : i32
    %c0_i32_0 = arith.constant 0 : i32
    %c0_i32_1 = arith.constant 0 : i32
    %c0_i32_2 = arith.constant 0 : i32
    return %c0_i32, %c0_i32_0, %c0_i32_1 : i32, i32, i32
  }
  func.func @transform_9(%arg0: i32) -> (i32, i32, i32) {
    %c0_i32 = arith.constant 0 : i32
    %c0_i32_0 = arith.constant 0 : i32
    %c0_i32_1 = arith.constant 0 : i32
    %c0_i32_2 = arith.constant 0 : i32
    return %c0_i32, %c0_i32_0, %c0_i32_1 : i32, i32, i32
  }
  func.func @transform_10(%arg0: i32) -> (i32, i32, i32) {
    %c0_i32 = arith.constant 0 : i32
    %c0_i32_0 = arith.constant 0 : i32
    %c0_i32_1 = arith.constant 0 : i32
    %c0_i32_2 = arith.constant 0 : i32
    return %c0_i32, %c0_i32_0, %c0_i32_1 : i32, i32, i32
  }
  func.func @transform_11(%arg0: i32) -> (i32, i32, i32) {
    %c0_i32 = arith.constant 0 : i32
    %c0_i32_0 = arith.constant 0 : i32
    %c0_i32_1 = arith.constant 0 : i32
    %c0_i32_2 = arith.constant 0 : i32
    return %c0_i32, %c0_i32_0, %c0_i32_1 : i32, i32, i32
  }
  func.func @transform_12(%arg0: i32) -> (i32, i32, i32) {
    %c0_i32 = arith.constant 0 : i32
    %c0_i32_0 = arith.constant 0 : i32
    %c0_i32_1 = arith.constant 0 : i32
    %c0_i32_2 = arith.constant 0 : i32
    return %c0_i32, %c0_i32_0, %c0_i32_1 : i32, i32, i32
  }
  func.func @transform_13(%arg0: i32) -> (i32, i32) {
    %c0_i32 = arith.constant 0 : i32
    %c0_i32_0 = arith.constant 0 : i32
    %c0_i32_1 = arith.constant 0 : i32
    return %c0_i32, %c0_i32_0 : i32, i32
  }
  func.func @transform_14(%arg0: i32) -> (i32, i32) {
    %c0_i32 = arith.constant 0 : i32
    %c0_i32_0 = arith.constant 0 : i32
    %c0_i32_1 = arith.constant 0 : i32
    return %c0_i32, %c0_i32_0 : i32, i32
  }
  func.func @transform_15(%arg0: i32) -> (i32, i32, i32) {
    %c0_i32 = arith.constant 0 : i32
    %c0_i32_0 = arith.constant 0 : i32
    %c0_i32_1 = arith.constant 0 : i32
    return %arg0, %c0_i32, %c0_i32_0 : i32, i32, i32
  }
}

</mosaic_0001>

<llo_original>
// kernel: mobilevit_v2_block.1
$region0: #{mobilevit_v2_block.1}
  #allocation0 [shape = 'u32[]', space=smem, size = 0x4, offset = 0x4, fixed_abs, tag = 'smem constant byte address 0x4 - core index']
  #allocation1 [shape = 'u32[144,128]{1,0:T(1,128)}', space=vmem, size = 0x12000, scoped, tag = 'internal scratch']
  %s0 = inlined_call_operand.vmem [shape: f32[2,18,18,32], index: 0, kind: input, shape index: {}]
  %s1 = inlined_call_operand.vmem [shape: f32[3,3,32], index: 1, kind: input, shape index: {}]
  %s2 = inlined_call_operand.vmem [shape: f32[1,32], index: 2, kind: input, shape index: {}]
  %s3 = inlined_call_operand.vmem [shape: bf16[32,32], index: 3, kind: input, shape index: {}]
  %s4 = inlined_call_operand.vmem [shape: f32[4,256], index: 4, kind: input, shape index: {}]
  %s5 = inlined_call_operand.vmem [shape: bf16[2,65,32], index: 5, kind: input, shape index: {}]
  %s6 = inlined_call_operand.vmem [shape: f32[2,65,1], index: 6, kind: input, shape index: {}]
  %s7 = inlined_call_operand.vmem [shape: bf16[2,32,32], index: 7, kind: input, shape index: {}]
  %s8 = inlined_call_operand.vmem [shape: f32[2,32,1], index: 8, kind: input, shape index: {}]
  %s9 = inlined_call_operand.vmem [shape: bf16[2,64,32], index: 9, kind: input, shape index: {}]
  %s10 = inlined_call_operand.vmem [shape: f32[2,64,1], index: 10, kind: input, shape index: {}]
  %s11 = inlined_call_operand.vmem [shape: bf16[2,32,64], index: 11, kind: input, shape index: {}]
  %s12 = inlined_call_operand.vmem [shape: f32[2,32,1], index: 12, kind: input, shape index: {}]
  %s13 = inlined_call_operand.vmem [shape: bf16[32,32], index: 13, kind: input, shape index: {}]
  %s14 = inlined_call_operand.vmem [shape: f32[32,1], index: 14, kind: input, shape index: {}]
  %s15 = inlined_call_operand.vmem [shape: f32[2,32,256], index: 15, kind: output, shape index: {}]
  %s16 = sld [smem:[#allocation0]]
  $region93: #{mobilevit_v2_block.1} parent=0
    _
  %s18 = ssub.s32 1, %s16
  %s19 = scalar_select 0, %s18, %s16
  loop: start=0, step=1, limit=4
  $region2: #{mobilevit_v2_block.1} parent=0 // loop_pre_header
    _
  $region3: #{mobilevit_v2_block.1} parent=0 // loop_header
    %s21 = sphi 0, %s25
    %p22 = scmp.ge.s32.totalorder %s21, 4
    %s31 = sphi 0, %s33
    %s34 = sphi 0, %s31
    %s35 = sphi 0, %s34
    %s51 = sphi 0, %s35
    %s55 = sphi 0, %s55
    %s57 = sphi 0, %s55
    %s58 = sphi 0, %s57
    %s72 = sphi 0, %s58
    %s76 = sphi 0, %s76
    %s78 = sphi 0, %s76
    %s79 = sphi 0, %s78
    %s93 = sphi 0, %s79
    %s97 = sphi 0, %s97
    %s99 = sphi 0, %s97
    %s100 = sphi 0, %s99
    %s114 = sphi 0, %s100
    %s118 = sphi 0, %s118
    %s120 = sphi 0, %s118
    %s121 = sphi 0, %s120
    %s135 = sphi 0, %s121
    %s139 = sphi 0, %s139
    %s141 = sphi 0, %s139
    %s142 = sphi 0, %s141
    %s156 = sphi 0, %s142
    %s160 = sphi 0, %s160
    %s162 = sphi 0, %s160
    %s163 = sphi 0, %s162
    %s177 = sphi 0, %s163
    %s181 = sphi 0, %s181
    %s183 = sphi 0, %s181
    %s184 = sphi 0, %s183
    %s198 = sphi 0, %s184
    %s202 = sphi 0, %s202
    %s204 = sphi 0, %s202
    %s205 = sphi 0, %s204
    %s219 = sphi 0, %s205
    %s223 = sphi 0, %s223
    %s225 = sphi 0, %s223
    %s226 = sphi 0, %s225
    %s240 = sphi 0, %s226
    %s244 = sphi 0, %s244
    %s246 = sphi 0, %s244
    %s247 = sphi 0, %s246
    %s261 = sphi 0, %s247
    %s265 = sphi 0, %s265
    %s267 = sphi 0, %s265
    %s268 = sphi 0, %s267
    %s282 = sphi 0, %s268
    %s286 = sphi 0, %s286
    %s288 = sphi 0, %s286
    %s289 = sphi 0, %s288
    %s303 = sphi 0, %s289
    %s307 = sphi 0, %s307
    %s309 = sphi 0, %s307
    %s310 = sphi 0, %s309
    %s324 = sphi 0, %s310
    %s328 = sphi 0, %s328
    %s330 = sphi 0, %s328
    %s331 = sphi 0, %s330
    %s345 = sphi 0, %s331
    %s351 = sphi 0, %s353
    %s354 = sphi 0, %s351
    %s355 = sphi 0, %s354
    %s371 = sphi 0, %s355
  $region4: #{mobilevit_v2_block.1} parent=0 // loop_header_branch
    %24 = sbr.rel (%p22) target = $region8
  $region5: #{mobilevit_v2_block.1} parent=0 // loop_body
    %s26 = ssub.s32 %s21, 1
    %s27 = ssub.s32 %s21, 2
    %s28 = sadd.s32 %s21, 1
    %s29 = ssub.s32 %s21, %s28
    %p30 = scmp.eq.s32.totalorder %s29, 0
    %s32 = sadd.s32 %s31, 1
    %s33 = scalar_select %p30, %s31, %s32
    %p36 = pneg %p30
    %p37 = scmp.eq.s32.totalorder %s21, 1
    %p38 = por %p36, %p37
    %p39 = scmp.ne.s32.totalorder %s31, %s34
    %p40 = scmp.eq.s32.totalorder %s21, 0
    %p41 = por %p39, %p40
    %p42 = scmp.ne.s32.totalorder %s31, %s34
    %p43 = scmp.eq.s32.totalorder %s26, 1
    %p44 = por %p42, %p43
    %p45 = scmp.ne.s32.totalorder %s34, %s35
    %p46 = scmp.eq.s32.totalorder %s26, 0
    %p47 = por %p45, %p46
    %p48 = scmp.ne.s32.totalorder %s34, %s35
    %p49 = scmp.eq.s32.totalorder %s27, 1
    %p50 = por %p48, %p49
    %p52 = scmp.ne.s32.totalorder %s35, %s51
    %p53 = scmp.eq.s32.totalorder %s27, 0
    %p54 = por %p52, %p53
    %s56 = sadd.s32 %s55, 1
    %p59 = scmp.eq.s32.totalorder %s21, 1
    %p60 = scmp.ne.s32.totalorder %s55, %s57
    %p61 = scmp.eq.s32.totalorder %s21, 0
    %p62 = por %p60, %p61
    %p63 = scmp.ne.s32.totalorder %s55, %s57
    %p64 = scmp.eq.s32.totalorder %s26, 1
    %p65 = por %p63, %p64
    %p66 = scmp.ne.s32.totalorder %s57, %s58
    %p67 = scmp.eq.s32.totalorder %s26, 0
    %p68 = por %p66, %p67
    %p69 = scmp.ne.s32.totalorder %s57, %s58
    %p70 = scmp.eq.s32.totalorder %s27, 1
    %p71 = por %p69, %p70
    %p73 = scmp.ne.s32.totalorder %s58, %s72
    %p74 = scmp.eq.s32.totalorder %s27, 0
    %p75 = por %p73, %p74
    %s77 = sadd.s32 %s76, 1
    %p80 = scmp.eq.s32.totalorder %s21, 1
    %p81 = scmp.ne.s32.totalorder %s76, %s78
    %p82 = scmp.eq.s32.totalorder %s21, 0
    %p83 = por %p81, %p82
    %p84 = scmp.ne.s32.totalorder %s76, %s78
    %p85 = scmp.eq.s32.totalorder %s26, 1
    %p86 = por %p84, %p85
    %p87 = scmp.ne.s32.totalorder %s78, %s79
    %p88 = scmp.eq.s32.totalorder %s26, 0
    %p89 = por %p87, %p88
    %p90 = scmp.ne.s32.totalorder %s78, %s79
    %p91 = scmp.eq.s32.totalorder %s27, 1
    %p92 = por %p90, %p91
    %p94 = scmp.ne.s32.totalorder %s79, %s93
    %p95 = scmp.eq.s32.totalorder %s27, 0
    %p96 = por %p94, %p95
    %s98 = sadd.s32 %s97, 1
    %p101 = scmp.eq.s32.totalorder %s21, 1
    %p102 = scmp.ne.s32.totalorder %s97, %s99
    %p103 = scmp.eq.s32.totalorder %s21, 0
    %p104 = por %p102, %p103
    %p105 = scmp.ne.s32.totalorder %s97, %s99
    %p106 = scmp.eq.s32.totalorder %s26, 1
    %p107 = por %p105, %p106
    %p108 = scmp.ne.s32.totalorder %s99, %s100
    %p109 = scmp.eq.s32.totalorder %s26, 0
    %p110 = por %p108, %p109
    %p111 = scmp.ne.s32.totalorder %s99, %s100
    %p112 = scmp.eq.s32.totalorder %s27, 1
    %p113 = por %p111, %p112
    %p115 = scmp.ne.s32.totalorder %s100, %s114
    %p116 = scmp.eq.s32.totalorder %s27, 0
    %p117 = por %p115, %p116
    %s119 = sadd.s32 %s118, 1
    %p122 = scmp.eq.s32.totalorder %s21, 1
    %p123 = scmp.ne.s32.totalorder %s118, %s120
    %p124 = scmp.eq.s32.totalorder %s21, 0
    %p125 = por %p123, %p124
    %p126 = scmp.ne.s32.totalorder %s118, %s120
    %p127 = scmp.eq.s32.totalorder %s26, 1
    %p128 = por %p126, %p127
    %p129 = scmp.ne.s32.totalorder %s120, %s121
    %p130 = scmp.eq.s32.totalorder %s26, 0
    %p131 = por %p129, %p130
    %p132 = scmp.ne.s32.totalorder %s120, %s121
    %p133 = scmp.eq.s32.totalorder %s27, 1
    %p134 = por %p132, %p133
    %p136 = scmp.ne.s32.totalorder %s121, %s135
    %p137 = scmp.eq.s32.totalorder %s27, 0
    %p138 = por %p136, %p137
    %s140 = sadd.s32 %s139, 1
    %p143 = scmp.eq.s32.totalorder %s21, 1
    %p144 = scmp.ne.s32.totalorder %s139, %s141
    %p145 = scmp.eq.s32.totalorder %s21, 0
    %p146 = por %p144, %p145
    %p147 = scmp.ne.s32.totalorder %s139, %s141
    %p148 = scmp.eq.s32.totalorder %s26, 1
    %p149 = por %p147, %p148
    %p150 = scmp.ne.s32.totalorder %s141, %s142
    %p151 = scmp.eq.s32.totalorder %s26, 0
    %p152 = por %p150, %p151
    %p153 = scmp.ne.s32.totalorder %s141, %s142
    %p154 = scmp.eq.s32.totalorder %s27, 1
    %p155 = por %p153, %p154
    %p157 = scmp.ne.s32.totalorder %s142, %s156
    %p158 = scmp.eq.s32.totalorder %s27, 0
    %p159 = por %p157, %p158
    %s161 = sadd.s32 %s160, 1
    %p164 = scmp.eq.s32.totalorder %s21, 1
    %p165 = scmp.ne.s32.totalorder %s160, %s162
    %p166 = scmp.eq.s32.totalorder %s21, 0
    %p167 = por %p165, %p166
    %p168 = scmp.ne.s32.totalorder %s160, %s162
    %p169 = scmp.eq.s32.totalorder %s26, 1
    %p170 = por %p168, %p169
    %p171 = scmp.ne.s32.totalorder %s162, %s163
    %p172 = scmp.eq.s32.totalorder %s26, 0
    %p173 = por %p171, %p172
    %p174 = scmp.ne.s32.totalorder %s162, %s163
    %p175 = scmp.eq.s32.totalorder %s27, 1
    %p176 = por %p174, %p175
    %p178 = scmp.ne.s32.totalorder %s163, %s177
    %p179 = scmp.eq.s32.totalorder %s27, 0
    %p180 = por %p178, %p179
    %s182 = sadd.s32 %s181, 1
    %p185 = scmp.eq.s32.totalorder %s21, 1
    %p186 = scmp.ne.s32.totalorder %s181, %s183
    %p187 = scmp.eq.s32.totalorder %s21, 0
    %p188 = por %p186, %p187
    %p189 = scmp.ne.s32.totalorder %s181, %s183
    %p190 = scmp.eq.s32.totalorder %s26, 1
    %p191 = por %p189, %p190
    %p192 = scmp.ne.s32.totalorder %s183, %s184
    %p193 = scmp.eq.s32.totalorder %s26, 0
    %p194 = por %p192, %p193
    %p195 = scmp.ne.s32.totalorder %s183, %s184
    %p196 = scmp.eq.s32.totalorder %s27, 1
    %p197 = por %p195, %p196
    %p199 = scmp.ne.s32.totalorder %s184, %s198
    %p200 = scmp.eq.s32.totalorder %s27, 0
    %p201 = por %p199, %p200
    %s203 = sadd.s32 %s202, 1
    %p206 = scmp.eq.s32.totalorder %s21, 1
    %p207 = scmp.ne.s32.totalorder %s202, %s204
    %p208 = scmp.eq.s32.totalorder %s21, 0
    %p209 = por %p207, %p208
    %p210 = scmp.ne.s32.totalorder %s202, %s204
    %p211 = scmp.eq.s32.totalorder %s26, 1
    %p212 = por %p210, %p211
    %p213 = scmp.ne.s32.totalorder %s204, %s205
    %p214 = scmp.eq.s32.totalorder %s26, 0
    %p215 = por %p213, %p214
    %p216 = scmp.ne.s32.totalorder %s204, %s205
    %p217 = scmp.eq.s32.totalorder %s27, 1
    %p218 = por %p216, %p217
    %p220 = scmp.ne.s32.totalorder %s205, %s219
    %p221 = scmp.eq.s32.totalorder %s27, 0
    %p222 = por %p220, %p221
    %s224 = sadd.s32 %s223, 1
    %p227 = scmp.eq.s32.totalorder %s21, 1
    %p228 = scmp.ne.s32.totalorder %s223, %s225
    %p229 = scmp.eq.s32.totalorder %s21, 0
    %p230 = por %p228, %p229
    %p231 = scmp.ne.s32.totalorder %s223, %s225
    %p232 = scmp.eq.s32.totalorder %s26, 1
    %p233 = por %p231, %p232
    %p234 = scmp.ne.s32.totalorder %s225, %s226
    %p235 = scmp.eq.s32.totalorder %s26, 0
    %p236 = por %p234, %p235
    %p237 = scmp.ne.s32.totalorder %s225, %s226
    %p238 = scmp.eq.s32.totalorder %s27, 1
    %p239 = por %p237, %p238
    %p241 = scmp.ne.s32.totalorder %s226, %s240
    %p242 = scmp.eq.s32.totalorder %s27, 0
    %p243 = por %p241, %p242
    %s245 = sadd.s32 %s244, 1
    %p248 = scmp.eq.s32.totalorder %s21, 1
    %p249 = scmp.ne.s32.totalorder %s244, %s246
    %p250 = scmp.eq.s32.totalorder %s21, 0
    %p251 = por %p249, %p250
    %p252 = scmp.ne.s32.totalorder %s244, %s246
    %p253 = scmp.eq.s32.totalorder %s26, 1
    %p254 = por %p252, %p253
    %p255 = scmp.ne.s32.totalorder %s246, %s247
    %p256 = scmp.eq.s32.totalorder %s26, 0
    %p257 = por %p255, %p256
    %p258 = scmp.ne.s32.totalorder %s246, %s247
    %p259 = scmp.eq.s32.totalorder %s27, 1
    %p260 = por %p258, %p259
    %p262 = scmp.ne.s32.totalorder %s247, %s261
    %p263 = scmp.eq.s32.totalorder %s27, 0
    %p264 = por %p262, %p263
    %s266 = sadd.s32 %s265, 1
    %p269 = scmp.eq.s32.totalorder %s21, 1
    %p270 = scmp.ne.s32.totalorder %s265, %s267
    %p271 = scmp.eq.s32.totalorder %s21, 0
    %p272 = por %p270, %p271
    %p273 = scmp.ne.s32.totalorder %s265, %s267
    %p274 = scmp.eq.s32.totalorder %s26, 1
    %p275 = por %p273, %p274
    %p276 = scmp.ne.s32.totalorder %s267, %s268
    %p277 = scmp.eq.s32.totalorder %s26, 0
    %p278 = por %p276, %p277
    %p279 = scmp.ne.s32.totalorder %s267, %s268
    %p280 = scmp.eq.s32.totalorder %s27, 1
    %p281 = por %p279, %p280
    %p283 = scmp.ne.s32.totalorder %s268, %s282
    %p284 = scmp.eq.s32.totalorder %s27, 0
    %p285 = por %p283, %p284
    %s287 = sadd.s32 %s286, 1
    %p290 = scmp.eq.s32.totalorder %s21, 1
    %p291 = scmp.ne.s32.totalorder %s286, %s288
    %p292 = scmp.eq.s32.totalorder %s21, 0
    %p293 = por %p291, %p292
    %p294 = scmp.ne.s32.totalorder %s286, %s288
    %p295 = scmp.eq.s32.totalorder %s26, 1
    %p296 = por %p294, %p295
    %p297 = scmp.ne.s32.totalorder %s288, %s289
    %p298 = scmp.eq.s32.totalorder %s26, 0
    %p299 = por %p297, %p298
    %p300 = scmp.ne.s32.totalorder %s288, %s289
    %p301 = scmp.eq.s32.totalorder %s27, 1
    %p302 = por %p300, %p301
    %p304 = scmp.ne.s32.totalorder %s289, %s303
    %p305 = scmp.eq.s32.totalorder %s27, 0
    %p306 = por %p304, %p305
    %s308 = sadd.s32 %s307, 1
    %p311 = scmp.eq.s32.totalorder %s21, 1
    %p312 = scmp.ne.s32.totalorder %s307, %s309
    %p313 = scmp.eq.s32.totalorder %s21, 0
    %p314 = por %p312, %p313
    %p315 = scmp.ne.s32.totalorder %s307, %s309
    %p316 = scmp.eq.s32.totalorder %s26, 1
    %p317 = por %p315, %p316
    %p318 = scmp.ne.s32.totalorder %s309, %s310
    %p319 = scmp.eq.s32.totalorder %s26, 0
    %p320 = por %p318, %p319
    %p321 = scmp.ne.s32.totalorder %s309, %s310
    %p322 = scmp.eq.s32.totalorder %s27, 1
    %p323 = por %p321, %p322
    %p325 = scmp.ne.s32.totalorder %s310, %s324
    %p326 = scmp.eq.s32.totalorder %s27, 0
    %p327 = por %p325, %p326
    %s329 = sadd.s32 %s328, 1
    %p332 = scmp.eq.s32.totalorder %s21, 1
    %p333 = scmp.ne.s32.totalorder %s328, %s330
    %p334 = scmp.eq.s32.totalorder %s21, 0
    %p335 = por %p333, %p334
    %p336 = scmp.ne.s32.totalorder %s328, %s330
    %p337 = scmp.eq.s32.totalorder %s26, 1
    %p338 = por %p336, %p337
    %p339 = scmp.ne.s32.totalorder %s330, %s331
    %p340 = scmp.eq.s32.totalorder %s26, 0
    %p341 = por %p339, %p340
    %p342 = scmp.ne.s32.totalorder %s330, %s331
    %p343 = scmp.eq.s32.totalorder %s27, 1
    %p344 = por %p342, %p343
    %p346 = scmp.ne.s32.totalorder %s331, %s345
    %p347 = scmp.eq.s32.totalorder %s27, 0
    %p348 = por %p346, %p347
    %s349 = ssub.s32 %s21, %s28
    %p350 = scmp.eq.s32.totalorder %s349, 0
    %s352 = sadd.s32 %s351, 1
    %s353 = scalar_select %p350, %s351, %s352
    %p356 = pneg %p350
    %p357 = scmp.eq.s32.totalorder %s21, 1
    %p358 = por %p356, %p357
    %p359 = scmp.ne.s32.totalorder %s351, %s354
    %p360 = scmp.eq.s32.totalorder %s21, 0
    %p361 = por %p359, %p360
    %p362 = scmp.ne.s32.totalorder %s351, %s354
    %p363 = scmp.eq.s32.totalorder %s26, 1
    %p364 = por %p362, %p363
    %p365 = scmp.ne.s32.totalorder %s354, %s355
    %p366 = scmp.eq.s32.totalorder %s26, 0
    %p367 = por %p365, %p366
    %p368 = scmp.ne.s32.totalorder %s354, %s355
    %p369 = scmp.eq.s32.totalorder %s27, 1
    %p370 = por %p368, %p369
    %p372 = scmp.ne.s32.totalorder %s355, %s371
    %p373 = scmp.eq.s32.totalorder %s27, 0
    %p374 = por %p372, %p373
    %p375 = scmp.le.s32.totalorder 1, %s21
    %p376 = scmp.lt.s32.totalorder %s21, 3
    %p377 = pnand %p375, %p376
    %p378 = pneg %p377
    // Predicated region
    $region9: #{mobilevit_v2_block.1} parent=5 // pred_check
      _
    $region10: #{mobilevit_v2_block.1} parent=5 // pred_check_branch
      %380 = sbr.rel (%p377) target = $region12
    $region11: #{mobilevit_v2_block.1} parent=5 // pred_region
      %s381 = ssub.s32 %s21, 1
      // Predicated region
      $region13: #{mobilevit_v2_block.1} parent=11 // pred_check
        %p382 = pneg %p68
      $region14: #{mobilevit_v2_block.1} parent=11 // pred_check_branch
        %384 = sbr.rel (%p382) target = $region16
      $region15: #{mobilevit_v2_block.1} parent=11 // pred_region
        _
      $region16: #{mobilevit_v2_block.1} parent=11 // pred_fallthru
        _
      // Predicated region
      $region17: #{mobilevit_v2_block.1} parent=11 // pred_check
        %p385 = pneg %p89
      $region18: #{mobilevit_v2_block.1} parent=11 // pred_check_branch
        %387 = sbr.rel (%p385) target = $region20
      $region19: #{mobilevit_v2_block.1} parent=11 // pred_region
        _
      $region20: #{mobilevit_v2_block.1} parent=11 // pred_fallthru
        _
      // Predicated region
      $region21: #{mobilevit_v2_block.1} parent=11 // pred_check
        %p388 = pneg %p110
      $region22: #{mobilevit_v2_block.1} parent=11 // pred_check_branch
        %390 = sbr.rel (%p388) target = $region24
      $region23: #{mobilevit_v2_block.1} parent=11 // pred_region
        _
      $region24: #{mobilevit_v2_block.1} parent=11 // pred_fallthru
        _
      // Predicated region
      $region25: #{mobilevit_v2_block.1} parent=11 // pred_check
        %p391 = pneg %p131
      $region26: #{mobilevit_v2_block.1} parent=11 // pred_check_branch
        %393 = sbr.rel (%p391) target = $region28
      $region27: #{mobilevit_v2_block.1} parent=11 // pred_region
        _
      $region28: #{mobilevit_v2_block.1} parent=11 // pred_fallthru
        _
      // Predicated region
      $region29: #{mobilevit_v2_block.1} parent=11 // pred_check
        %p394 = pneg %p152
      $region30: #{mobilevit_v2_block.1} parent=11 // pred_check_branch
        %396 = sbr.rel (%p394) target = $region32
      $region31: #{mobilevit_v2_block.1} parent=11 // pred_region
        _
      $region32: #{mobilevit_v2_block.1} parent=11 // pred_fallthru
        _
      // Predicated region
      $region33: #{mobilevit_v2_block.1} parent=11 // pred_check
        %p397 = pneg %p173
      $region34: #{mobilevit_v2_block.1} parent=11 // pred_check_branch
        %399 = sbr.rel (%p397) target = $region36
      $region35: #{mobilevit_v2_block.1} parent=11 // pred_region
        _
      $region36: #{mobilevit_v2_block.1} parent=11 // pred_fallthru
        _
      // Predicated region
      $region37: #{mobilevit_v2_block.1} parent=11 // pred_check
        %p400 = pneg %p194
      $region38: #{mobilevit_v2_block.1} parent=11 // pred_check_branch
        %402 = sbr.rel (%p400) target = $region40
      $region39: #{mobilevit_v2_block.1} parent=11 // pred_region
        _
      $region40: #{mobilevit_v2_block.1} parent=11 // pred_fallthru
        _
      // Predicated region
      $region41: #{mobilevit_v2_block.1} parent=11 // pred_check
        %p403 = pneg %p215
      $region42: #{mobilevit_v2_block.1} parent=11 // pred_check_branch
        %405 = sbr.rel (%p403) target = $region44
      $region43: #{mobilevit_v2_block.1} parent=11 // pred_region
        _
      $region44: #{mobilevit_v2_block.1} parent=11 // pred_fallthru
        _
      // Predicated region
      $region45: #{mobilevit_v2_block.1} parent=11 // pred_check
        %p406 = pneg %p236
      $region46: #{mobilevit_v2_block.1} parent=11 // pred_check_branch
        %408 = sbr.rel (%p406) target = $region48
      $region47: #{mobilevit_v2_block.1} parent=11 // pred_region
        _
      $region48: #{mobilevit_v2_block.1} parent=11 // pred_fallthru
        _
      // Predicated region
      $region49: #{mobilevit_v2_block.1} parent=11 // pred_check
        %p409 = pneg %p257
      $region50: #{mobilevit_v2_block.1} parent=11 // pred_check_branch
        %411 = sbr.rel (%p409) target = $region52
      $region51: #{mobilevit_v2_block.1} parent=11 // pred_region
        _
      $region52: #{mobilevit_v2_block.1} parent=11 // pred_fallthru
        _
      // Predicated region
      $region53: #{mobilevit_v2_block.1} parent=11 // pred_check
        %p412 = pneg %p278
      $region54: #{mobilevit_v2_block.1} parent=11 // pred_check_branch
        %414 = sbr.rel (%p412) target = $region56
      $region55: #{mobilevit_v2_block.1} parent=11 // pred_region
        _
      $region56: #{mobilevit_v2_block.1} parent=11 // pred_fallthru
        _
      // Predicated region
      $region57: #{mobilevit_v2_block.1} parent=11 // pred_check
        %p415 = pneg %p299
      $region58: #{mobilevit_v2_block.1} parent=11 // pred_check_branch
        %417 = sbr.rel (%p415) target = $region60
      $region59: #{mobilevit_v2_block.1} parent=11 // pred_region
        _
      $region60: #{mobilevit_v2_block.1} parent=11 // pred_fallthru
        _
      // Predicated region
      $region61: #{mobilevit_v2_block.1} parent=11 // pred_check
        %p418 = pneg %p320
      $region62: #{mobilevit_v2_block.1} parent=11 // pred_check_branch
        %420 = sbr.rel (%p418) target = $region64
      $region63: #{mobilevit_v2_block.1} parent=11 // pred_region
        _
      $region64: #{mobilevit_v2_block.1} parent=11 // pred_fallthru
        _
      // Predicated region
      $region65: #{mobilevit_v2_block.1} parent=11 // pred_check
        %p421 = pneg %p341
      $region66: #{mobilevit_v2_block.1} parent=11 // pred_check_branch
        %423 = sbr.rel (%p421) target = $region68
      $region67: #{mobilevit_v2_block.1} parent=11 // pred_region
        _
      $region68: #{mobilevit_v2_block.1} parent=11 // pred_fallthru
        _
    $region12: #{mobilevit_v2_block.1} parent=5 // pred_fallthru
      _
    %p424 = scmp.lt.s32.totalorder %s21, 2
    // Predicated region
    $region69: #{mobilevit_v2_block.1} parent=5 // pred_check
      %p425 = pneg %p424
    $region70: #{mobilevit_v2_block.1} parent=5 // pred_check_branch
      %427 = sbr.rel (%p425) target = $region72
    $region71: #{mobilevit_v2_block.1} parent=5 // pred_region
      // Predicated region
      $region73: #{mobilevit_v2_block.1} parent=71 // pred_check
        %p428 = pneg %p41
      $region74: #{mobilevit_v2_block.1} parent=71 // pred_check_branch
        %430 = sbr.rel (%p428) target = $region76
      $region75: #{mobilevit_v2_block.1} parent=71 // pred_region
        %p431 = scmp.lt.s32.totalorder %s21, 1
        %s432 = scalar_select %p431, %s21, 1
        %s433 = smul.addr %s432, 54
        %s434 = smul.addr %s433, 8
        %s435 = scalar_lea.vmem %s0, %s434
      $region76: #{mobilevit_v2_block.1} parent=71 // pred_fallthru
        _
    $region72: #{mobilevit_v2_block.1} parent=5 // pred_fallthru
      _
    %p436 = scmp.le.s32.totalorder 1, %s21
    %p437 = scmp.lt.s32.totalorder %s21, 3
    %p438 = pnand %p436, %p437
    %p439 = pneg %p438
    // Predicated region
    $region77: #{mobilevit_v2_block.1} parent=5 // pred_check
      _
    $region78: #{mobilevit_v2_block.1} parent=5 // pred_check_branch
      %441 = sbr.rel (%p438) target = $region80
    $region79: #{mobilevit_v2_block.1} parent=5 // pred_region
      %s442 = ssub.s32 %s21, 1
      %p443 = scmp.lt.s32.totalorder %s26, 1
      %s444 = scalar_select %p443, %s26, 1
      %s445 = smul.addr %s444, 54
      %s446 = smul.addr %s445, 8
      %s447 = scalar_lea.vmem %s0, %s446
      %p448 = pneg %p47
      %p449 = pneg %p44
      %p450 = pneg %p68
      %p451 = pneg %p65
      %p452 = pneg %p89
      %p453 = pneg %p86
      %p454 = pneg %p110
      %p455 = pneg %p107
      %p456 = pneg %p131
      %p457 = pneg %p128
      %p458 = pneg %p152
      %p459 = pneg %p149
      %p460 = pneg %p173
      %p461 = pneg %p170
      %p462 = pneg %p194
      %p463 = pneg %p191
      %p464 = pneg %p215
      %p465 = pneg %p212
      %p466 = pneg %p236
      %p467 = pneg %p233
      %p468 = pneg %p257
      %p469 = pneg %p254
      %p470 = pneg %p278
      %p471 = pneg %p275
      %p472 = pneg %p299
      %p473 = pneg %p296
      %p474 = pneg %p320
      %p475 = pneg %p317
      %p476 = pneg %p341
      %p477 = pneg %p338
      %p478 = pneg %p367
      %p479 = pneg %p364
      %p480 = scmp.lt.s32.totalorder %s26, 1
      %s481 = scalar_select %p480, %s26, 1
      %s482 = smul.addr %s481, 8
      %s483 = smul.addr %s482, 8
      %s484 = scalar_lea.vmem %s15, %s483
      %p485 = scmp.lt.s32.totalorder %s26, 1
      %s486 = scalar_select %p485, %s26, 1
      %s487 = smul.addr %s486, 54
      %s488 = smul.addr %s487, 8
      %s489 = scalar_lea.vmem %s0, %s488
      %p490 = scmp.lt.s32.totalorder %s26, 1
      %s491 = scalar_select %p490, %s26, 1
      %s492 = smul.addr %s491, 8
      %s493 = smul.addr %s492, 8
      %s494 = scalar_lea.vmem %s15, %s493
      %v496 = vld [vmem:[%s489] sm:$0xff]
      %v497 = vld [vmem:[%s489 + $0x8] sm:$0xff]
      %v498 = vld [vmem:[%s489 + $0x18] sm:$0xff]
      %v499 = vld [vmem:[%s489 + $0x20] sm:$0xff]
      %v500 = vld [vmem:[%s489 + $0x30] sm:$0xff]
      %v501 = vld [vmem:[%s489 + $0x38] sm:$0xff]
      %v502 = vld [vmem:[%s489 + $0x48] sm:$0xff]
      %v503 = vld [vmem:[%s489 + $0x50] sm:$0xff]
      %v504 = vld [vmem:[%s489 + $0x60] sm:$0xff]
      %v505 = vld [vmem:[%s489 + $0x68] sm:$0xff]
      %v506 = vld [vmem:[%s489 + $0x78] sm:$0xff]
      %v507 = vld [vmem:[%s489 + $0x80] sm:$0xff]
      %v508 = vld [vmem:[%s489 + $0x90] sm:$0xff]
      %v509 = vld [vmem:[%s489 + $0x98] sm:$0xff]
      %v510 = vld [vmem:[%s489 + $0xa8] sm:$0xff]
      %v511 = vld [vmem:[%s489 + $0xb0] sm:$0xff]
      %v512 = vld [vmem:[%s489 + $0xc0] sm:$0xff]
      %v513 = vld [vmem:[%s489 + $0xc8] sm:$0xff]
      %v514 = vld [vmem:[%s489 + $0xd8] sm:$0xff]
      %v515 = vld [vmem:[%s489 + $0xe0] sm:$0xff]
      %v516 = vld [vmem:[%s489 + $0xf0] sm:$0xff]
      %v517 = vld [vmem:[%s489 + $0xf8] sm:$0xff]
      %v518 = vld [vmem:[%s489 + $0x108] sm:$0xff]
      %v519 = vld [vmem:[%s489 + $0x110] sm:$0xff]
      %v520 = vld [vmem:[%s489 + $0x120] sm:$0xff]
      %v521 = vld [vmem:[%s489 + $0x128] sm:$0xff]
      %v522 = vld [vmem:[%s489 + $0x138] sm:$0xff]
      %v523 = vld [vmem:[%s489 + $0x140] sm:$0xff]
      %v524 = vld [vmem:[%s489 + $0x150] sm:$0xff]
      %v525 = vld [vmem:[%s489 + $0x158] sm:$0xff]
      %v526 = vld [vmem:[%s489 + $0x168] sm:$0xff]
      %v527 = vld [vmem:[%s489 + $0x170] sm:$0xff]
      %v528 = vld [vmem:[%s1] sm:$0x1]
      %v529 = vlaneseq
      %v530 = vshrl.u32 %v529, 7
      %v531 = vsub.s32 0, %v530
      %v532 = vrot.slane %v528, %v531
      %v533 = vmul.f32 %v496, %v532
      %v534 = vmul.f32 %v497, %v532
      %v535 = vmul.f32 %v498, %v532
      %v536 = vmul.f32 %v499, %v532
      %v537 = vmul.f32 %v500, %v532
      %v538 = vmul.f32 %v501, %v532
      %v539 = vmul.f32 %v502, %v532
      %v540 = vmul.f32 %v503, %v532
      %v541 = vmul.f32 %v504, %v532
      %v542 = vmul.f32 %v505, %v532
      %v543 = vmul.f32 %v506, %v532
      %v544 = vmul.f32 %v507, %v532
      %v545 = vmul.f32 %v508, %v532
      %v546 = vmul.f32 %v509, %v532
      %v547 = vmul.f32 %v510, %v532
      %v548 = vmul.f32 %v511, %v532
      %v549 = vmul.f32 %v512, %v532
      %v550 = vmul.f32 %v513, %v532
      %v551 = vmul.f32 %v514, %v532
      %v552 = vmul.f32 %v515, %v532
      %v553 = vmul.f32 %v516, %v532
      %v554 = vmul.f32 %v517, %v532
      %v555 = vmul.f32 %v518, %v532
      %v556 = vmul.f32 %v519, %v532
      %v557 = vmul.f32 %v520, %v532
      %v558 = vmul.f32 %v521, %v532
      %v559 = vmul.f32 %v522, %v532
      %v560 = vmul.f32 %v523, %v532
      %v561 = vmul.f32 %v524, %v532
      %v562 = vmul.f32 %v525, %v532
      %v563 = vmul.f32 %v526, %v532
      %v564 = vmul.f32 %v527, %v532
      %v565 = vadd.f32 %v533, 0.0
      %v566 = vadd.f32 %v534, 0.0
      %v567 = vadd.f32 %v535, 0.0
      %v568 = vadd.f32 %v536, 0.0
      %v569 = vadd.f32 %v537, 0.0
      %v570 = vadd.f32 %v538, 0.0
      %v571 = vadd.f32 %v539, 0.0
      %v572 = vadd.f32 %v540, 0.0
      %v573 = vadd.f32 %v541, 0.0
      %v574 = vadd.f32 %v542, 0.0
      %v575 = vadd.f32 %v543, 0.0
      %v576 = vadd.f32 %v544, 0.0
      %v577 = vadd.f32 %v545, 0.0
      %v578 = vadd.f32 %v546, 0.0
      %v579 = vadd.f32 %v547, 0.0
      %v580 = vadd.f32 %v548, 0.0
      %v581 = vadd.f32 %v549, 0.0
      %v582 = vadd.f32 %v550, 0.0
      %v583 = vadd.f32 %v551, 0.0
      %v584 = vadd.f32 %v552, 0.0
      %v585 = vadd.f32 %v553, 0.0
      %v586 = vadd.f32 %v554, 0.0
      %v587 = vadd.f32 %v555, 0.0
      %v588 = vadd.f32 %v556, 0.0
      %v589 = vadd.f32 %v557, 0.0
      %v590 = vadd.f32 %v558, 0.0
      %v591 = vadd.f32 %v559, 0.0
      %v592 = vadd.f32 %v560, 0.0
      %v593 = vadd.f32 %v561, 0.0
      %v594 = vadd.f32 %v562, 0.0
      %v595 = vadd.f32 %v563, 0.0
      %v596 = vadd.f32 %v564, 0.0
      %v597 = vld [vmem:[%s489 + $0x1] sm:$0xff]
      %v598 = vld [vmem:[%s489 + $0x9] sm:$0xff]
      %v599 = vld [vmem:[%s489 + $0x19] sm:$0xff]
      %v600 = vld [vmem:[%s489 + $0x21] sm:$0xff]
      %v601 = vld [vmem:[%s489 + $0x31] sm:$0xff]
      %v602 = vld [vmem:[%s489 + $0x39] sm:$0xff]
      %v603 = vld [vmem:[%s489 + $0x49] sm:$0xff]
      %v604 = vld [vmem:[%s489 + $0x51] sm:$0xff]
      %v605 = vld [vmem:[%s489 + $0x61] sm:$0xff]
      %v606 = vld [vmem:[%s489 + $0x69] sm:$0xff]
      %v607 = vld [vmem:[%s489 + $0x79] sm:$0xff]
      %v608 = vld [vmem:[%s489 + $0x81] sm:$0xff]
      %v609 = vld [vmem:[%s489 + $0x91] sm:$0xff]
      %v610 = vld [vmem:[%s489 + $0x99] sm:$0xff]
      %v611 = vld [vmem:[%s489 + $0xa9] sm:$0xff]
      %v612 = vld [vmem:[%s489 + $0xb1] sm:$0xff]
      %v613 = vld [vmem:[%s489 + $0xc1] sm:$0xff]
      %v614 = vld [vmem:[%s489 + $0xc9] sm:$0xff]
      %v615 = vld [vmem:[%s489 + $0xd9] sm:$0xff]
      %v616 = vld [vmem:[%s489 + $0xe1] sm:$0xff]
      %v617 = vld [vmem:[%s489 + $0xf1] sm:$0xff]
      %v618 = vld [vmem:[%s489 + $0xf9] sm:$0xff]
      %v619 = vld [vmem:[%s489 + $0x109] sm:$0xff]
      %v620 = vld [vmem:[%s489 + $0x111] sm:$0xff]
      %v621 = vld [vmem:[%s489 + $0x121] sm:$0xff]
      %v622 = vld [vmem:[%s489 + $0x129] sm:$0xff]
      %v623 = vld [vmem:[%s489 + $0x139] sm:$0xff]
      %v624 = vld [vmem:[%s489 + $0x141] sm:$0xff]
      %v625 = vld [vmem:[%s489 + $0x151] sm:$0xff]
      %v626 = vld [vmem:[%s489 + $0x159] sm:$0xff]
      %v627 = vld [vmem:[%s489 + $0x169] sm:$0xff]
      %v628 = vld [vmem:[%s489 + $0x171] sm:$0xff]
      %v629 = vld [vmem:[%s1 + $0x1] sm:$0x1]
      %v630 = vlaneseq
      %v631 = vshrl.u32 %v630, 7
      %v632 = vsub.s32 0, %v631
      %v633 = vrot.slane %v629, %v632
      %v634 = vmul.f32 %v597, %v633
      %v635 = vmul.f32 %v598, %v633
      %v636 = vmul.f32 %v599, %v633
      %v637 = vmul.f32 %v600, %v633
      %v638 = vmul.f32 %v601, %v633
      %v639 = vmul.f32 %v602, %v633
      %v640 = vmul.f32 %v603, %v633
      %v641 = vmul.f32 %v604, %v633
      %v642 = vmul.f32 %v605, %v633
      %v643 = vmul.f32 %v606, %v633
      %v644 = vmul.f32 %v607, %v633
      %v645 = vmul.f32 %v608, %v633
      %v646 = vmul.f32 %v609, %v633
      %v647 = vmul.f32 %v610, %v633
      %v648 = vmul.f32 %v611, %v633
      %v649 = vmul.f32 %v612, %v633
      %v650 = vmul.f32 %v613, %v633
      %v651 = vmul.f32 %v614, %v633
      %v652 = vmul.f32 %v615, %v633
      %v653 = vmul.f32 %v616, %v633
      %v654 = vmul.f32 %v617, %v633
      %v655 = vmul.f32 %v618, %v633
      %v656 = vmul.f32 %v619, %v633
      %v657 = vmul.f32 %v620, %v633
      %v658 = vmul.f32 %v621, %v633
      %v659 = vmul.f32 %v622, %v633
      %v660 = vmul.f32 %v623, %v633
      %v661 = vmul.f32 %v624, %v633
      %v662 = vmul.f32 %v625, %v633
      %v663 = vmul.f32 %v626, %v633
      %v664 = vmul.f32 %v627, %v633
      %v665 = vmul.f32 %v628, %v633
      %v666 = vadd.f32 %v565, %v634
      %v667 = vadd.f32 %v566, %v635
      %v668 = vadd.f32 %v567, %v636
      %v669 = vadd.f32 %v568, %v637
      %v670 = vadd.f32 %v569, %v638
      %v671 = vadd.f32 %v570, %v639
      %v672 = vadd.f32 %v571, %v640
      %v673 = vadd.f32 %v572, %v641
      %v674 = vadd.f32 %v573, %v642
      %v675 = vadd.f32 %v574, %v643
      %v676 = vadd.f32 %v575, %v644
      %v677 = vadd.f32 %v576, %v645
      %v678 = vadd.f32 %v577, %v646
      %v679 = vadd.f32 %v578, %v647
      %v680 = vadd.f32 %v579, %v648
      %v681 = vadd.f32 %v580, %v649
      %v682 = vadd.f32 %v581, %v650
      %v683 = vadd.f32 %v582, %v651
      %v684 = vadd.f32 %v583, %v652
      %v685 = vadd.f32 %v584, %v653
      %v686 = vadd.f32 %v585, %v654
      %v687 = vadd.f32 %v586, %v655
      %v688 = vadd.f32 %v587, %v656
      %v689 = vadd.f32 %v588, %v657
      %v690 = vadd.f32 %v589, %v658
      %v691 = vadd.f32 %v590, %v659
      %v692 = vadd.f32 %v591, %v660
      %v693 = vadd.f32 %v592, %v661
      %v694 = vadd.f32 %v593, %v662
      %v695 = vadd.f32 %v594, %v663
      %v696 = vadd.f32 %v595, %v664
      %v697 = vadd.f32 %v596, %v665
      %v698 = vld [vmem:[%s489 + $0x2] sm:$0xff]
      %v699 = vld [vmem:[%s489 + $0xa] sm:$0xff]
      %v700 = vld [vmem:[%s489 + $0x1a] sm:$0xff]
      %v701 = vld [vmem:[%s489 + $0x22] sm:$0xff]
      %v702 = vld [vmem:[%s489 + $0x32] sm:$0xff]
      %v703 = vld [vmem:[%s489 + $0x3a] sm:$0xff]
      %v704 = vld [vmem:[%s489 + $0x4a] sm:$0xff]
      %v705 = vld [vmem:[%s489 + $0x52] sm:$0xff]
      %v706 = vld [vmem:[%s489 + $0x62] sm:$0xff]
      %v707 = vld [vmem:[%s489 + $0x6a] sm:$0xff]
      %v708 = vld [vmem:[%s489 + $0x7a] sm:$0xff]
      %v709 = vld [vmem:[%s489 + $0x82] sm:$0xff]
      %v710 = vld [vmem:[%s489 + $0x92] sm:$0xff]
      %v711 = vld [vmem:[%s489 + $0x9a] sm:$0xff]
      %v712 = vld [vmem:[%s489 + $0xaa] sm:$0xff]
      %v713 = vld [vmem:[%s489 + $0xb2] sm:$0xff]
      %v714 = vld [vmem:[%s489 + $0xc2] sm:$0xff]
      %v715 = vld [vmem:[%s489 + $0xca] sm:$0xff]
      %v716 = vld [vmem:[%s489 + $0xda] sm:$0xff]
      %v717 = vld [vmem:[%s489 + $0xe2] sm:$0xff]
      %v718 = vld [vmem:[%s489 + $0xf2] sm:$0xff]
      %v719 = vld [vmem:[%s489 + $0xfa] sm:$0xff]
      %v720 = vld [vmem:[%s489 + $0x10a] sm:$0xff]
      %v721 = vld [vmem:[%s489 + $0x112] sm:$0xff]
      %v722 = vld [vmem:[%s489 + $0x122] sm:$0xff]
      %v723 = vld [vmem:[%s489 + $0x12a] sm:$0xff]
      %v724 = vld [vmem:[%s489 + $0x13a] sm:$0xff]
      %v725 = vld [vmem:[%s489 + $0x142] sm:$0xff]
      %v726 = vld [vmem:[%s489 + $0x152] sm:$0xff]
      %v727 = vld [vmem:[%s489 + $0x15a] sm:$0xff]
      %v728 = vld [vmem:[%s489 + $0x16a] sm:$0xff]
      %v729 = vld [vmem:[%s489 + $0x172] sm:$0xff]
      %v730 = vld [vmem:[%s1 + $0x2] sm:$0x1]
      %v731 = vlaneseq
      %v732 = vshrl.u32 %v731, 7
      %v733 = vsub.s32 0, %v732
      %v734 = vrot.slane %v730, %v733
      %v735 = vmul.f32 %v698, %v734
      %v736 = vmul.f32 %v699, %v734
      %v737 = vmul.f32 %v700, %v734
      %v738 = vmul.f32 %v701, %v734
      %v739 = vmul.f32 %v702, %v734
      %v740 = vmul.f32 %v703, %v734
      %v741 = vmul.f32 %v704, %v734
      %v742 = vmul.f32 %v705, %v734
      %v743 = vmul.f32 %v706, %v734
      %v744 = vmul.f32 %v707, %v734
      %v745 = vmul.f32 %v708, %v734
      %v746 = vmul.f32 %v709, %v734
      %v747 = vmul.f32 %v710, %v734
      %v748 = vmul.f32 %v711, %v734
      %v749 = vmul.f32 %v712, %v734
      %v750 = vmul.f32 %v713, %v734
      %v751 = vmul.f32 %v714, %v734
      %v752 = vmul.f32 %v715, %v734
      %v753 = vmul.f32 %v716, %v734
      %v754 = vmul.f32 %v717, %v734
      %v755 = vmul.f32 %v718, %v734
      %v756 = vmul.f32 %v719, %v734
      %v757 = vmul.f32 %v720, %v734
      %v758 = vmul.f32 %v721, %v734
      %v759 = vmul.f32 %v722, %v734
      %v760 = vmul.f32 %v723, %v734
      %v761 = vmul.f32 %v724, %v734
      %v762 = vmul.f32 %v725, %v734
      %v763 = vmul.f32 %v726, %v734
      %v764 = vmul.f32 %v727, %v734
      %v765 = vmul.f32 %v728, %v734
      %v766 = vmul.f32 %v729, %v734
      %v767 = vadd.f32 %v666, %v735
      %v768 = vadd.f32 %v667, %v736
      %v769 = vadd.f32 %v668, %v737
      %v770 = vadd.f32 %v669, %v738
      %v771 = vadd.f32 %v670, %v739
      %v772 = vadd.f32 %v671, %v740
      %v773 = vadd.f32 %v672, %v741
      %v774 = vadd.f32 %v673, %v742
      %v775 = vadd.f32 %v674, %v743
      %v776 = vadd.f32 %v675, %v744
      %v777 = vadd.f32 %v676, %v745
      %v778 = vadd.f32 %v677, %v746
      %v779 = vadd.f32 %v678, %v747
      %v780 = vadd.f32 %v679, %v748
      %v781 = vadd.f32 %v680, %v749
      %v782 = vadd.f32 %v681, %v750
      %v783 = vadd.f32 %v682, %v751
      %v784 = vadd.f32 %v683, %v752
      %v785 = vadd.f32 %v684, %v753
      %v786 = vadd.f32 %v685, %v754
      %v787 = vadd.f32 %v686, %v755
      %v788 = vadd.f32 %v687, %v756
      %v789 = vadd.f32 %v688, %v757
      %v790 = vadd.f32 %v689, %v758
      %v791 = vadd.f32 %v690, %v759
      %v792 = vadd.f32 %v691, %v760
      %v793 = vadd.f32 %v692, %v761
      %v794 = vadd.f32 %v693, %v762
      %v795 = vadd.f32 %v694, %v763
      %v796 = vadd.f32 %v695, %v764
      %v797 = vadd.f32 %v696, %v765
      %v798 = vadd.f32 %v697, %v766
      %s799 = scalar_lea.vmem %s489, 24
      %v800 = vld [vmem:[%s799] sm:$0xff]
      %v801 = vld [vmem:[%s799 + $0x8] sm:$0xff]
      %v802 = vld [vmem:[%s799 + $0x18] sm:$0xff]
      %v803 = vld [vmem:[%s799 + $0x20] sm:$0xff]
      %v804 = vld [vmem:[%s799 + $0x30] sm:$0xff]
      %v805 = vld [vmem:[%s799 + $0x38] sm:$0xff]
      %v806 = vld [vmem:[%s799 + $0x48] sm:$0xff]
      %v807 = vld [vmem:[%s799 + $0x50] sm:$0xff]
      %v808 = vld [vmem:[%s799 + $0x60] sm:$0xff]
      %v809 = vld [vmem:[%s799 + $0x68] sm:$0xff]
      %v810 = vld [vmem:[%s799 + $0x78] sm:$0xff]
      %v811 = vld [vmem:[%s799 + $0x80] sm:$0xff]
      %v812 = vld [vmem:[%s799 + $0x90] sm:$0xff]
      %v813 = vld [vmem:[%s799 + $0x98] sm:$0xff]
      %v814 = vld [vmem:[%s799 + $0xa8] sm:$0xff]
      %v815 = vld [vmem:[%s799 + $0xb0] sm:$0xff]
      %v816 = vld [vmem:[%s799 + $0xc0] sm:$0xff]
      %v817 = vld [vmem:[%s799 + $0xc8] sm:$0xff]
      %v818 = vld [vmem:[%s799 + $0xd8] sm:$0xff]
      %v819 = vld [vmem:[%s799 + $0xe0] sm:$0xff]
      %v820 = vld [vmem:[%s799 + $0xf0] sm:$0xff]
      %v821 = vld [vmem:[%s799 + $0xf8] sm:$0xff]
      %v822 = vld [vmem:[%s799 + $0x108] sm:$0xff]
      %v823 = vld [vmem:[%s799 + $0x110] sm:$0xff]
      %v824 = vld [vmem:[%s799 + $0x120] sm:$0xff]
      %v825 = vld [vmem:[%s799 + $0x128] sm:$0xff]
      %v826 = vld [vmem:[%s799 + $0x138] sm:$0xff]
      %v827 = vld [vmem:[%s799 + $0x140] sm:$0xff]
      %v828 = vld [vmem:[%s799 + $0x150] sm:$0xff]
      %v829 = vld [vmem:[%s799 + $0x158] sm:$0xff]
      %v830 = vld [vmem:[%s799 + $0x168] sm:$0xff]
      %v831 = vld [vmem:[%s799 + $0x170] sm:$0xff]
      %s832 = scalar_lea.vmem %s1, 4
      %v833 = vld [vmem:[%s832] sm:$0x1]
      %v834 = vlaneseq
      %v835 = vshrl.u32 %v834, 7
      %v836 = vsub.s32 0, %v835
      %v837 = vrot.slane %v833, %v836
      %v838 = vmul.f32 %v800, %v837
      %v839 = vmul.f32 %v801, %v837
      %v840 = vmul.f32 %v802, %v837
      %v841 = vmul.f32 %v803, %v837
      %v842 = vmul.f32 %v804, %v837
      %v843 = vmul.f32 %v805, %v837
      %v844 = vmul.f32 %v806, %v837
      %v845 = vmul.f32 %v807, %v837
      %v846 = vmul.f32 %v808, %v837
      %v847 = vmul.f32 %v809, %v837
      %v848 = vmul.f32 %v810, %v837
      %v849 = vmul.f32 %v811, %v837
      %v850 = vmul.f32 %v812, %v837
      %v851 = vmul.f32 %v813, %v837
      %v852 = vmul.f32 %v814, %v837
      %v853 = vmul.f32 %v815, %v837
      %v854 = vmul.f32 %v816, %v837
      %v855 = vmul.f32 %v817, %v837
      %v856 = vmul.f32 %v818, %v837
      %v857 = vmul.f32 %v819, %v837
      %v858 = vmul.f32 %v820, %v837
      %v859 = vmul.f32 %v821, %v837
      %v860 = vmul.f32 %v822, %v837
      %v861 = vmul.f32 %v823, %v837
      %v862 = vmul.f32 %v824, %v837
      %v863 = vmul.f32 %v825, %v837
      %v864 = vmul.f32 %v826, %v837
      %v865 = vmul.f32 %v827, %v837
      %v866 = vmul.f32 %v828, %v837
      %v867 = vmul.f32 %v829, %v837
      %v868 = vmul.f32 %v830, %v837
      %v869 = vmul.f32 %v831, %v837
      %v870 = vadd.f32 %v767, %v838
      %v871 = vadd.f32 %v768, %v839
      %v872 = vadd.f32 %v769, %v840
      %v873 = vadd.f32 %v770, %v841
      %v874 = vadd.f32 %v771, %v842
      %v875 = vadd.f32 %v772, %v843
      %v876 = vadd.f32 %v773, %v844
      %v877 = vadd.f32 %v774, %v845
      %v878 = vadd.f32 %v775, %v846
      %v879 = vadd.f32 %v776, %v847
      %v880 = vadd.f32 %v777, %v848
      %v881 = vadd.f32 %v778, %v849
      %v882 = vadd.f32 %v779, %v850
      %v883 = vadd.f32 %v780, %v851
      %v884 = vadd.f32 %v781, %v852
      %v885 = vadd.f32 %v782, %v853
      %v886 = vadd.f32 %v783, %v854
      %v887 = vadd.f32 %v784, %v855
      %v888 = vadd.f32 %v785, %v856
      %v889 = vadd.f32 %v786, %v857
      %v890 = vadd.f32 %v787, %v858
      %v891 = vadd.f32 %v788, %v859
      %v892 = vadd.f32 %v789, %v860
      %v893 = vadd.f32 %v790, %v861
      %v894 = vadd.f32 %v791, %v862
      %v895 = vadd.f32 %v792, %v863
      %v896 = vadd.f32 %v793, %v864
      %v897 = vadd.f32 %v794, %v865
      %v898 = vadd.f32 %v795, %v866
      %v899 = vadd.f32 %v796, %v867
      %v900 = vadd.f32 %v797, %v868
      %v901 = vadd.f32 %v798, %v869
      %v902 = vld [vmem:[%s799 + $0x1] sm:$0xff]
      %v903 = vld [vmem:[%s799 + $0x9] sm:$0xff]
      %v904 = vld [vmem:[%s799 + $0x19] sm:$0xff]
      %v905 = vld [vmem:[%s799 + $0x21] sm:$0xff]
      %v906 = vld [vmem:[%s799 + $0x31] sm:$0xff]
      %v907 = vld [vmem:[%s799 + $0x39] sm:$0xff]
      %v908 = vld [vmem:[%s799 + $0x49] sm:$0xff]
      %v909 = vld [vmem:[%s799 + $0x51] sm:$0xff]
      %v910 = vld [vmem:[%s799 + $0x61] sm:$0xff]
      %v911 = vld [vmem:[%s799 + $0x69] sm:$0xff]
      %v912 = vld [vmem:[%s799 + $0x79] sm:$0xff]
      %v913 = vld [vmem:[%s799 + $0x81] sm:$0xff]
      %v914 = vld [vmem:[%s799 + $0x91] sm:$0xff]
      %v915 = vld [vmem:[%s799 + $0x99] sm:$0xff]
      %v916 = vld [vmem:[%s799 + $0xa9] sm:$0xff]
      %v917 = vld [vmem:[%s799 + $0xb1] sm:$0xff]
      %v918 = vld [vmem:[%s799 + $0xc1] sm:$0xff]
      %v919 = vld [vmem:[%s799 + $0xc9] sm:$0xff]
      %v920 = vld [vmem:[%s799 + $0xd9] sm:$0xff]
      %v921 = vld [vmem:[%s799 + $0xe1] sm:$0xff]
      %v922 = vld [vmem:[%s799 + $0xf1] sm:$0xff]
      %v923 = vld [vmem:[%s799 + $0xf9] sm:$0xff]
      %v924 = vld [vmem:[%s799 + $0x109] sm:$0xff]
      %v925 = vld [vmem:[%s799 + $0x111] sm:$0xff]
      %v926 = vld [vmem:[%s799 + $0x121] sm:$0xff]
      %v927 = vld [vmem:[%s799 + $0x129] sm:$0xff]
      %v928 = vld [vmem:[%s799 + $0x139] sm:$0xff]
      %v929 = vld [vmem:[%s799 + $0x141] sm:$0xff]
      %v930 = vld [vmem:[%s799 + $0x151] sm:$0xff]
      %v931 = vld [vmem:[%s799 + $0x159] sm:$0xff]
      %v932 = vld [vmem:[%s799 + $0x169] sm:$0xff]
      %v933 = vld [vmem:[%s799 + $0x171] sm:$0xff]
      %v934 = vld [vmem:[%s832 + $0x1] sm:$0x1]
      %v935 = vlaneseq
      %v936 = vshrl.u32 %v935, 7
      %v937 = vsub.s32 0, %v936
      %v938 = vrot.slane %v934, %v937
      %v939 = vmul.f32 %v902, %v938
      %v940 = vmul.f32 %v903, %v938
      %v941 = vmul.f32 %v904, %v938
      %v942 = vmul.f32 %v905, %v938
      %v943 = vmul.f32 %v906, %v938
      %v944 = vmul.f32 %v907, %v938
      %v945 = vmul.f32 %v908, %v938
      %v946 = vmul.f32 %v909, %v938
      %v947 = vmul.f32 %v910, %v938
      %v948 = vmul.f32 %v911, %v938
      %v949 = vmul.f32 %v912, %v938
      %v950 = vmul.f32 %v913, %v938
      %v951 = vmul.f32 %v914, %v938
      %v952 = vmul.f32 %v915, %v938
      %v953 = vmul.f32 %v916, %v938
      %v954 = vmul.f32 %v917, %v938
      %v955 = vmul.f32 %v918, %v938
      %v956 = vmul.f32 %v919, %v938
      %v957 = vmul.f32 %v920, %v938
      %v958 = vmul.f32 %v921, %v938
      %v959 = vmul.f32 %v922, %v938
      %v960 = vmul.f32 %v923, %v938
      %v961 = vmul.f32 %v924, %v938
      %v962 = vmul.f32 %v925, %v938
      %v963 = vmul.f32 %v926, %v938
      %v964 = vmul.f32 %v927, %v938
      %v965 = vmul.f32 %v928, %v938
      %v966 = vmul.f32 %v929, %v938
      %v967 = vmul.f32 %v930, %v938
      %v968 = vmul.f32 %v931, %v938
      %v969 = vmul.f32 %v932, %v938
      %v970 = vmul.f32 %v933, %v938
      %v971 = vadd.f32 %v870, %v939
      %v972 = vadd.f32 %v871, %v940
      %v973 = vadd.f32 %v872, %v941
      %v974 = vadd.f32 %v873, %v942
      %v975 = vadd.f32 %v874, %v943
      %v976 = vadd.f32 %v875, %v944
      %v977 = vadd.f32 %v876, %v945
      %v978 = vadd.f32 %v877, %v946
      %v979 = vadd.f32 %v878, %v947
      %v980 = vadd.f32 %v879, %v948
      %v981 = vadd.f32 %v880, %v949
      %v982 = vadd.f32 %v881, %v950
      %v983 = vadd.f32 %v882, %v951
      %v984 = vadd.f32 %v883, %v952
      %v985 = vadd.f32 %v884, %v953
      %v986 = vadd.f32 %v885, %v954
      %v987 = vadd.f32 %v886, %v955
      %v988 = vadd.f32 %v887, %v956
      %v989 = vadd.f32 %v888, %v957
      %v990 = vadd.f32 %v889, %v958
      %v991 = vadd.f32 %v890, %v959
      %v992 = vadd.f32 %v891, %v960
      %v993 = vadd.f32 %v892, %v961
      %v994 = vadd.f32 %v893, %v962
      %v995 = vadd.f32 %v894, %v963
      %v996 = vadd.f32 %v895, %v964
      %v997 = vadd.f32 %v896, %v965
      %v998 = vadd.f32 %v897, %v966
      %v999 = vadd.f32 %v898, %v967
      %v1000 = vadd.f32 %v899, %v968
      %v1001 = vadd.f32 %v900, %v969
      %v1002 = vadd.f32 %v901, %v970
      %v1003 = vld [vmem:[%s799 + $0x2] sm:$0xff]
      %v1004 = vld [vmem:[%s799 + $0xa] sm:$0xff]
      %v1005 = vld [vmem:[%s799 + $0x1a] sm:$0xff]
      %v1006 = vld [vmem:[%s799 + $0x22] sm:$0xff]
      %v1007 = vld [vmem:[%s799 + $0x32] sm:$0xff]
      %v1008 = vld [vmem:[%s799 + $0x3a] sm:$0xff]
      %v1009 = vld [vmem:[%s799 + $0x4a] sm:$0xff]
      %v1010 = vld [vmem:[%s799 + $0x52] sm:$0xff]
      %v1011 = vld [vmem:[%s799 + $0x62] sm:$0xff]
      %v1012 = vld [vmem:[%s799 + $0x6a] sm:$0xff]
      %v1013 = vld [vmem:[%s799 + $0x7a] sm:$0xff]
      %v1014 = vld [vmem:[%s799 + $0x82] sm:$0xff]
      %v1015 = vld [vmem:[%s799 + $0x92] sm:$0xff]
      %v1016 = vld [vmem:[%s799 + $0x9a] sm:$0xff]
      %v1017 = vld [vmem:[%s799 + $0xaa] sm:$0xff]
      %v1018 = vld [vmem:[%s799 + $0xb2] sm:$0xff]
      %v1019 = vld [vmem:[%s799 + $0xc2] sm:$0xff]
      %v1020 = vld [vmem:[%s799 + $0xca] sm:$0xff]
      %v1021 = vld [vmem:[%s799 + $0xda] sm:$0xff]
      %v1022 = vld [vmem:[%s799 + $0xe2] sm:$0xff]
      %v1023 = vld [vmem:[%s799 + $0xf2] sm:$0xff]
      %v1024 = vld [vmem:[%s799 + $0xfa] sm:$0xff]
      %v1025 = vld [vmem:[%s799 + $0x10a] sm:$0xff]
      %v1026 = vld [vmem:[%s799 + $0x112] sm:$0xff]
      %v1027 = vld [vmem:[%s799 + $0x122] sm:$0xff]
      %v1028 = vld [vmem:[%s799 + $0x12a] sm:$0xff]
      %v1029 = vld [vmem:[%s799 + $0x13a] sm:$0xff]
      %v1030 = vld [vmem:[%s799 + $0x142] sm:$0xff]
      %v1031 = vld [vmem:[%s799 + $0x152] sm:$0xff]
      %v1032 = vld [vmem:[%s799 + $0x15a] sm:$0xff]
      %v1033 = vld [vmem:[%s799 + $0x16a] sm:$0xff]
      %v1034 = vld [vmem:[%s799 + $0x172] sm:$0xff]
      %v1035 = vld [vmem:[%s832 + $0x2] sm:$0x1]
      %v1036 = vlaneseq
      %v1037 = vshrl.u32 %v1036, 7
      %v1038 = vsub.s32 0, %v1037
      %v1039 = vrot.slane %v1035, %v1038
      %v1040 = vmul.f32 %v1003, %v1039
      %v1041 = vmul.f32 %v1004, %v1039
      %v1042 = vmul.f32 %v1005, %v1039
      %v1043 = vmul.f32 %v1006, %v1039
      %v1044 = vmul.f32 %v1007, %v1039
      %v1045 = vmul.f32 %v1008, %v1039
      %v1046 = vmul.f32 %v1009, %v1039
      %v1047 = vmul.f32 %v1010, %v1039
      %v1048 = vmul.f32 %v1011, %v1039
      %v1049 = vmul.f32 %v1012, %v1039
      %v1050 = vmul.f32 %v1013, %v1039
      %v1051 = vmul.f32 %v1014, %v1039
      %v1052 = vmul.f32 %v1015, %v1039
      %v1053 = vmul.f32 %v1016, %v1039
      %v1054 = vmul.f32 %v1017, %v1039
      %v1055 = vmul.f32 %v1018, %v1039
      %v1056 = vmul.f32 %v1019, %v1039
      %v1057 = vmul.f32 %v1020, %v1039
      %v1058 = vmul.f32 %v1021, %v1039
      %v1059 = vmul.f32 %v1022, %v1039
      %v1060 = vmul.f32 %v1023, %v1039
      %v1061 = vmul.f32 %v1024, %v1039
      %v1062 = vmul.f32 %v1025, %v1039
      %v1063 = vmul.f32 %v1026, %v1039
      %v1064 = vmul.f32 %v1027, %v1039
      %v1065 = vmul.f32 %v1028, %v1039
      %v1066 = vmul.f32 %v1029, %v1039
      %v1067 = vmul.f32 %v1030, %v1039
      %v1068 = vmul.f32 %v1031, %v1039
      %v1069 = vmul.f32 %v1032, %v1039
      %v1070 = vmul.f32 %v1033, %v1039
      %v1071 = vmul.f32 %v1034, %v1039
      %v1072 = vadd.f32 %v971, %v1040
      %v1073 = vadd.f32 %v972, %v1041
      %v1074 = vadd.f32 %v973, %v1042
      %v1075 = vadd.f32 %v974, %v1043
      %v1076 = vadd.f32 %v975, %v1044
      %v1077 = vadd.f32 %v976, %v1045
      %v1078 = vadd.f32 %v977, %v1046
      %v1079 = vadd.f32 %v978, %v1047
      %v1080 = vadd.f32 %v979, %v1048
      %v1081 = vadd.f32 %v980, %v1049
      %v1082 = vadd.f32 %v981, %v1050
      %v1083 = vadd.f32 %v982, %v1051
      %v1084 = vadd.f32 %v983, %v1052
      %v1085 = vadd.f32 %v984, %v1053
      %v1086 = vadd.f32 %v985, %v1054
      %v1087 = vadd.f32 %v986, %v1055
      %v1088 = vadd.f32 %v987, %v1056
      %v1089 = vadd.f32 %v988, %v1057
      %v1090 = vadd.f32 %v989, %v1058
      %v1091 = vadd.f32 %v990, %v1059
      %v1092 = vadd.f32 %v991, %v1060
      %v1093 = vadd.f32 %v992, %v1061
      %v1094 = vadd.f32 %v993, %v1062
      %v1095 = vadd.f32 %v994, %v1063
      %v1096 = vadd.f32 %v995, %v1064
      %v1097 = vadd.f32 %v996, %v1065
      %v1098 = vadd.f32 %v997, %v1066
      %v1099 = vadd.f32 %v998, %v1067
      %v1100 = vadd.f32 %v999, %v1068
      %v1101 = vadd.f32 %v1000, %v1069
      %v1102 = vadd.f32 %v1001, %v1070
      %v1103 = vadd.f32 %v1002, %v1071
      %s1104 = scalar_lea.vmem %s489, 48
      %v1105 = vld [vmem:[%s1104] sm:$0xff]
      %v1106 = vld [vmem:[%s1104 + $0x8] sm:$0xff]
      %v1107 = vld [vmem:[%s1104 + $0x18] sm:$0xff]
      %v1108 = vld [vmem:[%s1104 + $0x20] sm:$0xff]
      %v1109 = vld [vmem:[%s1104 + $0x30] sm:$0xff]
      %v1110 = vld [vmem:[%s1104 + $0x38] sm:$0xff]
      %v1111 = vld [vmem:[%s1104 + $0x48] sm:$0xff]
      %v1112 = vld [vmem:[%s1104 + $0x50] sm:$0xff]
      %v1113 = vld [vmem:[%s1104 + $0x60] sm:$0xff]
      %v1114 = vld [vmem:[%s1104 + $0x68] sm:$0xff]
      %v1115 = vld [vmem:[%s1104 + $0x78] sm:$0xff]
      %v1116 = vld [vmem:[%s1104 + $0x80] sm:$0xff]
      %v1117 = vld [vmem:[%s1104 + $0x90] sm:$0xff]
      %v1118 = vld [vmem:[%s1104 + $0x98] sm:$0xff]
      %v1119 = vld [vmem:[%s1104 + $0xa8] sm:$0xff]
      %v1120 = vld [vmem:[%s1104 + $0xb0] sm:$0xff]
      %v1121 = vld [vmem:[%s1104 + $0xc0] sm:$0xff]
      %v1122 = vld [vmem:[%s1104 + $0xc8] sm:$0xff]
      %v1123 = vld [vmem:[%s1104 + $0xd8] sm:$0xff]
      %v1124 = vld [vmem:[%s1104 + $0xe0] sm:$0xff]
      %v1125 = vld [vmem:[%s1104 + $0xf0] sm:$0xff]
      %v1126 = vld [vmem:[%s1104 + $0xf8] sm:$0xff]
      %v1127 = vld [vmem:[%s1104 + $0x108] sm:$0xff]
      %v1128 = vld [vmem:[%s1104 + $0x110] sm:$0xff]
      %v1129 = vld [vmem:[%s1104 + $0x120] sm:$0xff]
      %v1130 = vld [vmem:[%s1104 + $0x128] sm:$0xff]
      %v1131 = vld [vmem:[%s1104 + $0x138] sm:$0xff]
      %v1132 = vld [vmem:[%s1104 + $0x140] sm:$0xff]
      %v1133 = vld [vmem:[%s1104 + $0x150] sm:$0xff]
      %v1134 = vld [vmem:[%s1104 + $0x158] sm:$0xff]
      %v1135 = vld [vmem:[%s1104 + $0x168] sm:$0xff]
      %v1136 = vld [vmem:[%s1104 + $0x170] sm:$0xff]
      %s1137 = scalar_lea.vmem %s1, 8
      %v1138 = vld [vmem:[%s1137] sm:$0x1]
      %v1139 = vlaneseq
      %v1140 = vshrl.u32 %v1139, 7
      %v1141 = vsub.s32 0, %v1140
      %v1142 = vrot.slane %v1138, %v1141
      %v1143 = vmul.f32 %v1105, %v1142
      %v1144 = vmul.f32 %v1106, %v1142
      %v1145 = vmul.f32 %v1107, %v1142
      %v1146 = vmul.f32 %v1108, %v1142
      %v1147 = vmul.f32 %v1109, %v1142
      %v1148 = vmul.f32 %v1110, %v1142
      %v1149 = vmul.f32 %v1111, %v1142
      %v1150 = vmul.f32 %v1112, %v1142
      %v1151 = vmul.f32 %v1113, %v1142
      %v1152 = vmul.f32 %v1114, %v1142
      %v1153 = vmul.f32 %v1115, %v1142
      %v1154 = vmul.f32 %v1116, %v1142
      %v1155 = vmul.f32 %v1117, %v1142
      %v1156 = vmul.f32 %v1118, %v1142
      %v1157 = vmul.f32 %v1119, %v1142
      %v1158 = vmul.f32 %v1120, %v1142
      %v1159 = vmul.f32 %v1121, %v1142
      %v1160 = vmul.f32 %v1122, %v1142
      %v1161 = vmul.f32 %v1123, %v1142
      %v1162 = vmul.f32 %v1124, %v1142
      %v1163 = vmul.f32 %v1125, %v1142
      %v1164 = vmul.f32 %v1126, %v1142
      %v1165 = vmul.f32 %v1127, %v1142
      %v1166 = vmul.f32 %v1128, %v1142
      %v1167 = vmul.f32 %v1129, %v1142
      %v1168 = vmul.f32 %v1130, %v1142
      %v1169 = vmul.f32 %v1131, %v1142
      %v1170 = vmul.f32 %v1132, %v1142
      %v1171 = vmul.f32 %v1133, %v1142
      %v1172 = vmul.f32 %v1134, %v1142
      %v1173 = vmul.f32 %v1135, %v1142
      %v1174 = vmul.f32 %v1136, %v1142
      %v1175 = vadd.f32 %v1072, %v1143
      %v1176 = vadd.f32 %v1073, %v1144
      %v1177 = vadd.f32 %v1074, %v1145
      %v1178 = vadd.f32 %v1075, %v1146
      %v1179 = vadd.f32 %v1076, %v1147
      %v1180 = vadd.f32 %v1077, %v1148
      %v1181 = vadd.f32 %v1078, %v1149
      %v1182 = vadd.f32 %v1079, %v1150
      %v1183 = vadd.f32 %v1080, %v1151
      %v1184 = vadd.f32 %v1081, %v1152
      %v1185 = vadd.f32 %v1082, %v1153
      %v1186 = vadd.f32 %v1083, %v1154
      %v1187 = vadd.f32 %v1084, %v1155
      %v1188 = vadd.f32 %v1085, %v1156
      %v1189 = vadd.f32 %v1086, %v1157
      %v1190 = vadd.f32 %v1087, %v1158
      %v1191 = vadd.f32 %v1088, %v1159
      %v1192 = vadd.f32 %v1089, %v1160
      %v1193 = vadd.f32 %v1090, %v1161
      %v1194 = vadd.f32 %v1091, %v1162
      %v1195 = vadd.f32 %v1092, %v1163
      %v1196 = vadd.f32 %v1093, %v1164
      %v1197 = vadd.f32 %v1094, %v1165
      %v1198 = vadd.f32 %v1095, %v1166
      %v1199 = vadd.f32 %v1096, %v1167
      %v1200 = vadd.f32 %v1097, %v1168
      %v1201 = vadd.f32 %v1098, %v1169
      %v1202 = vadd.f32 %v1099, %v1170
      %v1203 = vadd.f32 %v1100, %v1171
      %v1204 = vadd.f32 %v1101, %v1172
      %v1205 = vadd.f32 %v1102, %v1173
      %v1206 = vadd.f32 %v1103, %v1174
      %v1207 = vld [vmem:[%s1104 + $0x1] sm:$0xff]
      %v1208 = vld [vmem:[%s1104 + $0x9] sm:$0xff]
      %v1209 = vld [vmem:[%s1104 + $0x19] sm:$0xff]
      %v1210 = vld [vmem:[%s1104 + $0x21] sm:$0xff]
      %v1211 = vld [vmem:[%s1104 + $0x31] sm:$0xff]
      %v1212 = vld [vmem:[%s1104 + $0x39] sm:$0xff]
      %v1213 = vld [vmem:[%s1104 + $0x49] sm:$0xff]
      %v1214 = vld [vmem:[%s1104 + $0x51] sm:$0xff]
      %v1215 = vld [vmem:[%s1104 + $0x61] sm:$0xff]
      %v1216 = vld [vmem:[%s1104 + $0x69] sm:$0xff]
      %v1217 = vld [vmem:[%s1104 + $0x79] sm:$0xff]
      %v1218 = vld [vmem:[%s1104 + $0x81] sm:$0xff]
      %v1219 = vld [vmem:[%s1104 + $0x91] sm:$0xff]
      %v1220 = vld [vmem:[%s1104 + $0x99] sm:$0xff]
      %v1221 = vld [vmem:[%s1104 + $0xa9] sm:$0xff]
      %v1222 = vld [vmem:[%s1104 + $0xb1] sm:$0xff]
      %v1223 = vld [vmem:[%s1104 + $0xc1] sm:$0xff]
      %v1224 = vld [vmem:[%s1104 + $0xc9] sm:$0xff]
      %v1225 = vld [vmem:[%s1104 + $0xd9] sm:$0xff]
      %v1226 = vld [vmem:[%s1104 + $0xe1] sm:$0xff]
      %v1227 = vld [vmem:[%s1104 + $0xf1] sm:$0xff]
      %v1228 = vld [vmem:[%s1104 + $0xf9] sm:$0xff]
      %v1229 = vld [vmem:[%s1104 + $0x109] sm:$0xff]
      %v1230 = vld [vmem:[%s1104 + $0x111] sm:$0xff]
      %v1231 = vld [vmem:[%s1104 + $0x121] sm:$0xff]
      %v1232 = vld [vmem:[%s1104 + $0x129] sm:$0xff]
      %v1233 = vld [vmem:[%s1104 + $0x139] sm:$0xff]
      %v1234 = vld [vmem:[%s1104 + $0x141] sm:$0xff]
      %v1235 = vld [vmem:[%s1104 + $0x151] sm:$0xff]
      %v1236 = vld [vmem:[%s1104 + $0x159] sm:$0xff]
      %v1237 = vld [vmem:[%s1104 + $0x169] sm:$0xff]
      %v1238 = vld [vmem:[%s1104 + $0x171] sm:$0xff]
      %v1239 = vld [vmem:[%s1137 + $0x1] sm:$0x1]
      %v1240 = vlaneseq
      %v1241 = vshrl.u32 %v1240, 7
      %v1242 = vsub.s32 0, %v1241
      %v1243 = vrot.slane %v1239, %v1242
      %v1244 = vmul.f32 %v1207, %v1243
      %v1245 = vmul.f32 %v1208, %v1243
      %v1246 = vmul.f32 %v1209, %v1243
      %v1247 = vmul.f32 %v1210, %v1243
      %v1248 = vmul.f32 %v1211, %v1243
      %v1249 = vmul.f32 %v1212, %v1243
      %v1250 = vmul.f32 %v1213, %v1243
      %v1251 = vmul.f32 %v1214, %v1243
      %v1252 = vmul.f32 %v1215, %v1243
      %v1253 = vmul.f32 %v1216, %v1243
      %v1254 = vmul.f32 %v1217, %v1243
      %v1255 = vmul.f32 %v1218, %v1243
      %v1256 = vmul.f32 %v1219, %v1243
      %v1257 = vmul.f32 %v1220, %v1243
      %v1258 = vmul.f32 %v1221, %v1243
      %v1259 = vmul.f32 %v1222, %v1243
      %v1260 = vmul.f32 %v1223, %v1243
      %v1261 = vmul.f32 %v1224, %v1243
      %v1262 = vmul.f32 %v1225, %v1243
      %v1263 = vmul.f32 %v1226, %v1243
      %v1264 = vmul.f32 %v1227, %v1243
      %v1265 = vmul.f32 %v1228, %v1243
      %v1266 = vmul.f32 %v1229, %v1243
      %v1267 = vmul.f32 %v1230, %v1243
      %v1268 = vmul.f32 %v1231, %v1243
      %v1269 = vmul.f32 %v1232, %v1243
      %v1270 = vmul.f32 %v1233, %v1243
      %v1271 = vmul.f32 %v1234, %v1243
      %v1272 = vmul.f32 %v1235, %v1243
      %v1273 = vmul.f32 %v1236, %v1243
      %v1274 = vmul.f32 %v1237, %v1243
      %v1275 = vmul.f32 %v1238, %v1243
      %v1276 = vadd.f32 %v1175, %v1244
      %v1277 = vadd.f32 %v1176, %v1245
      %v1278 = vadd.f32 %v1177, %v1246
      %v1279 = vadd.f32 %v1178, %v1247
      %v1280 = vadd.f32 %v1179, %v1248
      %v1281 = vadd.f32 %v1180, %v1249
      %v1282 = vadd.f32 %v1181, %v1250
      %v1283 = vadd.f32 %v1182, %v1251
      %v1284 = vadd.f32 %v1183, %v1252
      %v1285 = vadd.f32 %v1184, %v1253
      %v1286 = vadd.f32 %v1185, %v1254
      %v1287 = vadd.f32 %v1186, %v1255
      %v1288 = vadd.f32 %v1187, %v1256
      %v1289 = vadd.f32 %v1188, %v1257
      %v1290 = vadd.f32 %v1189, %v1258
      %v1291 = vadd.f32 %v1190, %v1259
      %v1292 = vadd.f32 %v1191, %v1260
      %v1293 = vadd.f32 %v1192, %v1261
      %v1294 = vadd.f32 %v1193, %v1262
      %v1295 = vadd.f32 %v1194, %v1263
      %v1296 = vadd.f32 %v1195, %v1264
      %v1297 = vadd.f32 %v1196, %v1265
      %v1298 = vadd.f32 %v1197, %v1266
      %v1299 = vadd.f32 %v1198, %v1267
      %v1300 = vadd.f32 %v1199, %v1268
      %v1301 = vadd.f32 %v1200, %v1269
      %v1302 = vadd.f32 %v1201, %v1270
      %v1303 = vadd.f32 %v1202, %v1271
      %v1304 = vadd.f32 %v1203, %v1272
      %v1305 = vadd.f32 %v1204, %v1273
      %v1306 = vadd.f32 %v1205, %v1274
      %v1307 = vadd.f32 %v1206, %v1275
      %v1308 = vld [vmem:[%s1104 + $0x2] sm:$0xff]
      %v1309 = vld [vmem:[%s1104 + $0xa] sm:$0xff]
      %v1310 = vld [vmem:[%s1104 + $0x1a] sm:$0xff]
      %v1311 = vld [vmem:[%s1104 + $0x22] sm:$0xff]
      %v1312 = vld [vmem:[%s1104 + $0x32] sm:$0xff]
      %v1313 = vld [vmem:[%s1104 + $0x3a] sm:$0xff]
      %v1314 = vld [vmem:[%s1104 + $0x4a] sm:$0xff]
      %v1315 = vld [vmem:[%s1104 + $0x52] sm:$0xff]
      %v1316 = vld [vmem:[%s1104 + $0x62] sm:$0xff]
      %v1317 = vld [vmem:[%s1104 + $0x6a] sm:$0xff]
      %v1318 = vld [vmem:[%s1104 + $0x7a] sm:$0xff]
      %v1319 = vld [vmem:[%s1104 + $0x82] sm:$0xff]
      %v1320 = vld [vmem:[%s1104 + $0x92] sm:$0xff]
      %v1321 = vld [vmem:[%s1104 + $0x9a] sm:$0xff]
      %v1322 = vld [vmem:[%s1104 + $0xaa] sm:$0xff]
      %v1323 = vld [vmem:[%s1104 + $0xb2] sm:$0xff]
      %v1324 = vld [vmem:[%s1104 + $0xc2] sm:$0xff]
      %v1325 = vld [vmem:[%s1104 + $0xca] sm:$0xff]
      %v1326 = vld [vmem:[%s1104 + $0xda] sm:$0xff]
      %v1327 = vld [vmem:[%s1104 + $0xe2] sm:$0xff]
      %v1328 = vld [vmem:[%s1104 + $0xf2] sm:$0xff]
      %v1329 = vld [vmem:[%s1104 + $0xfa] sm:$0xff]
      %v1330 = vld [vmem:[%s1104 + $0x10a] sm:$0xff]
      %v1331 = vld [vmem:[%s1104 + $0x112] sm:$0xff]
      %v1332 = vld [vmem:[%s1104 + $0x122] sm:$0xff]
      %v1333 = vld [vmem:[%s1104 + $0x12a] sm:$0xff]
      %v1334 = vld [vmem:[%s1104 + $0x13a] sm:$0xff]
      %v1335 = vld [vmem:[%s1104 + $0x142] sm:$0xff]
      %v1336 = vld [vmem:[%s1104 + $0x152] sm:$0xff]
      %v1337 = vld [vmem:[%s1104 + $0x15a] sm:$0xff]
      %v1338 = vld [vmem:[%s1104 + $0x16a] sm:$0xff]
      %v1339 = vld [vmem:[%s1104 + $0x172] sm:$0xff]
      %v1340 = vld [vmem:[%s1137 + $0x2] sm:$0x1]
      %v1341 = vlaneseq
      %v1342 = vshrl.u32 %v1341, 7
      %v1343 = vsub.s32 0, %v1342
      %v1344 = vrot.slane %v1340, %v1343
      %v1345 = vmul.f32 %v1308, %v1344
      %v1346 = vmul.f32 %v1309, %v1344
      %v1347 = vmul.f32 %v1310, %v1344
      %v1348 = vmul.f32 %v1311, %v1344
      %v1349 = vmul.f32 %v1312, %v1344
      %v1350 = vmul.f32 %v1313, %v1344
      %v1351 = vmul.f32 %v1314, %v1344
      %v1352 = vmul.f32 %v1315, %v1344
      %v1353 = vmul.f32 %v1316, %v1344
      %v1354 = vmul.f32 %v1317, %v1344
      %v1355 = vmul.f32 %v1318, %v1344
      %v1356 = vmul.f32 %v1319, %v1344
      %v1357 = vmul.f32 %v1320, %v1344
      %v1358 = vmul.f32 %v1321, %v1344
      %v1359 = vmul.f32 %v1322, %v1344
      %v1360 = vmul.f32 %v1323, %v1344
      %v1361 = vmul.f32 %v1324, %v1344
      %v1362 = vmul.f32 %v1325, %v1344
      %v1363 = vmul.f32 %v1326, %v1344
      %v1364 = vmul.f32 %v1327, %v1344
      %v1365 = vmul.f32 %v1328, %v1344
      %v1366 = vmul.f32 %v1329, %v1344
      %v1367 = vmul.f32 %v1330, %v1344
      %v1368 = vmul.f32 %v1331, %v1344
      %v1369 = vmul.f32 %v1332, %v1344
      %v1370 = vmul.f32 %v1333, %v1344
      %v1371 = vmul.f32 %v1334, %v1344
      %v1372 = vmul.f32 %v1335, %v1344
      %v1373 = vmul.f32 %v1336, %v1344
      %v1374 = vmul.f32 %v1337, %v1344
      %v1375 = vmul.f32 %v1338, %v1344
      %v1376 = vmul.f32 %v1339, %v1344
      %v1377 = vadd.f32 %v1276, %v1345
      %v1378 = vadd.f32 %v1277, %v1346
      %v1379 = vadd.f32 %v1278, %v1347
      %v1380 = vadd.f32 %v1279, %v1348
      %v1381 = vadd.f32 %v1280, %v1349
      %v1382 = vadd.f32 %v1281, %v1350
      %v1383 = vadd.f32 %v1282, %v1351
      %v1384 = vadd.f32 %v1283, %v1352
      %v1385 = vadd.f32 %v1284, %v1353
      %v1386 = vadd.f32 %v1285, %v1354
      %v1387 = vadd.f32 %v1286, %v1355
      %v1388 = vadd.f32 %v1287, %v1356
      %v1389 = vadd.f32 %v1288, %v1357
      %v1390 = vadd.f32 %v1289, %v1358
      %v1391 = vadd.f32 %v1290, %v1359
      %v1392 = vadd.f32 %v1291, %v1360
      %v1393 = vadd.f32 %v1292, %v1361
      %v1394 = vadd.f32 %v1293, %v1362
      %v1395 = vadd.f32 %v1294, %v1363
      %v1396 = vadd.f32 %v1295, %v1364
      %v1397 = vadd.f32 %v1296, %v1365
      %v1398 = vadd.f32 %v1297, %v1366
      %v1399 = vadd.f32 %v1298, %v1367
      %v1400 = vadd.f32 %v1299, %v1368
      %v1401 = vadd.f32 %v1300, %v1369
      %v1402 = vadd.f32 %v1301, %v1370
      %v1403 = vadd.f32 %v1302, %v1371
      %v1404 = vadd.f32 %v1303, %v1372
      %v1405 = vadd.f32 %v1304, %v1373
      %v1406 = vadd.f32 %v1305, %v1374
      %v1407 = vadd.f32 %v1306, %v1375
      %v1408 = vadd.f32 %v1307, %v1376
      %v1409 = vld [vmem:[%s2] sm:$0x1]
      %v1411 = vlaneseq
      %v1412 = vshrl.u32 %v1411, 7
      %v1413 = vsub.s32 0, %v1412
      %v1414 = vrot.slane %v1409, %v1413
      %v1416 = vadd.f32 %v1377, %v1414
      %v1417 = vadd.f32 %v1378, %v1414
      %v1418 = vadd.f32 %v1379, %v1414
      %v1419 = vadd.f32 %v1380, %v1414
      %v1420 = vadd.f32 %v1381, %v1414
      %v1421 = vadd.f32 %v1382, %v1414
      %v1422 = vadd.f32 %v1383, %v1414
      %v1423 = vadd.f32 %v1384, %v1414
      %v1424 = vadd.f32 %v1385, %v1414
      %v1425 = vadd.f32 %v1386, %v1414
      %v1426 = vadd.f32 %v1387, %v1414
      %v1427 = vadd.f32 %v1388, %v1414
      %v1428 = vadd.f32 %v1389, %v1414
      %v1429 = vadd.f32 %v1390, %v1414
      %v1430 = vadd.f32 %v1391, %v1414
      %v1431 = vadd.f32 %v1392, %v1414
      %v1432 = vadd.f32 %v1393, %v1414
      %v1433 = vadd.f32 %v1394, %v1414
      %v1434 = vadd.f32 %v1395, %v1414
      %v1435 = vadd.f32 %v1396, %v1414
      %v1436 = vadd.f32 %v1397, %v1414
      %v1437 = vadd.f32 %v1398, %v1414
      %v1438 = vadd.f32 %v1399, %v1414
      %v1439 = vadd.f32 %v1400, %v1414
      %v1440 = vadd.f32 %v1401, %v1414
      %v1441 = vadd.f32 %v1402, %v1414
      %v1442 = vadd.f32 %v1403, %v1414
      %v1443 = vadd.f32 %v1404, %v1414
      %v1444 = vadd.f32 %v1405, %v1414
      %v1445 = vadd.f32 %v1406, %v1414
      %v1446 = vadd.f32 %v1407, %v1414
      %v1447 = vadd.f32 %v1408, %v1414
      %v1448 = vmax.f32 %v1416, 0.0
      %v1449 = vmax.f32 %v1417, 0.0
      %v1450 = vmax.f32 %v1418, 0.0
      %v1451 = vmax.f32 %v1419, 0.0
      %v1452 = vmax.f32 %v1420, 0.0
      %v1453 = vmax.f32 %v1421, 0.0
      %v1454 = vmax.f32 %v1422, 0.0
      %v1455 = vmax.f32 %v1423, 0.0
      %v1456 = vmax.f32 %v1424, 0.0
      %v1457 = vmax.f32 %v1425, 0.0
      %v1458 = vmax.f32 %v1426, 0.0
      %v1459 = vmax.f32 %v1427, 0.0
      %v1460 = vmax.f32 %v1428, 0.0
      %v1461 = vmax.f32 %v1429, 0.0
      %v1462 = vmax.f32 %v1430, 0.0
      %v1463 = vmax.f32 %v1431, 0.0
      %v1464 = vmax.f32 %v1432, 0.0
      %v1465 = vmax.f32 %v1433, 0.0
      %v1466 = vmax.f32 %v1434, 0.0
      %v1467 = vmax.f32 %v1435, 0.0
      %v1468 = vmax.f32 %v1436, 0.0
      %v1469 = vmax.f32 %v1437, 0.0
      %v1470 = vmax.f32 %v1438, 0.0
      %v1471 = vmax.f32 %v1439, 0.0
      %v1472 = vmax.f32 %v1440, 0.0
      %v1473 = vmax.f32 %v1441, 0.0
      %v1474 = vmax.f32 %v1442, 0.0
      %v1475 = vmax.f32 %v1443, 0.0
      %v1476 = vmax.f32 %v1444, 0.0
      %v1477 = vmax.f32 %v1445, 0.0
      %v1478 = vmax.f32 %v1446, 0.0
      %v1479 = vmax.f32 %v1447, 0.0
      %v1480 = vpack.c.bf16 %v1449, %v1448
      %v1481 = vpack.c.bf16 %v1451, %v1450
      %v1482 = vpack.c.bf16 %v1453, %v1452
      %v1483 = vpack.c.bf16 %v1455, %v1454
      %v1484 = vpack.c.bf16 %v1457, %v1456
      %v1485 = vpack.c.bf16 %v1459, %v1458
      %v1486 = vpack.c.bf16 %v1461, %v1460
      %v1487 = vpack.c.bf16 %v1463, %v1462
      %v1488 = vpack.c.bf16 %v1465, %v1464
      %v1489 = vpack.c.bf16 %v1467, %v1466
      %v1490 = vpack.c.bf16 %v1469, %v1468
      %v1491 = vpack.c.bf16 %v1471, %v1470
      %v1492 = vpack.c.bf16 %v1473, %v1472
      %v1493 = vpack.c.bf16 %v1475, %v1474
      %v1494 = vpack.c.bf16 %v1477, %v1476
      %v1495 = vpack.c.bf16 %v1479, %v1478
      %v1496 = vld [vmem:[%s3] sm:$0xf]
      %v1497 = vld [vmem:[%s3 + $0x4] sm:$0xf]
      %v1498 = vld [vmem:[%s3 + $0x8] sm:$0xf]
      %v1499 = vld [vmem:[%s3 + $0xc] sm:$0xf]
      %v1504 = vunpack.c.l.b16 %v1496
      %v1505 = vunpack.c.l.b16 %v1497
      %v1506 = vunpack.c.l.b16 %v1498
      %v1507 = vunpack.c.l.b16 %v1499
      %v1508 = vpack.c.b16 %v1505, %v1504
      %v1509 = vpack.c.b16 %v1507, %v1506
      %vm1510 = vcmask 261120
      %v1512 = vsel %vm1510, %v1508, 0
      %v1515 = vsel %vm1510, %v1509, 0
      %v1518 = vsel %vm1510, %v1480, 0
      %v1521 = vsel %vm1510, %v1481, 0
      %v1524 = vsel %vm1510, %v1482, 0
      %v1527 = vsel %vm1510, %v1483, 0
      %v1530 = vsel %vm1510, %v1484, 0
      %v1533 = vsel %vm1510, %v1485, 0
      %v1536 = vsel %vm1510, %v1486, 0
      %v1539 = vsel %vm1510, %v1487, 0
      %v1542 = vsel %vm1510, %v1488, 0
      %v1545 = vsel %vm1510, %v1489, 0
      %v1548 = vsel %vm1510, %v1490, 0
      %v1551 = vsel %vm1510, %v1491, 0
      %v1554 = vsel %vm1510, %v1492, 0
      %v1557 = vsel %vm1510, %v1493, 0
      %v1560 = vsel %vm1510, %v1494, 0
      %v1563 = vsel %vm1510, %v1495, 0
      %1565 = vmatprep.subr.bf16.mxu0 0
      %1566 = vmatpush1.bf16.xpose.msra.mxu0 %v1518
      %1567 = vmatprep.subr.bf16.mxu0 0
      %1568 = vmatpush1.bf16.xpose.msra.mxu0 %v1521
      %1569 = vmatprep.subr.bf16.mxu0 0
      %1570 = vmatpush1.bf16.xpose.msra.mxu0 %v1524
      %1571 = vmatprep.subr.bf16.mxu0 0
      %1572 = vmatpush1.bf16.xpose.msra.mxu0 %v1527
      %1573 = vmatprep.subr.bf16.mxu0 0
      %1574 = vmatpush1.bf16.xpose.msra.mxu0 %v1530
      %1575 = vmatprep.subr.bf16.mxu0 0
      %1576 = vmatpush1.bf16.xpose.msra.mxu0 %v1533
      %1577 = vmatprep.subr.bf16.mxu0 0
      %1578 = vmatpush1.bf16.xpose.msra.mxu0 %v1536
      %1579 = vmatprep.subr.bf16.mxu0 0
      %1580 = vmatpush1.bf16.xpose.msra.mxu0 %v1539
      %1581 = vmatprep.subr.bf16.mxu0 0
      %1582 = vmatpush1.bf16.xpose.msra.mxu0 %v1542
      %1583 = vmatprep.subr.bf16.mxu0 0
      %1584 = vmatpush1.bf16.xpose.msra.mxu0 %v1545
      %1585 = vmatprep.subr.bf16.mxu0 0
      %1586 = vmatpush1.bf16.xpose.msra.mxu0 %v1548
      %1587 = vmatprep.subr.bf16.mxu0 0
      %1588 = vmatpush1.bf16.xpose.msra.mxu0 %v1551
      %1589 = vmatprep.subr.bf16.mxu0 0
      %1590 = vmatpush1.bf16.xpose.msra.mxu0 %v1554
      %1591 = vmatprep.subr.bf16.mxu0 0
      %1592 = vmatpush1.bf16.xpose.msra.mxu0 %v1557
      %1593 = vmatprep.subr.bf16.mxu0 0
      %1594 = vmatpush1.bf16.xpose.msra.mxu0 %v1560
      %1595 = vmatprep.subr.bf16.mxu0 0
      %1596 = vmatpush1.bf16.xpose.msra.mxu0 %v1563
      %1597 = vmatprep.mubr.bf16.mxu0 0
      %1598 = vmatmul.mubr.bf16.gmra.mrb[0].mxu0 %v1512
      %v1599 = vpop.f32.mrb[0].mxu0
      %v1600 = vadd.f32 0.0, %v1599
      %v1601 = vpop.f32.mrb[0].mxu0
      %v1602 = vadd.f32 0.0, %v1601
      %v1603 = vpop.f32.mrb[0].mxu0
      %v1604 = vadd.f32 0.0, %v1603
      %v1605 = vpop.f32.mrb[0].mxu0
      %v1606 = vadd.f32 0.0, %v1605
      %1607 = vmatprep.mubr.bf16.mxu0 0
      %1608 = vmatmul.mubr.bf16.gmra.mrb[0].mxu0 %v1515
      %v1609 = vpop.f32.mrb[0].mxu0
      %v1610 = vadd.f32 0.0, %v1609
      %v1611 = vpop.f32.mrb[0].mxu0
      %v1612 = vadd.f32 0.0, %v1611
      %v1613 = vpop.f32.mrb[0].mxu0
      %v1614 = vadd.f32 0.0, %v1613
      %v1615 = vpop.f32.mrb[0].mxu0
      %v1616 = vadd.f32 0.0, %v1615
      %1617 = vdwg.mxu0
      %v1618 = vld [vmem:[%s4] sm:$0xff]
      %vm1619 = vcmp.gt.f32.partialorder %v1618, 0.5
      %v1621 = vcombine.high %v1618, %v1618
      %v1623 = vpack.c.bf16 %v1618, %v1618
      %v1624 = vpack.c.bf16 %v1621, %v1621
      %v1625 = vadd.f32 %v1600, %v1602
      %v1626 = vadd.f32 %v1625, %v1604
      %v1627 = vadd.f32 %v1626, %v1606
      %v1628 = vadd.f32 %v1627, %v1610
      %v1629 = vadd.f32 %v1628, %v1612
      %v1630 = vadd.f32 %v1629, %v1614
      %v1631 = vadd.f32 %v1630, %v1616
      %1632 = vadd.xlane.f32.xlu0 %v1631
      %v1633 = vpop.xlane.xlu0 %1632
      %v1634 = vrot.slane %v1633, 4
      %v1635 = vadd.f32 %v1633, %v1634
      %v1636 = vrot.slane %v1635, 2
      %v1637 = vadd.f32 %v1635, %v1636
      %v1638 = vrot.slane %v1637, 1
      %v1639 = vadd.f32 %v1637, %v1638
      %s1640 = vtos %v1639
      %v1641 = vstv %s1640
      %v1642 = vrcp.pop 8192.0
      %v1643 = vmul.f32 %v1641, %v1642
      %v1644 = vmul.f32 %v1600, %v1600
      %v1645 = vmul.f32 %v1602, %v1602
      %v1646 = vmul.f32 %v1604, %v1604
      %v1647 = vmul.f32 %v1606, %v1606
      %v1648 = vmul.f32 %v1610, %v1610
      %v1649 = vmul.f32 %v1612, %v1612
      %v1650 = vmul.f32 %v1614, %v1614
      %v1651 = vmul.f32 %v1616, %v1616
      %v1652 = vadd.f32 %v1644, %v1645
      %v1653 = vadd.f32 %v1652, %v1646
      %v1654 = vadd.f32 %v1653, %v1647
      %v1655 = vadd.f32 %v1654, %v1648
      %v1656 = vadd.f32 %v1655, %v1649
      %v1657 = vadd.f32 %v1656, %v1650
      %v1658 = vadd.f32 %v1657, %v1651
      %1659 = vadd.xlane.f32.xlu0 %v1658
      %v1660 = vpop.xlane.xlu0 %1659
      %v1661 = vrot.slane %v1660, 4
      %v1662 = vadd.f32 %v1660, %v1661
      %v1663 = vrot.slane %v1662, 2
      %v1664 = vadd.f32 %v1662, %v1663
      %v1665 = vrot.slane %v1664, 1
      %v1666 = vadd.f32 %v1664, %v1665
      %s1667 = vtos %v1666
      %v1668 = vstv %s1667
      %v1669 = vmul.f32 %v1668, %v1642
      %v1670 = vsub.f32 %v1600, %v1643
      %v1671 = vsub.f32 %v1602, %v1643
      %v1672 = vsub.f32 %v1604, %v1643
      %v1673 = vsub.f32 %v1606, %v1643
      %v1674 = vsub.f32 %v1610, %v1643
      %v1675 = vsub.f32 %v1612, %v1643
      %v1676 = vsub.f32 %v1614, %v1643
      %v1677 = vsub.f32 %v1616, %v1643
      %v1678 = vmul.f32 %v1643, %v1643
      %v1679 = vsub.f32 %v1669, %v1678
      %v1680 = vadd.f32 %v1679, 1e-05
      %v1681 = vrsqrt.pop %v1680
      %v1682 = vmul.f32 %v1670, %v1681
      %v1683 = vmul.f32 %v1671, %v1681
      %v1684 = vmul.f32 %v1672, %v1681
      %v1685 = vmul.f32 %v1673, %v1681
      %v1686 = vmul.f32 %v1674, %v1681
      %v1687 = vmul.f32 %v1675, %v1681
      %v1688 = vmul.f32 %v1676, %v1681
      %v1689 = vmul.f32 %v1677, %v1681
      %v1690 = vpack.c.bf16 %v1684, %v1682
      %v1691 = vpack.c.bf16 %v1685, %v1683
      %v1692 = vpack.c.bf16 %v1688, %v1686
      %v1693 = vpack.c.bf16 %v1689, %v1687
      %v1694 = vld [vmem:[%s5] sm:$0xf]
      %v1695 = vld [vmem:[%s5 + $0x4] sm:$0xf]
      %v1696 = vld [vmem:[%s5 + $0x8] sm:$0xf]
      %v1697 = vld [vmem:[%s5 + $0xc] sm:$0xf]
      %v1698 = vld [vmem:[%s5 + $0x10] sm:$0xf]
      %v1699 = vld [vmem:[%s5 + $0x14] sm:$0xf]
      %v1700 = vld [vmem:[%s5 + $0x18] sm:$0xf]
      %v1701 = vld [vmem:[%s5 + $0x1c] sm:$0xf]
      %v1702 = vld [vmem:[%s5 + $0x20] sm:$0x1]
      %v1703 = vld [vmem:[%s6] sm:$0xff]
      %v1704 = vld [vmem:[%s6 + $0x8] sm:$0xff]
      %v1705 = vld [vmem:[%s6 + $0x10] sm:$0xff]
      %v1706 = vld [vmem:[%s6 + $0x18] sm:$0xff]
      %v1707 = vld [vmem:[%s6 + $0x20] sm:$0xff]
      %v1708 = vld [vmem:[%s6 + $0x28] sm:$0xff]
      %v1709 = vld [vmem:[%s6 + $0x30] sm:$0xff]
      %v1710 = vld [vmem:[%s6 + $0x38] sm:$0xff]
      %v1711 = vld [vmem:[%s6 + $0x40] sm:$0x1]
      %1713 = vset.pattern.permute.xlu0 0
      %1714 = vperm.xlu0 %1713, %v1703
      %v1715 = vpop.permute.xlu0 %1714
      %1718 = vset.pattern.permute.xlu0 0
      %1719 = vperm.xlu0 %1718, %v1704
      %v1720 = vpop.permute.xlu0 %1719
      %1723 = vset.pattern.permute.xlu0 0
      %1724 = vperm.xlu0 %1723, %v1705
      %v1725 = vpop.permute.xlu0 %1724
      %1728 = vset.pattern.permute.xlu0 0
      %1729 = vperm.xlu0 %1728, %v1706
      %v1730 = vpop.permute.xlu0 %1729
      %1733 = vset.pattern.permute.xlu0 0
      %1734 = vperm.xlu0 %1733, %v1707
      %v1735 = vpop.permute.xlu0 %1734
      %1738 = vset.pattern.permute.xlu0 0
      %1739 = vperm.xlu0 %1738, %v1708
      %v1740 = vpop.permute.xlu0 %1739
      %1743 = vset.pattern.permute.xlu0 0
      %1744 = vperm.xlu0 %1743, %v1709
      %v1745 = vpop.permute.xlu0 %1744
      %1748 = vset.pattern.permute.xlu0 0
      %1749 = vperm.xlu0 %1748, %v1710
      %v1750 = vpop.permute.xlu0 %1749
      %1753 = vset.pattern.permute.xlu0 0
      %1754 = vperm.xlu0 %1753, %v1711
      %v1755 = vpop.permute.xlu0 %1754
      %v1766 = vunpack.c.l.b16 %v1694
      %v1767 = vunpack.c.l.b16 %v1695
      %v1768 = vunpack.c.l.b16 %v1696
      %v1769 = vunpack.c.l.b16 %v1697
      %v1770 = vunpack.c.l.b16 %v1698
      %v1771 = vunpack.c.l.b16 %v1699
      %v1772 = vunpack.c.l.b16 %v1700
      %v1773 = vunpack.c.l.b16 %v1701
      %v1774 = vunpack.c.l.b16 %v1702
      %v1775 = vpack.c.b16 %v1767, %v1766
      %v1776 = vpack.c.b16 %v1769, %v1768
      %v1777 = vpack.c.b16 %v1771, %v1770
      %v1778 = vpack.c.b16 %v1773, %v1772
      %v1779 = vpack.c.b16 %v1774, %v1774
      %v1781 = vsel %vm1510, %v1775, 0
      %v1784 = vsel %vm1510, %v1776, 0
      %v1787 = vsel %vm1510, %v1777, 0
      %v1790 = vsel %vm1510, %v1778, 0
      %v1793 = vsel %vm1510, %v1779, 0
      %1795 = vmatprep.subr.bf16.mxu0 %v1691
      %1796 = vmatpush1.bf16.msra.mxu0 %v1690
      %1797 = vmatprep.subr.bf16.mxu0 %v1693
      %1798 = vmatpush1.bf16.msra.mxu0 %v1692
      %1799 = vmatprep.subr.bf16.mxu0 0
      %1800 = vmatpush1.bf16.msra.mxu0 0
      %1801 = vmatprep.subr.bf16.mxu0 0
      %1802 = vmatpush1.bf16.msra.mxu0 0
      %1803 = vmatprep.subr.bf16.mxu0 0
      %1804 = vmatpush1.bf16.msra.mxu0 0
      %1805 = vmatprep.subr.bf16.mxu0 0
      %1806 = vmatpush1.bf16.msra.mxu0 0
      %1807 = vmatprep.subr.bf16.mxu0 0
      %1808 = vmatpush1.bf16.msra.mxu0 0
      %1809 = vmatprep.subr.bf16.mxu0 0
      %1810 = vmatpush1.bf16.msra.mxu0 0
      %1811 = vmatprep.subr.bf16.mxu0 0
      %1812 = vmatpush1.bf16.msra.mxu0 0
      %1813 = vmatprep.subr.bf16.mxu0 0
      %1814 = vmatpush1.bf16.msra.mxu0 0
      %1815 = vmatprep.subr.bf16.mxu0 0
      %1816 = vmatpush1.bf16.msra.mxu0 0
      %1817 = vmatprep.subr.bf16.mxu0 0
      %1818 = vmatpush1.bf16.msra.mxu0 0
      %1819 = vmatprep.subr.bf16.mxu0 0
      %1820 = vmatpush1.bf16.msra.mxu0 0
      %1821 = vmatprep.subr.bf16.mxu0 0
      %1822 = vmatpush1.bf16.msra.mxu0 0
      %1823 = vmatprep.subr.bf16.mxu0 0
      %1824 = vmatpush1.bf16.msra.mxu0 0
      %1825 = vmatprep.subr.bf16.mxu0 0
      %1826 = vmatpush1.bf16.msra.mxu0 0
      %1827 = vmatprep.mubr.bf16.mxu0 0
      %1828 = vmatmul.mubr.bf16.gmra.mrb[0].mxu0 %v1781
      %v1829 = vpop.f32.mrb[0].mxu0
      %v1830 = vadd.f32 %v1715, %v1829
      %v1831 = vpop.f32.mrb[0].mxu0
      %v1832 = vadd.f32 %v1715, %v1831
      %v1833 = vpop.f32.mrb[0].mxu0
      %v1834 = vadd.f32 %v1720, %v1833
      %v1835 = vpop.f32.mrb[0].mxu0
      %v1836 = vadd.f32 %v1720, %v1835
      %1837 = vmatprep.mubr.bf16.mxu0 0
      %1838 = vmatmul.mubr.bf16.gmra.mrb[0].mxu0 %v1784
      %v1839 = vpop.f32.mrb[0].mxu0
      %v1840 = vadd.f32 %v1725, %v1839
      %v1841 = vpop.f32.mrb[0].mxu0
      %v1842 = vadd.f32 %v1725, %v1841
      %v1843 = vpop.f32.mrb[0].mxu0
      %v1844 = vadd.f32 %v1730, %v1843
      %v1845 = vpop.f32.mrb[0].mxu0
      %v1846 = vadd.f32 %v1730, %v1845
      %1847 = vmatprep.mubr.bf16.mxu0 0
      %1848 = vmatmul.mubr.bf16.gmra.mrb[0].mxu0 %v1787
      %v1849 = vpop.f32.mrb[0].mxu0
      %v1850 = vadd.f32 %v1735, %v1849
      %v1851 = vpop.f32.mrb[0].mxu0
      %v1852 = vadd.f32 %v1735, %v1851
      %v1853 = vpop.f32.mrb[0].mxu0
      %v1854 = vadd.f32 %v1740, %v1853
      %v1855 = vpop.f32.mrb[0].mxu0
      %v1856 = vadd.f32 %v1740, %v1855
      %1857 = vmatprep.mubr.bf16.mxu0 0
      %1858 = vmatmul.mubr.bf16.gmra.mrb[0].mxu0 %v1790
      %v1859 = vpop.f32.mrb[0].mxu0
      %v1860 = vadd.f32 %v1745, %v1859
      %v1861 = vpop.f32.mrb[0].mxu0
      %v1862 = vadd.f32 %v1745, %v1861
      %v1863 = vpop.f32.mrb[0].mxu0
      %v1864 = vadd.f32 %v1750, %v1863
      %v1865 = vpop.f32.mrb[0].mxu0
      %v1866 = vadd.f32 %v1750, %v1865
      %1867 = vmatprep.mubr.bf16.mxu0 0
      %1868 = vmatmul.mubr.bf16.gmra.mrb[0].mxu0 %v1793
      %v1869 = vpop.f32.mrb[0].mxu0
      %v1870 = vadd.f32 %v1755, %v1869
      %v1871 = vpop.f32.mrb[0].mxu0
      %v1872 = vadd.f32 %v1755, %v1871
      %v1873 = vpop.f32.mrb[0].mxu0
      %v1874 = vpop.f32.mrb[0].mxu0
      %1875 = vdwg.mxu0
      %v1876 = vlaneseq
      %v1877 = vshrl.u32 %v1876, 7
      %v1878 = vsub.s32 0, %v1877
      %v1879 = vrot.slane %v1870, %v1878
      %v1880 = vlaneseq
      %v1881 = vshrl.u32 %v1880, 7
      %v1882 = vsub.s32 0, %v1881
      %v1883 = vrot.slane %v1872, %v1882
      %v1886 = vcombine.low %v1879, %v1883
      %v1888 = vsel %vm1619, %v1886, -3.4028235e+38
      %v1890 = vcombine.high %v1888, %v1888
      %vm1892 = vcmask 1043456
      %v1893 = vsel %vm1892, %v1888, -inf
      %v1894 = vsel %vm1892, %v1890, -inf
      %v1895 = vmax.f32 %v1893, %v1894
      %1896 = vmax.xlane.f32.xlu0 %v1895
      %v1897 = vpop.xlane.xlu0 %1896
      %v1898 = vsub.f32 %v1879, %v1897
      %v1899 = vsub.f32 %v1883, %v1897
      %v1902 = vcombine.low %v1898, %v1899
      %v1904 = vsel %vm1619, %v1902, -3.4028235e+38
      %v1905 = vmul.f32 %v1904, 1.442695
      %v1906 = vpow.pop %v1905
      %v1908 = vcombine.high %v1906, %v1906
      %v1910 = vsel %vm1892, %v1906, 0.0
      %v1911 = vsel %vm1892, %v1908, 0.0
      %v1912 = vadd.f32 %v1910, %v1911
      %1913 = vadd.xlane.f32.xlu0 %v1912
      %v1914 = vpop.xlane.xlu0 %1913
      %v1915 = vrcp.pop %v1914
      %v1918 = vunpack.c.l.s4 839922192
      %v1919 = vunpack.c.0.s8 %v1918
      %v1920 = vlaneseq
      %v1921 = vshrl.u32 %v1920, 7
      %v1922 = vsub.s32 %v1919, %v1921
      %v1923 = vrot.slane %v1915, %v1922
      %v1925 = vmul.f32 %v1906, %v1923
      %v1927 = vcombine.high %v1925, %v1925
      %v1929 = vpack.c.bf16 %v1925, %v1925
      %v1930 = vpack.c.bf16 %v1927, %v1927
      %v1931 = vpack.c.bf16 %v1834, %v1830
      %v1932 = vpack.c.bf16 %v1836, %v1832
      %v1933 = vpack.c.bf16 %v1844, %v1840
      %v1934 = vpack.c.bf16 %v1846, %v1842
      %1935 = vmatprep.subr.bf16.mxu0 %v1930
      %1936 = vmatpush1.bf16.xpose.msra.mxu0 %v1929
      %1937 = vmatprep.subr.bf16.mxu0 0
      %1938 = vmatpush1.bf16.xpose.msra.mxu0 0
      %1939 = vmatprep.subr.bf16.mxu0 0
      %1940 = vmatpush1.bf16.xpose.msra.mxu0 0
      %1941 = vmatprep.subr.bf16.mxu0 0
      %1942 = vmatpush1.bf16.xpose.msra.mxu0 0
      %1943 = vmatprep.subr.bf16.mxu0 0
      %1944 = vmatpush1.bf16.xpose.msra.mxu0 0
      %1945 = vmatprep.subr.bf16.mxu0 0
      %1946 = vmatpush1.bf16.xpose.msra.mxu0 0
      %1947 = vmatprep.subr.bf16.mxu0 0
      %1948 = vmatpush1.bf16.xpose.msra.mxu0 0
      %1949 = vmatprep.subr.bf16.mxu0 0
      %1950 = vmatpush1.bf16.xpose.msra.mxu0 0
      %1951 = vmatprep.subr.bf16.mxu0 0
      %1952 = vmatpush1.bf16.xpose.msra.mxu0 0
      %1953 = vmatprep.subr.bf16.mxu0 0
      %1954 = vmatpush1.bf16.xpose.msra.mxu0 0
      %1955 = vmatprep.subr.bf16.mxu0 0
      %1956 = vmatpush1.bf16.xpose.msra.mxu0 0
      %1957 = vmatprep.subr.bf16.mxu0 0
      %1958 = vmatpush1.bf16.xpose.msra.mxu0 0
      %1959 = vmatprep.subr.bf16.mxu0 0
      %1960 = vmatpush1.bf16.xpose.msra.mxu0 0
      %1961 = vmatprep.subr.bf16.mxu0 0
      %1962 = vmatpush1.bf16.xpose.msra.mxu0 0
      %1963 = vmatprep.subr.bf16.mxu0 0
      %1964 = vmatpush1.bf16.xpose.msra.mxu0 0
      %1965 = vmatprep.subr.bf16.mxu0 0
      %1966 = vmatpush1.bf16.xpose.msra.mxu0 0
      %1967 = vmatprep.mubr.bf16.mxu0 %v1932
      %1968 = vmatmul.mubr.bf16.gmra.mrb[0].mxu0 %v1931
      %v1969 = vpop.f32.mrb[0].mxu0
      %v1970 = vadd.f32 0.0, %v1969
      %v1971 = vpop.f32.mrb[0].mxu0
      %v1972 = vpop.f32.mrb[0].mxu0
      %v1973 = vadd.f32 0.0, %v1972
      %v1974 = vpop.f32.mrb[0].mxu0
      %1975 = vmatprep.mubr.bf16.mxu0 %v1934
      %1976 = vmatmul.mubr.bf16.gmra.mrb[0].mxu0 %v1933
      %v1977 = vpop.f32.mrb[0].mxu0
      %v1978 = vadd.f32 0.0, %v1977
      %v1979 = vpop.f32.mrb[0].mxu0
      %v1980 = vpop.f32.mrb[0].mxu0
      %v1981 = vadd.f32 0.0, %v1980
      %v1982 = vpop.f32.mrb[0].mxu0
      %1983 = vdwg.mxu0
      %v1984 = vpack.c.bf16 %v1973, %v1970
      %v1985 = vpack.c.bf16 %v1981, %v1978
      %vm1986 = vcmask 31744
      %v1988 = vsel %vm1986, %v1984, 0
      %v1991 = vsel %vm1986, %v1985, 0
      %vm1993 = vcmask 1041408
      %v1995 = vsel %vm1993, %v1623, 0
      %v1998 = vsel %vm1993, %v1624, 0
      %2000 = vmatprep.subr.bf16.mxu0 %v1998
      %2001 = vmatpush1.bf16.msra.mxu0 %v1995
      %2002 = vmatprep.subr.bf16.mxu0 0
      %2003 = vmatpush1.bf16.msra.mxu0 0
      %2004 = vmatprep.subr.bf16.mxu0 0
      %2005 = vmatpush1.bf16.msra.mxu0 0
      %2006 = vmatprep.subr.bf16.mxu0 0
      %2007 = vmatpush1.bf16.msra.mxu0 0
      %2008 = vmatprep.subr.bf16.mxu0 0
      %2009 = vmatpush1.bf16.msra.mxu0 0
      %2010 = vmatprep.subr.bf16.mxu0 0
      %2011 = vmatpush1.bf16.msra.mxu0 0
      %2012 = vmatprep.subr.bf16.mxu0 0
      %2013 = vmatpush1.bf16.msra.mxu0 0
      %2014 = vmatprep.subr.bf16.mxu0 0
      %2015 = vmatpush1.bf16.msra.mxu0 0
      %2016 = vmatprep.subr.bf16.mxu0 0
      %2017 = vmatpush1.bf16.msra.mxu0 0
      %2018 = vmatprep.subr.bf16.mxu0 0
      %2019 = vmatpush1.bf16.msra.mxu0 0
      %2020 = vmatprep.subr.bf16.mxu0 0
      %2021 = vmatpush1.bf16.msra.mxu0 0
      %2022 = vmatprep.subr.bf16.mxu0 0
      %2023 = vmatpush1.bf16.msra.mxu0 0
      %2024 = vmatprep.subr.bf16.mxu0 0
      %2025 = vmatpush1.bf16.msra.mxu0 0
      %2026 = vmatprep.subr.bf16.mxu0 0
      %2027 = vmatpush1.bf16.msra.mxu0 0
      %2028 = vmatprep.subr.bf16.mxu0 0
      %2029 = vmatpush1.bf16.msra.mxu0 0
      %2030 = vmatprep.subr.bf16.mxu0 0
      %2031 = vmatpush1.bf16.msra.mxu0 0
      %2032 = vmatprep.mubr.bf16.mxu0 0
      %2033 = vmatmul.mubr.bf16.gmra.mrb[0].mxu0 %v1988
      %v2034 = vpop.f32.mrb[0].mxu0
      %v2035 = vadd.f32 0.0, %v2034
      %v2036 = vpop.f32.mrb[0].mxu0
      %v2037 = vadd.f32 0.0, %v2036
      %v2038 = vpop.f32.mrb[0].mxu0
      %v2039 = vadd.f32 0.0, %v2038
      %v2040 = vpop.f32.mrb[0].mxu0
      %v2041 = vadd.f32 0.0, %v2040
      %2042 = vmatprep.mubr.bf16.mxu0 0
      %2043 = vmatmul.mubr.bf16.gmra.mrb[0].mxu0 %v1991
      %v2044 = vpop.f32.mrb[0].mxu0
      %v2045 = vadd.f32 0.0, %v2044
      %v2046 = vpop.f32.mrb[0].mxu0
      %v2047 = vadd.f32 0.0, %v2046
      %v2048 = vpop.f32.mrb[0].mxu0
      %v2049 = vadd.f32 0.0, %v2048
      %v2050 = vpop.f32.mrb[0].mxu0
      %v2051 = vadd.f32 0.0, %v2050
      %2052 = vdwg.mxu0
      %v2053 = vmax.f32 %v1850, 0.0
      %v2054 = vmax.f32 %v1852, 0.0
      %v2055 = vmax.f32 %v1854, 0.0
      %v2056 = vmax.f32 %v1856, 0.0
      %v2057 = vmax.f32 %v1860, 0.0
      %v2058 = vmax.f32 %v1862, 0.0
      %v2059 = vmax.f32 %v1864, 0.0
      %v2060 = vmax.f32 %v1866, 0.0
      %v2061 = vmul.f32 %v2053, %v2035
      %v2062 = vmul.f32 %v2054, %v2037
      %v2063 = vmul.f32 %v2055, %v2039
      %v2064 = vmul.f32 %v2056, %v2041
      %v2065 = vmul.f32 %v2057, %v2045
      %v2066 = vmul.f32 %v2058, %v2047
      %v2067 = vmul.f32 %v2059, %v2049
      %v2068 = vmul.f32 %v2060, %v2051
      %v2069 = vpack.c.bf16 %v2063, %v2061
      %v2070 = vpack.c.bf16 %v2064, %v2062
      %v2071 = vpack.c.bf16 %v2067, %v2065
      %v2072 = vpack.c.bf16 %v2068, %v2066
      %v2073 = vld [vmem:[%s7] sm:$0xf]
      %v2074 = vld [vmem:[%s7 + $0x4] sm:$0xf]
      %v2075 = vld [vmem:[%s7 + $0x8] sm:$0xf]
      %v2076 = vld [vmem:[%s7 + $0xc] sm:$0xf]
      %v2081 = vunpack.c.l.b16 %v2073
      %v2082 = vunpack.c.l.b16 %v2074
      %v2083 = vunpack.c.l.b16 %v2075
      %v2084 = vunpack.c.l.b16 %v2076
      %v2085 = vpack.c.b16 %v2082, %v2081
      %v2086 = vpack.c.b16 %v2084, %v2083
      %v2088 = vsel %vm1510, %v2085, 0
      %v2091 = vsel %vm1510, %v2086, 0
      %2093 = vmatprep.subr.bf16.mxu0 %v2070
      %2094 = vmatpush1.bf16.msra.mxu0 %v2069
      %2095 = vmatprep.subr.bf16.mxu0 %v2072
      %2096 = vmatpush1.bf16.msra.mxu0 %v2071
      %2097 = vmatprep.subr.bf16.mxu0 0
      %2098 = vmatpush1.bf16.msra.mxu0 0
      %2099 = vmatprep.subr.bf16.mxu0 0
      %2100 = vmatpush1.bf16.msra.mxu0 0
      %2101 = vmatprep.subr.bf16.mxu0 0
      %2102 = vmatpush1.bf16.msra.mxu0 0
      %2103 = vmatprep.subr.bf16.mxu0 0
      %2104 = vmatpush1.bf16.msra.mxu0 0
      %2105 = vmatprep.subr.bf16.mxu0 0
      %2106 = vmatpush1.bf16.msra.mxu0 0
      %2107 = vmatprep.subr.bf16.mxu0 0
      %2108 = vmatpush1.bf16.msra.mxu0 0
      %2109 = vmatprep.subr.bf16.mxu0 0
      %2110 = vmatpush1.bf16.msra.mxu0 0
      %2111 = vmatprep.subr.bf16.mxu0 0
      %2112 = vmatpush1.bf16.msra.mxu0 0
      %2113 = vmatprep.subr.bf16.mxu0 0
      %2114 = vmatpush1.bf16.msra.mxu0 0
      %2115 = vmatprep.subr.bf16.mxu0 0
      %2116 = vmatpush1.bf16.msra.mxu0 0
      %2117 = vmatprep.subr.bf16.mxu0 0
      %2118 = vmatpush1.bf16.msra.mxu0 0
      %2119 = vmatprep.subr.bf16.mxu0 0
      %2120 = vmatpush1.bf16.msra.mxu0 0
      %2121 = vmatprep.subr.bf16.mxu0 0
      %2122 = vmatpush1.bf16.msra.mxu0 0
      %2123 = vmatprep.subr.bf16.mxu0 0
      %2124 = vmatpush1.bf16.msra.mxu0 0
      %2125 = vmatprep.mubr.bf16.mxu0 0
      %2126 = vmatmul.mubr.bf16.gmra.mrb[0].mxu0 %v2088
      %v2127 = vpop.f32.mrb[0].mxu0
      %v2128 = vadd.f32 0.0, %v2127
      %v2129 = vpop.f32.mrb[0].mxu0
      %v2130 = vadd.f32 0.0, %v2129
      %v2131 = vpop.f32.mrb[0].mxu0
      %v2132 = vadd.f32 0.0, %v2131
      %v2133 = vpop.f32.mrb[0].mxu0
      %v2134 = vadd.f32 0.0, %v2133
      %2135 = vmatprep.mubr.bf16.mxu0 0
      %2136 = vmatmul.mubr.bf16.gmra.mrb[0].mxu0 %v2091
      %v2137 = vpop.f32.mrb[0].mxu0
      %v2138 = vadd.f32 0.0, %v2137
      %v2139 = vpop.f32.mrb[0].mxu0
      %v2140 = vadd.f32 0.0, %v2139
      %v2141 = vpop.f32.mrb[0].mxu0
      %v2142 = vadd.f32 0.0, %v2141
      %v2143 = vpop.f32.mrb[0].mxu0
      %v2144 = vadd.f32 0.0, %v2143
      %2145 = vdwg.mxu0
      %v2146 = vadd.f32 %v1600, %v2128
      %v2147 = vadd.f32 %v1602, %v2130
      %v2148 = vadd.f32 %v1604, %v2132
      %v2149 = vadd.f32 %v1606, %v2134
      %v2150 = vadd.f32 %v1610, %v2138
      %v2151 = vadd.f32 %v1612, %v2140
      %v2152 = vadd.f32 %v1614, %v2142
      %v2153 = vadd.f32 %v1616, %v2144
      %v2154 = vld [vmem:[%s8] sm:$0xff]
      %v2155 = vld [vmem:[%s8 + $0x8] sm:$0xff]
      %v2156 = vld [vmem:[%s8 + $0x10] sm:$0xff]
      %v2157 = vld [vmem:[%s8 + $0x18] sm:$0xff]
      %2159 = vset.pattern.permute.xlu0 0
      %2160 = vperm.xlu0 %2159, %v2154
      %v2161 = vpop.permute.xlu0 %2160
      %2164 = vset.pattern.permute.xlu0 0
      %2165 = vperm.xlu0 %2164, %v2155
      %v2166 = vpop.permute.xlu0 %2165
      %2169 = vset.pattern.permute.xlu0 0
      %2170 = vperm.xlu0 %2169, %v2156
      %v2171 = vpop.permute.xlu0 %2170
      %2174 = vset.pattern.permute.xlu0 0
      %2175 = vperm.xlu0 %2174, %v2157
      %v2176 = vpop.permute.xlu0 %2175
      %v2178 = vadd.f32 %v2146, %v2161
      %v2179 = vadd.f32 %v2147, %v2161
      %v2180 = vadd.f32 %v2148, %v2166
      %v2181 = vadd.f32 %v2149, %v2166
      %v2182 = vadd.f32 %v2150, %v2171
      %v2183 = vadd.f32 %v2151, %v2171
      %v2184 = vadd.f32 %v2152, %v2176
      %v2185 = vadd.f32 %v2153, %v2176
      %v2186 = vadd.f32 %v2178, %v2179
      %v2187 = vadd.f32 %v2186, %v2180
      %v2188 = vadd.f32 %v2187, %v2181
      %v2189 = vadd.f32 %v2188, %v2182
      %v2190 = vadd.f32 %v2189, %v2183
      %v2191 = vadd.f32 %v2190, %v2184
      %v2192 = vadd.f32 %v2191, %v2185
      %2193 = vadd.xlane.f32.xlu0 %v2192
      %v2194 = vpop.xlane.xlu0 %2193
      %v2195 = vrot.slane %v2194, 4
      %v2196 = vadd.f32 %v2194, %v2195
      %v2197 = vrot.slane %v2196, 2
      %v2198 = vadd.f32 %v2196, %v2197
      %v2199 = vrot.slane %v2198, 1
      %v2200 = vadd.f32 %v2198, %v2199
      %s2201 = vtos %v2200
      %v2202 = vstv %s2201
      %v2203 = vmul.f32 %v2202, %v1642
      %v2204 = vmul.f32 %v2178, %v2178
      %v2205 = vmul.f32 %v2179, %v2179
      %v2206 = vmul.f32 %v2180, %v2180
      %v2207 = vmul.f32 %v2181, %v2181
      %v2208 = vmul.f32 %v2182, %v2182
      %v2209 = vmul.f32 %v2183, %v2183
      %v2210 = vmul.f32 %v2184, %v2184
      %v2211 = vmul.f32 %v2185, %v2185
      %v2212 = vadd.f32 %v2204, %v2205
      %v2213 = vadd.f32 %v2212, %v2206
      %v2214 = vadd.f32 %v2213, %v2207
      %v2215 = vadd.f32 %v2214, %v2208
      %v2216 = vadd.f32 %v2215, %v2209
      %v2217 = vadd.f32 %v2216, %v2210
      %v2218 = vadd.f32 %v2217, %v2211
      %2219 = vadd.xlane.f32.xlu0 %v2218
      %v2220 = vpop.xlane.xlu0 %2219
      %v2221 = vrot.slane %v2220, 4
      %v2222 = vadd.f32 %v2220, %v2221
      %v2223 = vrot.slane %v2222, 2
      %v2224 = vadd.f32 %v2222, %v2223
      %v2225 = vrot.slane %v2224, 1
      %v2226 = vadd.f32 %v2224, %v2225
      %s2227 = vtos %v2226
      %v2228 = vstv %s2227
      %v2229 = vmul.f32 %v2228, %v1642
      %v2230 = vsub.f32 %v2178, %v2203
      %v2231 = vsub.f32 %v2179, %v2203
      %v2232 = vsub.f32 %v2180, %v2203
      %v2233 = vsub.f32 %v2181, %v2203
      %v2234 = vsub.f32 %v2182, %v2203
      %v2235 = vsub.f32 %v2183, %v2203
      %v2236 = vsub.f32 %v2184, %v2203
      %v2237 = vsub.f32 %v2185, %v2203
      %v2238 = vmul.f32 %v2203, %v2203
      %v2239 = vsub.f32 %v2229, %v2238
      %v2240 = vadd.f32 %v2239, 1e-05
      %v2241 = vrsqrt.pop %v2240
      %v2242 = vmul.f32 %v2230, %v2241
      %v2243 = vmul.f32 %v2231, %v2241
      %v2244 = vmul.f32 %v2232, %v2241
      %v2245 = vmul.f32 %v2233, %v2241
      %v2246 = vmul.f32 %v2234, %v2241
      %v2247 = vmul.f32 %v2235, %v2241
      %v2248 = vmul.f32 %v2236, %v2241
      %v2249 = vmul.f32 %v2237, %v2241
      %v2250 = vpack.c.bf16 %v2244, %v2242
      %v2251 = vpack.c.bf16 %v2245, %v2243
      %v2252 = vpack.c.bf16 %v2248, %v2246
      %v2253 = vpack.c.bf16 %v2249, %v2247
      %v2254 = vld [vmem:[%s9] sm:$0xf]
      %v2255 = vld [vmem:[%s9 + $0x4] sm:$0xf]
      %v2256 = vld [vmem:[%s9 + $0x8] sm:$0xf]
      %v2257 = vld [vmem:[%s9 + $0xc] sm:$0xf]
      %v2258 = vld [vmem:[%s9 + $0x10] sm:$0xf]
      %v2259 = vld [vmem:[%s9 + $0x14] sm:$0xf]
      %v2260 = vld [vmem:[%s9 + $0x18] sm:$0xf]
      %v2261 = vld [vmem:[%s9 + $0x1c] sm:$0xf]
      %v2262 = vld [vmem:[%s10] sm:$0xff]
      %v2263 = vld [vmem:[%s10 + $0x8] sm:$0xff]
      %v2264 = vld [vmem:[%s10 + $0x10] sm:$0xff]
      %v2265 = vld [vmem:[%s10 + $0x18] sm:$0xff]
      %v2266 = vld [vmem:[%s10 + $0x20] sm:$0xff]
      %v2267 = vld [vmem:[%s10 + $0x28] sm:$0xff]
      %v2268 = vld [vmem:[%s10 + $0x30] sm:$0xff]
      %v2269 = vld [vmem:[%s10 + $0x38] sm:$0xff]
      %2271 = vset.pattern.permute.xlu0 0
      %2272 = vperm.xlu0 %2271, %v2262
      %v2273 = vpop.permute.xlu0 %2272
      %2276 = vset.pattern.permute.xlu0 0
      %2277 = vperm.xlu0 %2276, %v2263
      %v2278 = vpop.permute.xlu0 %2277
      %2281 = vset.pattern.permute.xlu0 0
      %2282 = vperm.xlu0 %2281, %v2264
      %v2283 = vpop.permute.xlu0 %2282
      %2286 = vset.pattern.permute.xlu0 0
      %2287 = vperm.xlu0 %2286, %v2265
      %v2288 = vpop.permute.xlu0 %2287
      %2291 = vset.pattern.permute.xlu0 0
      %2292 = vperm.xlu0 %2291, %v2266
      %v2293 = vpop.permute.xlu0 %2292
      %2296 = vset.pattern.permute.xlu0 0
      %2297 = vperm.xlu0 %2296, %v2267
      %v2298 = vpop.permute.xlu0 %2297
      %2301 = vset.pattern.permute.xlu0 0
      %2302 = vperm.xlu0 %2301, %v2268
      %v2303 = vpop.permute.xlu0 %2302
      %2306 = vset.pattern.permute.xlu0 0
      %2307 = vperm.xlu0 %2306, %v2269
      %v2308 = vpop.permute.xlu0 %2307
      %v2318 = vunpack.c.l.b16 %v2254
      %v2319 = vunpack.c.l.b16 %v2255
      %v2320 = vunpack.c.l.b16 %v2256
      %v2321 = vunpack.c.l.b16 %v2257
      %v2322 = vunpack.c.l.b16 %v2258
      %v2323 = vunpack.c.l.b16 %v2259
      %v2324 = vunpack.c.l.b16 %v2260
      %v2325 = vunpack.c.l.b16 %v2261
      %v2326 = vpack.c.b16 %v2319, %v2318
      %v2327 = vpack.c.b16 %v2321, %v2320
      %v2328 = vpack.c.b16 %v2323, %v2322
      %v2329 = vpack.c.b16 %v2325, %v2324
      %v2331 = vsel %vm1510, %v2326, 0
      %v2334 = vsel %vm1510, %v2327, 0
      %v2337 = vsel %vm1510, %v2328, 0
      %v2340 = vsel %vm1510, %v2329, 0
      %2342 = vmatprep.subr.bf16.mxu0 %v2251
      %2343 = vmatpush1.bf16.msra.mxu0 %v2250
      %2344 = vmatprep.subr.bf16.mxu0 %v2253
      %2345 = vmatpush1.bf16.msra.mxu0 %v2252
      %2346 = vmatprep.subr.bf16.mxu0 0
      %2347 = vmatpush1.bf16.msra.mxu0 0
      %2348 = vmatprep.subr.bf16.mxu0 0
      %2349 = vmatpush1.bf16.msra.mxu0 0
      %2350 = vmatprep.subr.bf16.mxu0 0
      %2351 = vmatpush1.bf16.msra.mxu0 0
      %2352 = vmatprep.subr.bf16.mxu0 0
      %2353 = vmatpush1.bf16.msra.mxu0 0
      %2354 = vmatprep.subr.bf16.mxu0 0
      %2355 = vmatpush1.bf16.msra.mxu0 0
      %2356 = vmatprep.subr.bf16.mxu0 0
      %2357 = vmatpush1.bf16.msra.mxu0 0
      %2358 = vmatprep.subr.bf16.mxu0 0
      %2359 = vmatpush1.bf16.msra.mxu0 0
      %2360 = vmatprep.subr.bf16.mxu0 0
      %2361 = vmatpush1.bf16.msra.mxu0 0
      %2362 = vmatprep.subr.bf16.mxu0 0
      %2363 = vmatpush1.bf16.msra.mxu0 0
      %2364 = vmatprep.subr.bf16.mxu0 0
      %2365 = vmatpush1.bf16.msra.mxu0 0
      %2366 = vmatprep.subr.bf16.mxu0 0
      %2367 = vmatpush1.bf16.msra.mxu0 0
      %2368 = vmatprep.subr.bf16.mxu0 0
      %2369 = vmatpush1.bf16.msra.mxu0 0
      %2370 = vmatprep.subr.bf16.mxu0 0
      %2371 = vmatpush1.bf16.msra.mxu0 0
      %2372 = vmatprep.subr.bf16.mxu0 0
      %2373 = vmatpush1.bf16.msra.mxu0 0
      %2374 = vmatprep.mubr.bf16.mxu0 0
      %2375 = vmatmul.mubr.bf16.gmra.mrb[0].mxu0 %v2331
      %v2376 = vpop.f32.mrb[0].mxu0
      %v2377 = vadd.f32 %v2273, %v2376
      %v2378 = vpop.f32.mrb[0].mxu0
      %v2379 = vadd.f32 %v2273, %v2378
      %v2380 = vpop.f32.mrb[0].mxu0
      %v2381 = vadd.f32 %v2278, %v2380
      %v2382 = vpop.f32.mrb[0].mxu0
      %v2383 = vadd.f32 %v2278, %v2382
      %2384 = vmatprep.mubr.bf16.mxu0 0
      %2385 = vmatmul.mubr.bf16.gmra.mrb[0].mxu0 %v2334
      %v2386 = vpop.f32.mrb[0].mxu0
      %v2387 = vadd.f32 %v2283, %v2386
      %v2388 = vpop.f32.mrb[0].mxu0
      %v2389 = vadd.f32 %v2283, %v2388
      %v2390 = vpop.f32.mrb[0].mxu0
      %v2391 = vadd.f32 %v2288, %v2390
      %v2392 = vpop.f32.mrb[0].mxu0
      %v2393 = vadd.f32 %v2288, %v2392
      %2394 = vmatprep.mubr.bf16.mxu0 0
      %2395 = vmatmul.mubr.bf16.gmra.mrb[0].mxu0 %v2337
      %v2396 = vpop.f32.mrb[0].mxu0
      %v2397 = vadd.f32 %v2293, %v2396
      %v2398 = vpop.f32.mrb[0].mxu0
      %v2399 = vadd.f32 %v2293, %v2398
      %v2400 = vpop.f32.mrb[0].mxu0
      %v2401 = vadd.f32 %v2298, %v2400
      %v2402 = vpop.f32.mrb[0].mxu0
      %v2403 = vadd.f32 %v2298, %v2402
      %2404 = vmatprep.mubr.bf16.mxu0 0
      %2405 = vmatmul.mubr.bf16.gmra.mrb[0].mxu0 %v2340
      %v2406 = vpop.f32.mrb[0].mxu0
      %v2407 = vadd.f32 %v2303, %v2406
      %v2408 = vpop.f32.mrb[0].mxu0
      %v2409 = vadd.f32 %v2303, %v2408
      %v2410 = vpop.f32.mrb[0].mxu0
      %v2411 = vadd.f32 %v2308, %v2410
      %v2412 = vpop.f32.mrb[0].mxu0
      %v2413 = vadd.f32 %v2308, %v2412
      %2414 = vdwg.mxu0
      %v2415 = vmul.f32 %v2377, 0.5
      %v2416 = vmul.f32 %v2379, 0.5
      %v2417 = vmul.f32 %v2381, 0.5
      %v2418 = vmul.f32 %v2383, 0.5
      %v2419 = vmul.f32 %v2387, 0.5
      %v2420 = vmul.f32 %v2389, 0.5
      %v2421 = vmul.f32 %v2391, 0.5
      %v2422 = vmul.f32 %v2393, 0.5
      %v2423 = vmul.f32 %v2397, 0.5
      %v2424 = vmul.f32 %v2399, 0.5
      %v2425 = vmul.f32 %v2401, 0.5
      %v2426 = vmul.f32 %v2403, 0.5
      %v2427 = vmul.f32 %v2407, 0.5
      %v2428 = vmul.f32 %v2409, 0.5
      %v2429 = vmul.f32 %v2411, 0.5
      %v2430 = vmul.f32 %v2413, 0.5
      %v2431 = vtanh.pop %v2415
      %v2432 = vtanh.pop %v2416
      %v2433 = vtanh.pop %v2417
      %v2434 = vtanh.pop %v2418
      %v2435 = vtanh.pop %v2419
      %v2436 = vtanh.pop %v2420
      %v2437 = vtanh.pop %v2421
      %v2438 = vtanh.pop %v2422
      %v2439 = vtanh.pop %v2423
      %v2440 = vtanh.pop %v2424
      %v2441 = vtanh.pop %v2425
      %v2442 = vtanh.pop %v2426
      %v2443 = vtanh.pop %v2427
      %v2444 = vtanh.pop %v2428
      %v2445 = vtanh.pop %v2429
      %v2446 = vtanh.pop %v2430
      %v2447 = vmul.f32 %v2431, 0.5
      %v2448 = vmul.f32 %v2432, 0.5
      %v2449 = vmul.f32 %v2433, 0.5
      %v2450 = vmul.f32 %v2434, 0.5
      %v2451 = vmul.f32 %v2435, 0.5
      %v2452 = vmul.f32 %v2436, 0.5
      %v2453 = vmul.f32 %v2437, 0.5
      %v2454 = vmul.f32 %v2438, 0.5
      %v2455 = vmul.f32 %v2439, 0.5
      %v2456 = vmul.f32 %v2440, 0.5
      %v2457 = vmul.f32 %v2441, 0.5
      %v2458 = vmul.f32 %v2442, 0.5
      %v2459 = vmul.f32 %v2443, 0.5
      %v2460 = vmul.f32 %v2444, 0.5
      %v2461 = vmul.f32 %v2445, 0.5
      %v2462 = vmul.f32 %v2446, 0.5
      %v2463 = vadd.f32 %v2447, 0.5
      %v2464 = vadd.f32 %v2448, 0.5
      %v2465 = vadd.f32 %v2449, 0.5
      %v2466 = vadd.f32 %v2450, 0.5
      %v2467 = vadd.f32 %v2451, 0.5
      %v2468 = vadd.f32 %v2452, 0.5
      %v2469 = vadd.f32 %v2453, 0.5
      %v2470 = vadd.f32 %v2454, 0.5
      %v2471 = vadd.f32 %v2455, 0.5
      %v2472 = vadd.f32 %v2456, 0.5
      %v2473 = vadd.f32 %v2457, 0.5
      %v2474 = vadd.f32 %v2458, 0.5
      %v2475 = vadd.f32 %v2459, 0.5
      %v2476 = vadd.f32 %v2460, 0.5
      %v2477 = vadd.f32 %v2461, 0.5
      %v2478 = vadd.f32 %v2462, 0.5
      %v2479 = vmul.f32 %v2377, %v2463
      %v2480 = vmul.f32 %v2379, %v2464
      %v2481 = vmul.f32 %v2381, %v2465
      %v2482 = vmul.f32 %v2383, %v2466
      %v2483 = vmul.f32 %v2387, %v2467
      %v2484 = vmul.f32 %v2389, %v2468
      %v2485 = vmul.f32 %v2391, %v2469
      %v2486 = vmul.f32 %v2393, %v2470
      %v2487 = vmul.f32 %v2397, %v2471
      %v2488 = vmul.f32 %v2399, %v2472
      %v2489 = vmul.f32 %v2401, %v2473
      %v2490 = vmul.f32 %v2403, %v2474
      %v2491 = vmul.f32 %v2407, %v2475
      %v2492 = vmul.f32 %v2409, %v2476
      %v2493 = vmul.f32 %v2411, %v2477
      %v2494 = vmul.f32 %v2413, %v2478
      %v2495 = vld [vmem:[%s11] sm:$0xf]
      %v2496 = vld [vmem:[%s11 + $0x4] sm:$0xf]
      %v2497 = vld [vmem:[%s11 + $0x8] sm:$0xf]
      %v2498 = vld [vmem:[%s11 + $0xc] sm:$0xf]
      %v2499 = vpack.c.bf16 %v2481, %v2479
      %v2500 = vpack.c.bf16 %v2482, %v2480
      %v2501 = vpack.c.bf16 %v2485, %v2483
      %v2502 = vpack.c.bf16 %v2486, %v2484
      %v2503 = vpack.c.bf16 %v2489, %v2487
      %v2504 = vpack.c.bf16 %v2490, %v2488
      %v2505 = vpack.c.bf16 %v2493, %v2491
      %v2506 = vpack.c.bf16 %v2494, %v2492
      %v2511 = vunpack.c.l.b16 %v2495
      %v2512 = vunpack.c.l.b16 %v2496
      %v2513 = vunpack.c.l.b16 %v2497
      %v2514 = vunpack.c.l.b16 %v2498
      %v2515 = vpack.c.b16 %v2512, %v2511
      %v2516 = vpack.c.b16 %v2514, %v2513
      %vm2517 = vcmask 523264
      %v2519 = vsel %vm2517, %v2515, 0
      %v2522 = vsel %vm2517, %v2516, 0
      %2524 = vmatprep.subr.bf16.mxu0 %v2500
      %2525 = vmatpush1.bf16.msra.mxu0 %v2499
      %2526 = vmatprep.subr.bf16.mxu0 %v2502
      %2527 = vmatpush1.bf16.msra.mxu0 %v2501
      %2528 = vmatprep.subr.bf16.mxu0 %v2504
      %2529 = vmatpush1.bf16.msra.mxu0 %v2503
      %2530 = vmatprep.subr.bf16.mxu0 %v2506
      %2531 = vmatpush1.bf16.msra.mxu0 %v2505
      %2532 = vmatprep.subr.bf16.mxu0 0
      %2533 = vmatpush1.bf16.msra.mxu0 0
      %2534 = vmatprep.subr.bf16.mxu0 0
      %2535 = vmatpush1.bf16.msra.mxu0 0
      %2536 = vmatprep.subr.bf16.mxu0 0
      %2537 = vmatpush1.bf16.msra.mxu0 0
      %2538 = vmatprep.subr.bf16.mxu0 0
      %2539 = vmatpush1.bf16.msra.mxu0 0
      %2540 = vmatprep.subr.bf16.mxu0 0
      %2541 = vmatpush1.bf16.msra.mxu0 0
      %2542 = vmatprep.subr.bf16.mxu0 0
      %2543 = vmatpush1.bf16.msra.mxu0 0
      %2544 = vmatprep.subr.bf16.mxu0 0
      %2545 = vmatpush1.bf16.msra.mxu0 0
      %2546 = vmatprep.subr.bf16.mxu0 0
      %2547 = vmatpush1.bf16.msra.mxu0 0
      %2548 = vmatprep.subr.bf16.mxu0 0
      %2549 = vmatpush1.bf16.msra.mxu0 0
      %2550 = vmatprep.subr.bf16.mxu0 0
      %2551 = vmatpush1.bf16.msra.mxu0 0
      %2552 = vmatprep.subr.bf16.mxu0 0
      %2553 = vmatpush1.bf16.msra.mxu0 0
      %2554 = vmatprep.subr.bf16.mxu0 0
      %2555 = vmatpush1.bf16.msra.mxu0 0
      %2556 = vmatprep.mubr.bf16.mxu0 0
      %2557 = vmatmul.mubr.bf16.gmra.mrb[0].mxu0 %v2519
      %v2558 = vpop.f32.mrb[0].mxu0
      %v2559 = vadd.f32 0.0, %v2558
      %v2560 = vpop.f32.mrb[0].mxu0
      %v2561 = vadd.f32 0.0, %v2560
      %v2562 = vpop.f32.mrb[0].mxu0
      %v2563 = vadd.f32 0.0, %v2562
      %v2564 = vpop.f32.mrb[0].mxu0
      %v2565 = vadd.f32 0.0, %v2564
      %2566 = vmatprep.mubr.bf16.mxu0 0
      %2567 = vmatmul.mubr.bf16.gmra.mrb[0].mxu0 %v2522
      %v2568 = vpop.f32.mrb[0].mxu0
      %v2569 = vadd.f32 0.0, %v2568
      %v2570 = vpop.f32.mrb[0].mxu0
      %v2571 = vadd.f32 0.0, %v2570
      %v2572 = vpop.f32.mrb[0].mxu0
      %v2573 = vadd.f32 0.0, %v2572
      %v2574 = vpop.f32.mrb[0].mxu0
      %v2575 = vadd.f32 0.0, %v2574
      %2576 = vdwg.mxu0
      %v2577 = vadd.f32 %v2178, %v2559
      %v2578 = vadd.f32 %v2179, %v2561
      %v2579 = vadd.f32 %v2180, %v2563
      %v2580 = vadd.f32 %v2181, %v2565
      %v2581 = vadd.f32 %v2182, %v2569
      %v2582 = vadd.f32 %v2183, %v2571
      %v2583 = vadd.f32 %v2184, %v2573
      %v2584 = vadd.f32 %v2185, %v2575
      %v2585 = vld [vmem:[%s12] sm:$0xff]
      %v2586 = vld [vmem:[%s12 + $0x8] sm:$0xff]
      %v2587 = vld [vmem:[%s12 + $0x10] sm:$0xff]
      %v2588 = vld [vmem:[%s12 + $0x18] sm:$0xff]
      %2590 = vset.pattern.permute.xlu0 0
      %2591 = vperm.xlu0 %2590, %v2585
      %v2592 = vpop.permute.xlu0 %2591
      %2595 = vset.pattern.permute.xlu0 0
      %2596 = vperm.xlu0 %2595, %v2586
      %v2597 = vpop.permute.xlu0 %2596
      %2600 = vset.pattern.permute.xlu0 0
      %2601 = vperm.xlu0 %2600, %v2587
      %v2602 = vpop.permute.xlu0 %2601
      %2605 = vset.pattern.permute.xlu0 0
      %2606 = vperm.xlu0 %2605, %v2588
      %v2607 = vpop.permute.xlu0 %2606
      %v2609 = vadd.f32 %v2577, %v2592
      %v2610 = vadd.f32 %v2578, %v2592
      %v2611 = vadd.f32 %v2579, %v2597
      %v2612 = vadd.f32 %v2580, %v2597
      %v2613 = vadd.f32 %v2581, %v2602
      %v2614 = vadd.f32 %v2582, %v2602
      %v2615 = vadd.f32 %v2583, %v2607
      %v2616 = vadd.f32 %v2584, %v2607
      %v2617 = vadd.f32 %v2609, %v2610
      %v2618 = vadd.f32 %v2617, %v2611
      %v2619 = vadd.f32 %v2618, %v2612
      %v2620 = vadd.f32 %v2619, %v2613
      %v2621 = vadd.f32 %v2620, %v2614
      %v2622 = vadd.f32 %v2621, %v2615
      %v2623 = vadd.f32 %v2622, %v2616
      %2624 = vadd.xlane.f32.xlu0 %v2623
      %v2625 = vpop.xlane.xlu0 %2624
      %v2626 = vrot.slane %v2625, 4
      %v2627 = vadd.f32 %v2625, %v2626
      %v2628 = vrot.slane %v2627, 2
      %v2629 = vadd.f32 %v2627, %v2628
      %v2630 = vrot.slane %v2629, 1
      %v2631 = vadd.f32 %v2629, %v2630
      %s2632 = vtos %v2631
      %v2633 = vstv %s2632
      %v2634 = vmul.f32 %v2633, %v1642
      %v2635 = vmul.f32 %v2609, %v2609
      %v2636 = vmul.f32 %v2610, %v2610
      %v2637 = vmul.f32 %v2611, %v2611
      %v2638 = vmul.f32 %v2612, %v2612
      %v2639 = vmul.f32 %v2613, %v2613
      %v2640 = vmul.f32 %v2614, %v2614
      %v2641 = vmul.f32 %v2615, %v2615
      %v2642 = vmul.f32 %v2616, %v2616
      %v2643 = vadd.f32 %v2635, %v2636
      %v2644 = vadd.f32 %v2643, %v2637
      %v2645 = vadd.f32 %v2644, %v2638
      %v2646 = vadd.f32 %v2645, %v2639
      %v2647 = vadd.f32 %v2646, %v2640
      %v2648 = vadd.f32 %v2647, %v2641
      %v2649 = vadd.f32 %v2648, %v2642
      %2650 = vadd.xlane.f32.xlu0 %v2649
      %v2651 = vpop.xlane.xlu0 %2650
      %v2652 = vrot.slane %v2651, 4
      %v2653 = vadd.f32 %v2651, %v2652
      %v2654 = vrot.slane %v2653, 2
      %v2655 = vadd.f32 %v2653, %v2654
      %v2656 = vrot.slane %v2655, 1
      %v2657 = vadd.f32 %v2655, %v2656
      %s2658 = vtos %v2657
      %v2659 = vstv %s2658
      %v2660 = vmul.f32 %v2659, %v1642
      %v2661 = vsub.f32 %v2609, %v2634
      %v2662 = vsub.f32 %v2610, %v2634
      %v2663 = vsub.f32 %v2611, %v2634
      %v2664 = vsub.f32 %v2612, %v2634
      %v2665 = vsub.f32 %v2613, %v2634
      %v2666 = vsub.f32 %v2614, %v2634
      %v2667 = vsub.f32 %v2615, %v2634
      %v2668 = vsub.f32 %v2616, %v2634
      %v2669 = vmul.f32 %v2634, %v2634
      %v2670 = vsub.f32 %v2660, %v2669
      %v2671 = vadd.f32 %v2670, 1e-05
      %v2672 = vrsqrt.pop %v2671
      %v2673 = vmul.f32 %v2661, %v2672
      %v2674 = vmul.f32 %v2662, %v2672
      %v2675 = vmul.f32 %v2663, %v2672
      %v2676 = vmul.f32 %v2664, %v2672
      %v2677 = vmul.f32 %v2665, %v2672
      %v2678 = vmul.f32 %v2666, %v2672
      %v2679 = vmul.f32 %v2667, %v2672
      %v2680 = vmul.f32 %v2668, %v2672
      %v2681 = vpack.c.bf16 %v2675, %v2673
      %v2682 = vpack.c.bf16 %v2676, %v2674
      %v2683 = vpack.c.bf16 %v2679, %v2677
      %v2684 = vpack.c.bf16 %v2680, %v2678
      %s2685 = scalar_lea.vmem %s5, 36
      %v2686 = vld [vmem:[%s2685] sm:$0xf]
      %v2687 = vld [vmem:[%s2685 + $0x4] sm:$0xf]
      %v2688 = vld [vmem:[%s2685 + $0x8] sm:$0xf]
      %v2689 = vld [vmem:[%s2685 + $0xc] sm:$0xf]
      %v2690 = vld [vmem:[%s2685 + $0x10] sm:$0xf]
      %v2691 = vld [vmem:[%s2685 + $0x14] sm:$0xf]
      %v2692 = vld [vmem:[%s2685 + $0x18] sm:$0xf]
      %v2693 = vld [vmem:[%s2685 + $0x1c] sm:$0xf]
      %v2694 = vld [vmem:[%s2685 + $0x20] sm:$0x1]
      %s2695 = scalar_lea.vmem %s6, 72
      %v2696 = vld [vmem:[%s2695] sm:$0xff]
      %v2697 = vld [vmem:[%s2695 + $0x8] sm:$0xff]
      %v2698 = vld [vmem:[%s2695 + $0x10] sm:$0xff]
      %v2699 = vld [vmem:[%s2695 + $0x18] sm:$0xff]
      %v2700 = vld [vmem:[%s2695 + $0x20] sm:$0xff]
      %v2701 = vld [vmem:[%s2695 + $0x28] sm:$0xff]
      %v2702 = vld [vmem:[%s2695 + $0x30] sm:$0xff]
      %v2703 = vld [vmem:[%s2695 + $0x38] sm:$0xff]
      %v2704 = vld [vmem:[%s2695 + $0x40] sm:$0x1]
      %2706 = vset.pattern.permute.xlu0 0
      %2707 = vperm.xlu0 %2706, %v2696
      %v2708 = vpop.permute.xlu0 %2707
      %2711 = vset.pattern.permute.xlu0 0
      %2712 = vperm.xlu0 %2711, %v2697
      %v2713 = vpop.permute.xlu0 %2712
      %2716 = vset.pattern.permute.xlu0 0
      %2717 = vperm.xlu0 %2716, %v2698
      %v2718 = vpop.permute.xlu0 %2717
      %2721 = vset.pattern.permute.xlu0 0
      %2722 = vperm.xlu0 %2721, %v2699
      %v2723 = vpop.permute.xlu0 %2722
      %2726 = vset.pattern.permute.xlu0 0
      %2727 = vperm.xlu0 %2726, %v2700
      %v2728 = vpop.permute.xlu0 %2727
      %2731 = vset.pattern.permute.xlu0 0
      %2732 = vperm.xlu0 %2731, %v2701
      %v2733 = vpop.permute.xlu0 %2732
      %2736 = vset.pattern.permute.xlu0 0
      %2737 = vperm.xlu0 %2736, %v2702
      %v2738 = vpop.permute.xlu0 %2737
      %2741 = vset.pattern.permute.xlu0 0
      %2742 = vperm.xlu0 %2741, %v2703
      %v2743 = vpop.permute.xlu0 %2742
      %2746 = vset.pattern.permute.xlu0 0
      %2747 = vperm.xlu0 %2746, %v2704
      %v2748 = vpop.permute.xlu0 %2747
      %v2759 = vunpack.c.l.b16 %v2686
      %v2760 = vunpack.c.l.b16 %v2687
      %v2761 = vunpack.c.l.b16 %v2688
      %v2762 = vunpack.c.l.b16 %v2689
      %v2763 = vunpack.c.l.b16 %v2690
      %v2764 = vunpack.c.l.b16 %v2691
      %v2765 = vunpack.c.l.b16 %v2692
      %v2766 = vunpack.c.l.b16 %v2693
      %v2767 = vunpack.c.l.b16 %v2694
      %v2768 = vpack.c.b16 %v2760, %v2759
      %v2769 = vpack.c.b16 %v2762, %v2761
      %v2770 = vpack.c.b16 %v2764, %v2763
      %v2771 = vpack.c.b16 %v2766, %v2765
      %v2772 = vpack.c.b16 %v2767, %v2767
      %v2774 = vsel %vm1510, %v2768, 0
      %v2777 = vsel %vm1510, %v2769, 0
      %v2780 = vsel %vm1510, %v2770, 0
      %v2783 = vsel %vm1510, %v2771, 0
      %v2786 = vsel %vm1510, %v2772, 0
      %2788 = vmatprep.subr.bf16.mxu0 %v2682
      %2789 = vmatpush1.bf16.msra.mxu0 %v2681
      %2790 = vmatprep.subr.bf16.mxu0 %v2684
      %2791 = vmatpush1.bf16.msra.mxu0 %v2683
      %2792 = vmatprep.subr.bf16.mxu0 0
      %2793 = vmatpush1.bf16.msra.mxu0 0
      %2794 = vmatprep.subr.bf16.mxu0 0
      %2795 = vmatpush1.bf16.msra.mxu0 0
      %2796 = vmatprep.subr.bf16.mxu0 0
      %2797 = vmatpush1.bf16.msra.mxu0 0
      %2798 = vmatprep.subr.bf16.mxu0 0
      %2799 = vmatpush1.bf16.msra.mxu0 0
      %2800 = vmatprep.subr.bf16.mxu0 0
      %2801 = vmatpush1.bf16.msra.mxu0 0
      %2802 = vmatprep.subr.bf16.mxu0 0
      %2803 = vmatpush1.bf16.msra.mxu0 0
      %2804 = vmatprep.subr.bf16.mxu0 0
      %2805 = vmatpush1.bf16.msra.mxu0 0
      %2806 = vmatprep.subr.bf16.mxu0 0
      %2807 = vmatpush1.bf16.msra.mxu0 0
      %2808 = vmatprep.subr.bf16.mxu0 0
      %2809 = vmatpush1.bf16.msra.mxu0 0
      %2810 = vmatprep.subr.bf16.mxu0 0
      %2811 = vmatpush1.bf16.msra.mxu0 0
      %2812 = vmatprep.subr.bf16.mxu0 0
      %2813 = vmatpush1.bf16.msra.mxu0 0
      %2814 = vmatprep.subr.bf16.mxu0 0
      %2815 = vmatpush1.bf16.msra.mxu0 0
      %2816 = vmatprep.subr.bf16.mxu0 0
      %2817 = vmatpush1.bf16.msra.mxu0 0
      %2818 = vmatprep.subr.bf16.mxu0 0
      %2819 = vmatpush1.bf16.msra.mxu0 0
      %2820 = vmatprep.mubr.bf16.mxu0 0
      %2821 = vmatmul.mubr.bf16.gmra.mrb[0].mxu0 %v2774
      %v2822 = vpop.f32.mrb[0].mxu0
      %v2823 = vadd.f32 %v2708, %v2822
      %v2824 = vpop.f32.mrb[0].mxu0
      %v2825 = vadd.f32 %v2708, %v2824
      %v2826 = vpop.f32.mrb[0].mxu0
      %v2827 = vadd.f32 %v2713, %v2826
      %v2828 = vpop.f32.mrb[0].mxu0
      %v2829 = vadd.f32 %v2713, %v2828
      %2830 = vmatprep.mubr.bf16.mxu0 0
      %2831 = vmatmul.mubr.bf16.gmra.mrb[0].mxu0 %v2777
      %v2832 = vpop.f32.mrb[0].mxu0
      %v2833 = vadd.f32 %v2718, %v2832
      %v2834 = vpop.f32.mrb[0].mxu0
      %v2835 = vadd.f32 %v2718, %v2834
      %v2836 = vpop.f32.mrb[0].mxu0
      %v2837 = vadd.f32 %v2723, %v2836
      %v2838 = vpop.f32.mrb[0].mxu0
      %v2839 = vadd.f32 %v2723, %v2838
      %2840 = vmatprep.mubr.bf16.mxu0 0
      %2841 = vmatmul.mubr.bf16.gmra.mrb[0].mxu0 %v2780
      %v2842 = vpop.f32.mrb[0].mxu0
      %v2843 = vadd.f32 %v2728, %v2842
      %v2844 = vpop.f32.mrb[0].mxu0
      %v2845 = vadd.f32 %v2728, %v2844
      %v2846 = vpop.f32.mrb[0].mxu0
      %v2847 = vadd.f32 %v2733, %v2846
      %v2848 = vpop.f32.mrb[0].mxu0
      %v2849 = vadd.f32 %v2733, %v2848
      %2850 = vmatprep.mubr.bf16.mxu0 0
      %2851 = vmatmul.mubr.bf16.gmra.mrb[0].mxu0 %v2783
      %v2852 = vpop.f32.mrb[0].mxu0
      %v2853 = vadd.f32 %v2738, %v2852
      %v2854 = vpop.f32.mrb[0].mxu0
      %v2855 = vadd.f32 %v2738, %v2854
      %v2856 = vpop.f32.mrb[0].mxu0
      %v2857 = vadd.f32 %v2743, %v2856
      %v2858 = vpop.f32.mrb[0].mxu0
      %v2859 = vadd.f32 %v2743, %v2858
      %2860 = vmatprep.mubr.bf16.mxu0 0
      %2861 = vmatmul.mubr.bf16.gmra.mrb[0].mxu0 %v2786
      %v2862 = vpop.f32.mrb[0].mxu0
      %v2863 = vadd.f32 %v2748, %v2862
      %v2864 = vpop.f32.mrb[0].mxu0
      %v2865 = vadd.f32 %v2748, %v2864
      %v2866 = vpop.f32.mrb[0].mxu0
      %v2867 = vpop.f32.mrb[0].mxu0
      %2868 = vdwg.mxu0
      %v2869 = vlaneseq
      %v2870 = vshrl.u32 %v2869, 7
      %v2871 = vsub.s32 0, %v2870
      %v2872 = vrot.slane %v2863, %v2871
      %v2873 = vlaneseq
      %v2874 = vshrl.u32 %v2873, 7
      %v2875 = vsub.s32 0, %v2874
      %v2876 = vrot.slane %v2865, %v2875
      %v2879 = vcombine.low %v2872, %v2876
      %v2881 = vsel %vm1619, %v2879, -3.4028235e+38
      %v2883 = vcombine.high %v2881, %v2881
      %v2885 = vsel %vm1892, %v2881, -inf
      %v2886 = vsel %vm1892, %v2883, -inf
      %v2887 = vmax.f32 %v2885, %v2886
      %2888 = vmax.xlane.f32.xlu0 %v2887
      %v2889 = vpop.xlane.xlu0 %2888
      %v2890 = vsub.f32 %v2872, %v2889
      %v2891 = vsub.f32 %v2876, %v2889
      %v2894 = vcombine.low %v2890, %v2891
      %v2896 = vsel %vm1619, %v2894, -3.4028235e+38
      %v2897 = vmul.f32 %v2896, 1.442695
      %v2898 = vpow.pop %v2897
      %v2900 = vcombine.high %v2898, %v2898
      %v2902 = vsel %vm1892, %v2898, 0.0
      %v2903 = vsel %vm1892, %v2900, 0.0
      %v2904 = vadd.f32 %v2902, %v2903
      %2905 = vadd.xlane.f32.xlu0 %v2904
      %v2906 = vpop.xlane.xlu0 %2905
      %v2907 = vrcp.pop %v2906
      %v2910 = vunpack.c.l.s4 839922192
      %v2911 = vunpack.c.0.s8 %v2910
      %v2912 = vlaneseq
      %v2913 = vshrl.u32 %v2912, 7
      %v2914 = vsub.s32 %v2911, %v2913
      %v2915 = vrot.slane %v2907, %v2914
      %v2917 = vmul.f32 %v2898, %v2915
      %v2919 = vcombine.high %v2917, %v2917
      %v2921 = vpack.c.bf16 %v2917, %v2917
      %v2922 = vpack.c.bf16 %v2919, %v2919
      %v2923 = vpack.c.bf16 %v2827, %v2823
      %v2924 = vpack.c.bf16 %v2829, %v2825
      %v2925 = vpack.c.bf16 %v2837, %v2833
      %v2926 = vpack.c.bf16 %v2839, %v2835
      %2927 = vmatprep.subr.bf16.mxu0 %v2922
      %2928 = vmatpush1.bf16.xpose.msra.mxu0 %v2921
      %2929 = vmatprep.subr.bf16.mxu0 0
      %2930 = vmatpush1.bf16.xpose.msra.mxu0 0
      %2931 = vmatprep.subr.bf16.mxu0 0
      %2932 = vmatpush1.bf16.xpose.msra.mxu0 0
      %2933 = vmatprep.subr.bf16.mxu0 0
      %2934 = vmatpush1.bf16.xpose.msra.mxu0 0
      %2935 = vmatprep.subr.bf16.mxu0 0
      %2936 = vmatpush1.bf16.xpose.msra.mxu0 0
      %2937 = vmatprep.subr.bf16.mxu0 0
      %2938 = vmatpush1.bf16.xpose.msra.mxu0 0
      %2939 = vmatprep.subr.bf16.mxu0 0
      %2940 = vmatpush1.bf16.xpose.msra.mxu0 0
      %2941 = vmatprep.subr.bf16.mxu0 0
      %2942 = vmatpush1.bf16.xpose.msra.mxu0 0
      %2943 = vmatprep.subr.bf16.mxu0 0
      %2944 = vmatpush1.bf16.xpose.msra.mxu0 0
      %2945 = vmatprep.subr.bf16.mxu0 0
      %2946 = vmatpush1.bf16.xpose.msra.mxu0 0
      %2947 = vmatprep.subr.bf16.mxu0 0
      %2948 = vmatpush1.bf16.xpose.msra.mxu0 0
      %2949 = vmatprep.subr.bf16.mxu0 0
      %2950 = vmatpush1.bf16.xpose.msra.mxu0 0
      %2951 = vmatprep.subr.bf16.mxu0 0
      %2952 = vmatpush1.bf16.xpose.msra.mxu0 0
      %2953 = vmatprep.subr.bf16.mxu0 0
      %2954 = vmatpush1.bf16.xpose.msra.mxu0 0
      %2955 = vmatprep.subr.bf16.mxu0 0
      %2956 = vmatpush1.bf16.xpose.msra.mxu0 0
      %2957 = vmatprep.subr.bf16.mxu0 0
      %2958 = vmatpush1.bf16.xpose.msra.mxu0 0
      %2959 = vmatprep.mubr.bf16.mxu0 %v2924
      %2960 = vmatmul.mubr.bf16.gmra.mrb[0].mxu0 %v2923
      %v2961 = vpop.f32.mrb[0].mxu0
      %v2962 = vadd.f32 0.0, %v2961
      %v2963 = vpop.f32.mrb[0].mxu0
      %v2964 = vpop.f32.mrb[0].mxu0
      %v2965 = vadd.f32 0.0, %v2964
      %v2966 = vpop.f32.mrb[0].mxu0
      %2967 = vmatprep.mubr.bf16.mxu0 %v2926
      %2968 = vmatmul.mubr.bf16.gmra.mrb[0].mxu0 %v2925
      %v2969 = vpop.f32.mrb[0].mxu0
      %v2970 = vadd.f32 0.0, %v2969
      %v2971 = vpop.f32.mrb[0].mxu0
      %v2972 = vpop.f32.mrb[0].mxu0
      %v2973 = vadd.f32 0.0, %v2972
      %v2974 = vpop.f32.mrb[0].mxu0
      %2975 = vdwg.mxu0
      %v2976 = vpack.c.bf16 %v2965, %v2962
      %v2977 = vpack.c.bf16 %v2973, %v2970
      %v2979 = vsel %vm1986, %v2976, 0
      %v2982 = vsel %vm1986, %v2977, 0
      %2984 = vmatprep.subr.bf16.mxu0 %v1998
      %2985 = vmatpush1.bf16.msra.mxu0 %v1995
      %2986 = vmatprep.subr.bf16.mxu0 0
      %2987 = vmatpush1.bf16.msra.mxu0 0
      %2988 = vmatprep.subr.bf16.mxu0 0
      %2989 = vmatpush1.bf16.msra.mxu0 0
      %2990 = vmatprep.subr.bf16.mxu0 0
      %2991 = vmatpush1.bf16.msra.mxu0 0
      %2992 = vmatprep.subr.bf16.mxu0 0
      %2993 = vmatpush1.bf16.msra.mxu0 0
      %2994 = vmatprep.subr.bf16.mxu0 0
      %2995 = vmatpush1.bf16.msra.mxu0 0
      %2996 = vmatprep.subr.bf16.mxu0 0
      %2997 = vmatpush1.bf16.msra.mxu0 0
      %2998 = vmatprep.subr.bf16.mxu0 0
      %2999 = vmatpush1.bf16.msra.mxu0 0
      %3000 = vmatprep.subr.bf16.mxu0 0
      %3001 = vmatpush1.bf16.msra.mxu0 0
      %3002 = vmatprep.subr.bf16.mxu0 0
      %3003 = vmatpush1.bf16.msra.mxu0 0
      %3004 = vmatprep.subr.bf16.mxu0 0
      %3005 = vmatpush1.bf16.msra.mxu0 0
      %3006 = vmatprep.subr.bf16.mxu0 0
      %3007 = vmatpush1.bf16.msra.mxu0 0
      %3008 = vmatprep.subr.bf16.mxu0 0
      %3009 = vmatpush1.bf16.msra.mxu0 0
      %3010 = vmatprep.subr.bf16.mxu0 0
      %3011 = vmatpush1.bf16.msra.mxu0 0
      %3012 = vmatprep.subr.bf16.mxu0 0
      %3013 = vmatpush1.bf16.msra.mxu0 0
      %3014 = vmatprep.subr.bf16.mxu0 0
      %3015 = vmatpush1.bf16.msra.mxu0 0
      %3016 = vmatprep.mubr.bf16.mxu0 0
      %3017 = vmatmul.mubr.bf16.gmra.mrb[0].mxu0 %v2979
      %v3018 = vpop.f32.mrb[0].mxu0
      %v3019 = vadd.f32 0.0, %v3018
      %v3020 = vpop.f32.mrb[0].mxu0
      %v3021 = vadd.f32 0.0, %v3020
      %v3022 = vpop.f32.mrb[0].mxu0
      %v3023 = vadd.f32 0.0, %v3022
      %v3024 = vpop.f32.mrb[0].mxu0
      %v3025 = vadd.f32 0.0, %v3024
      %3026 = vmatprep.mubr.bf16.mxu0 0
      %3027 = vmatmul.mubr.bf16.gmra.mrb[0].mxu0 %v2982
      %v3028 = vpop.f32.mrb[0].mxu0
      %v3029 = vadd.f32 0.0, %v3028
      %v3030 = vpop.f32.mrb[0].mxu0
      %v3031 = vadd.f32 0.0, %v3030
      %v3032 = vpop.f32.mrb[0].mxu0
      %v3033 = vadd.f32 0.0, %v3032
      %v3034 = vpop.f32.mrb[0].mxu0
      %v3035 = vadd.f32 0.0, %v3034
      %3036 = vdwg.mxu0
      %v3037 = vmax.f32 %v2843, 0.0
      %v3038 = vmax.f32 %v2845, 0.0
      %v3039 = vmax.f32 %v2847, 0.0
      %v3040 = vmax.f32 %v2849, 0.0
      %v3041 = vmax.f32 %v2853, 0.0
      %v3042 = vmax.f32 %v2855, 0.0
      %v3043 = vmax.f32 %v2857, 0.0
      %v3044 = vmax.f32 %v2859, 0.0
      %v3045 = vmul.f32 %v3037, %v3019
      %v3046 = vmul.f32 %v3038, %v3021
      %v3047 = vmul.f32 %v3039, %v3023
      %v3048 = vmul.f32 %v3040, %v3025
      %v3049 = vmul.f32 %v3041, %v3029
      %v3050 = vmul.f32 %v3042, %v3031
      %v3051 = vmul.f32 %v3043, %v3033
      %v3052 = vmul.f32 %v3044, %v3035
      %v3053 = vpack.c.bf16 %v3047, %v3045
      %v3054 = vpack.c.bf16 %v3048, %v3046
      %v3055 = vpack.c.bf16 %v3051, %v3049
      %v3056 = vpack.c.bf16 %v3052, %v3050
      %s3057 = scalar_lea.vmem %s7, 16
      %v3058 = vld [vmem:[%s3057] sm:$0xf]
      %v3059 = vld [vmem:[%s3057 + $0x4] sm:$0xf]
      %v3060 = vld [vmem:[%s3057 + $0x8] sm:$0xf]
      %v3061 = vld [vmem:[%s3057 + $0xc] sm:$0xf]
      %v3066 = vunpack.c.l.b16 %v3058
      %v3067 = vunpack.c.l.b16 %v3059
      %v3068 = vunpack.c.l.b16 %v3060
      %v3069 = vunpack.c.l.b16 %v3061
      %v3070 = vpack.c.b16 %v3067, %v3066
      %v3071 = vpack.c.b16 %v3069, %v3068
      %v3073 = vsel %vm1510, %v3070, 0
      %v3076 = vsel %vm1510, %v3071, 0
      %3078 = vmatprep.subr.bf16.mxu0 %v3054
      %3079 = vmatpush1.bf16.msra.mxu0 %v3053
      %3080 = vmatprep.subr.bf16.mxu0 %v3056
      %3081 = vmatpush1.bf16.msra.mxu0 %v3055
      %3082 = vmatprep.subr.bf16.mxu0 0
      %3083 = vmatpush1.bf16.msra.mxu0 0
      %3084 = vmatprep.subr.bf16.mxu0 0
      %3085 = vmatpush1.bf16.msra.mxu0 0
      %3086 = vmatprep.subr.bf16.mxu0 0
      %3087 = vmatpush1.bf16.msra.mxu0 0
      %3088 = vmatprep.subr.bf16.mxu0 0
      %3089 = vmatpush1.bf16.msra.mxu0 0
      %3090 = vmatprep.subr.bf16.mxu0 0
      %3091 = vmatpush1.bf16.msra.mxu0 0
      %3092 = vmatprep.subr.bf16.mxu0 0
      %3093 = vmatpush1.bf16.msra.mxu0 0
      %3094 = vmatprep.subr.bf16.mxu0 0
      %3095 = vmatpush1.bf16.msra.mxu0 0
      %3096 = vmatprep.subr.bf16.mxu0 0
      %3097 = vmatpush1.bf16.msra.mxu0 0
      %3098 = vmatprep.subr.bf16.mxu0 0
      %3099 = vmatpush1.bf16.msra.mxu0 0
      %3100 = vmatprep.subr.bf16.mxu0 0
      %3101 = vmatpush1.bf16.msra.mxu0 0
      %3102 = vmatprep.subr.bf16.mxu0 0
      %3103 = vmatpush1.bf16.msra.mxu0 0
      %3104 = vmatprep.subr.bf16.mxu0 0
      %3105 = vmatpush1.bf16.msra.mxu0 0
      %3106 = vmatprep.subr.bf16.mxu0 0
      %3107 = vmatpush1.bf16.msra.mxu0 0
      %3108 = vmatprep.subr.bf16.mxu0 0
      %3109 = vmatpush1.bf16.msra.mxu0 0
      %3110 = vmatprep.mubr.bf16.mxu0 0
      %3111 = vmatmul.mubr.bf16.gmra.mrb[0].mxu0 %v3073
      %v3112 = vpop.f32.mrb[0].mxu0
      %v3113 = vadd.f32 0.0, %v3112
      %v3114 = vpop.f32.mrb[0].mxu0
      %v3115 = vadd.f32 0.0, %v3114
      %v3116 = vpop.f32.mrb[0].mxu0
      %v3117 = vadd.f32 0.0, %v3116
      %v3118 = vpop.f32.mrb[0].mxu0
      %v3119 = vadd.f32 0.0, %v3118
      %3120 = vmatprep.mubr.bf16.mxu0 0
      %3121 = vmatmul.mubr.bf16.gmra.mrb[0].mxu0 %v3076
      %v3122 = vpop.f32.mrb[0].mxu0
      %v3123 = vadd.f32 0.0, %v3122
      %v3124 = vpop.f32.mrb[0].mxu0
      %v3125 = vadd.f32 0.0, %v3124
      %v3126 = vpop.f32.mrb[0].mxu0
      %v3127 = vadd.f32 0.0, %v3126
      %v3128 = vpop.f32.mrb[0].mxu0
      %v3129 = vadd.f32 0.0, %v3128
      %3130 = vdwg.mxu0
      %v3131 = vadd.f32 %v2609, %v3113
      %v3132 = vadd.f32 %v2610, %v3115
      %v3133 = vadd.f32 %v2611, %v3117
      %v3134 = vadd.f32 %v2612, %v3119
      %v3135 = vadd.f32 %v2613, %v3123
      %v3136 = vadd.f32 %v2614, %v3125
      %v3137 = vadd.f32 %v2615, %v3127
      %v3138 = vadd.f32 %v2616, %v3129
      %s3139 = scalar_lea.vmem %s8, 32
      %v3140 = vld [vmem:[%s3139] sm:$0xff]
      %v3141 = vld [vmem:[%s3139 + $0x8] sm:$0xff]
      %v3142 = vld [vmem:[%s3139 + $0x10] sm:$0xff]
      %v3143 = vld [vmem:[%s3139 + $0x18] sm:$0xff]
      %3145 = vset.pattern.permute.xlu0 0
      %3146 = vperm.xlu0 %3145, %v3140
      %v3147 = vpop.permute.xlu0 %3146
      %3150 = vset.pattern.permute.xlu0 0
      %3151 = vperm.xlu0 %3150, %v3141
      %v3152 = vpop.permute.xlu0 %3151
      %3155 = vset.pattern.permute.xlu0 0
      %3156 = vperm.xlu0 %3155, %v3142
      %v3157 = vpop.permute.xlu0 %3156
      %3160 = vset.pattern.permute.xlu0 0
      %3161 = vperm.xlu0 %3160, %v3143
      %v3162 = vpop.permute.xlu0 %3161
      %v3164 = vadd.f32 %v3131, %v3147
      %v3165 = vadd.f32 %v3132, %v3147
      %v3166 = vadd.f32 %v3133, %v3152
      %v3167 = vadd.f32 %v3134, %v3152
      %v3168 = vadd.f32 %v3135, %v3157
      %v3169 = vadd.f32 %v3136, %v3157
      %v3170 = vadd.f32 %v3137, %v3162
      %v3171 = vadd.f32 %v3138, %v3162
      %v3172 = vadd.f32 %v3164, %v3165
      %v3173 = vadd.f32 %v3172, %v3166
      %v3174 = vadd.f32 %v3173, %v3167
      %v3175 = vadd.f32 %v3174, %v3168
      %v3176 = vadd.f32 %v3175, %v3169
      %v3177 = vadd.f32 %v3176, %v3170
      %v3178 = vadd.f32 %v3177, %v3171
      %3179 = vadd.xlane.f32.xlu0 %v3178
      %v3180 = vpop.xlane.xlu0 %3179
      %v3181 = vrot.slane %v3180, 4
      %v3182 = vadd.f32 %v3180, %v3181
      %v3183 = vrot.slane %v3182, 2
      %v3184 = vadd.f32 %v3182, %v3183
      %v3185 = vrot.slane %v3184, 1
      %v3186 = vadd.f32 %v3184, %v3185
      %s3187 = vtos %v3186
      %v3188 = vstv %s3187
      %v3189 = vmul.f32 %v3188, %v1642
      %v3190 = vmul.f32 %v3164, %v3164
      %v3191 = vmul.f32 %v3165, %v3165
      %v3192 = vmul.f32 %v3166, %v3166
      %v3193 = vmul.f32 %v3167, %v3167
      %v3194 = vmul.f32 %v3168, %v3168
      %v3195 = vmul.f32 %v3169, %v3169
      %v3196 = vmul.f32 %v3170, %v3170
      %v3197 = vmul.f32 %v3171, %v3171
      %v3198 = vadd.f32 %v3190, %v3191
      %v3199 = vadd.f32 %v3198, %v3192
      %v3200 = vadd.f32 %v3199, %v3193
      %v3201 = vadd.f32 %v3200, %v3194
      %v3202 = vadd.f32 %v3201, %v3195
      %v3203 = vadd.f32 %v3202, %v3196
      %v3204 = vadd.f32 %v3203, %v3197
      %3205 = vadd.xlane.f32.xlu0 %v3204
      %v3206 = vpop.xlane.xlu0 %3205
      %v3207 = vrot.slane %v3206, 4
      %v3208 = vadd.f32 %v3206, %v3207
      %v3209 = vrot.slane %v3208, 2
      %v3210 = vadd.f32 %v3208, %v3209
      %v3211 = vrot.slane %v3210, 1
      %v3212 = vadd.f32 %v3210, %v3211
      %s3213 = vtos %v3212
      %v3214 = vstv %s3213
      %v3215 = vmul.f32 %v3214, %v1642
      %v3216 = vsub.f32 %v3164, %v3189
      %v3217 = vsub.f32 %v3165, %v3189
      %v3218 = vsub.f32 %v3166, %v3189
      %v3219 = vsub.f32 %v3167, %v3189
      %v3220 = vsub.f32 %v3168, %v3189
      %v3221 = vsub.f32 %v3169, %v3189
      %v3222 = vsub.f32 %v3170, %v3189
      %v3223 = vsub.f32 %v3171, %v3189
      %v3224 = vmul.f32 %v3189, %v3189
      %v3225 = vsub.f32 %v3215, %v3224
      %v3226 = vadd.f32 %v3225, 1e-05
      %v3227 = vrsqrt.pop %v3226
      %v3228 = vmul.f32 %v3216, %v3227
      %v3229 = vmul.f32 %v3217, %v3227
      %v3230 = vmul.f32 %v3218, %v3227
      %v3231 = vmul.f32 %v3219, %v3227
      %v3232 = vmul.f32 %v3220, %v3227
      %v3233 = vmul.f32 %v3221, %v3227
      %v3234 = vmul.f32 %v3222, %v3227
      %v3235 = vmul.f32 %v3223, %v3227
      %v3236 = vpack.c.bf16 %v3230, %v3228
      %v3237 = vpack.c.bf16 %v3231, %v3229
      %v3238 = vpack.c.bf16 %v3234, %v3232
      %v3239 = vpack.c.bf16 %v3235, %v3233
      %s3240 = scalar_lea.vmem %s9, 32
      %v3241 = vld [vmem:[%s3240] sm:$0xf]
      %v3242 = vld [vmem:[%s3240 + $0x4] sm:$0xf]
      %v3243 = vld [vmem:[%s3240 + $0x8] sm:$0xf]
      %v3244 = vld [vmem:[%s3240 + $0xc] sm:$0xf]
      %v3245 = vld [vmem:[%s3240 + $0x10] sm:$0xf]
      %v3246 = vld [vmem:[%s3240 + $0x14] sm:$0xf]
      %v3247 = vld [vmem:[%s3240 + $0x18] sm:$0xf]
      %v3248 = vld [vmem:[%s3240 + $0x1c] sm:$0xf]
      %s3249 = scalar_lea.vmem %s10, 64
      %v3250 = vld [vmem:[%s3249] sm:$0xff]
      %v3251 = vld [vmem:[%s3249 + $0x8] sm:$0xff]
      %v3252 = vld [vmem:[%s3249 + $0x10] sm:$0xff]
      %v3253 = vld [vmem:[%s3249 + $0x18] sm:$0xff]
      %v3254 = vld [vmem:[%s3249 + $0x20] sm:$0xff]
      %v3255 = vld [vmem:[%s3249 + $0x28] sm:$0xff]
      %v3256 = vld [vmem:[%s3249 + $0x30] sm:$0xff]
      %v3257 = vld [vmem:[%s3249 + $0x38] sm:$0xff]
      %3259 = vset.pattern.permute.xlu0 0
      %3260 = vperm.xlu0 %3259, %v3250
      %v3261 = vpop.permute.xlu0 %3260
      %3264 = vset.pattern.permute.xlu0 0
      %3265 = vperm.xlu0 %3264, %v3251
      %v3266 = vpop.permute.xlu0 %3265
      %3269 = vset.pattern.permute.xlu0 0
      %3270 = vperm.xlu0 %3269, %v3252
      %v3271 = vpop.permute.xlu0 %3270
      %3274 = vset.pattern.permute.xlu0 0
      %3275 = vperm.xlu0 %3274, %v3253
      %v3276 = vpop.permute.xlu0 %3275
      %3279 = vset.pattern.permute.xlu0 0
      %3280 = vperm.xlu0 %3279, %v3254
      %v3281 = vpop.permute.xlu0 %3280
      %3284 = vset.pattern.permute.xlu0 0
      %3285 = vperm.xlu0 %3284, %v3255
      %v3286 = vpop.permute.xlu0 %3285
      %3289 = vset.pattern.permute.xlu0 0
      %3290 = vperm.xlu0 %3289, %v3256
      %v3291 = vpop.permute.xlu0 %3290
      %3294 = vset.pattern.permute.xlu0 0
      %3295 = vperm.xlu0 %3294, %v3257
      %v3296 = vpop.permute.xlu0 %3295
      %v3306 = vunpack.c.l.b16 %v3241
      %v3307 = vunpack.c.l.b16 %v3242
      %v3308 = vunpack.c.l.b16 %v3243
      %v3309 = vunpack.c.l.b16 %v3244
      %v3310 = vunpack.c.l.b16 %v3245
      %v3311 = vunpack.c.l.b16 %v3246
      %v3312 = vunpack.c.l.b16 %v3247
      %v3313 = vunpack.c.l.b16 %v3248
      %v3314 = vpack.c.b16 %v3307, %v3306
      %v3315 = vpack.c.b16 %v3309, %v3308
      %v3316 = vpack.c.b16 %v3311, %v3310
      %v3317 = vpack.c.b16 %v3313, %v3312
      %v3319 = vsel %vm1510, %v3314, 0
      %v3322 = vsel %vm1510, %v3315, 0
      %v3325 = vsel %vm1510, %v3316, 0
      %v3328 = vsel %vm1510, %v3317, 0
      %3330 = vmatprep.subr.bf16.mxu0 %v3237
      %3331 = vmatpush1.bf16.msra.mxu0 %v3236
      %3332 = vmatprep.subr.bf16.mxu0 %v3239
      %3333 = vmatpush1.bf16.msra.mxu0 %v3238
      %3334 = vmatprep.subr.bf16.mxu0 0
      %3335 = vmatpush1.bf16.msra.mxu0 0
      %3336 = vmatprep.subr.bf16.mxu0 0
      %3337 = vmatpush1.bf16.msra.mxu0 0
      %3338 = vmatprep.subr.bf16.mxu0 0
      %3339 = vmatpush1.bf16.msra.mxu0 0
      %3340 = vmatprep.subr.bf16.mxu0 0
      %3341 = vmatpush1.bf16.msra.mxu0 0
      %3342 = vmatprep.subr.bf16.mxu0 0
      %3343 = vmatpush1.bf16.msra.mxu0 0
      %3344 = vmatprep.subr.bf16.mxu0 0
      %3345 = vmatpush1.bf16.msra.mxu0 0
      %3346 = vmatprep.subr.bf16.mxu0 0
      %3347 = vmatpush1.bf16.msra.mxu0 0
      %3348 = vmatprep.subr.bf16.mxu0 0
      %3349 = vmatpush1.bf16.msra.mxu0 0
      %3350 = vmatprep.subr.bf16.mxu0 0
      %3351 = vmatpush1.bf16.msra.mxu0 0
      %3352 = vmatprep.subr.bf16.mxu0 0
      %3353 = vmatpush1.bf16.msra.mxu0 0
      %3354 = vmatprep.subr.bf16.mxu0 0
      %3355 = vmatpush1.bf16.msra.mxu0 0
      %3356 = vmatprep.subr.bf16.mxu0 0
      %3357 = vmatpush1.bf16.msra.mxu0 0
      %3358 = vmatprep.subr.bf16.mxu0 0
      %3359 = vmatpush1.bf16.msra.mxu0 0
      %3360 = vmatprep.subr.bf16.mxu0 0
      %3361 = vmatpush1.bf16.msra.mxu0 0
      %3362 = vmatprep.mubr.bf16.mxu0 0
      %3363 = vmatmul.mubr.bf16.gmra.mrb[0].mxu0 %v3319
      %v3364 = vpop.f32.mrb[0].mxu0
      %v3365 = vadd.f32 %v3261, %v3364
      %v3366 = vpop.f32.mrb[0].mxu0
      %v3367 = vadd.f32 %v3261, %v3366
      %v3368 = vpop.f32.mrb[0].mxu0
      %v3369 = vadd.f32 %v3266, %v3368
      %v3370 = vpop.f32.mrb[0].mxu0
      %v3371 = vadd.f32 %v3266, %v3370
      %3372 = vmatprep.mubr.bf16.mxu0 0
      %3373 = vmatmul.mubr.bf16.gmra.mrb[0].mxu0 %v3322
      %v3374 = vpop.f32.mrb[0].mxu0
      %v3375 = vadd.f32 %v3271, %v3374
      %v3376 = vpop.f32.mrb[0].mxu0
      %v3377 = vadd.f32 %v3271, %v3376
      %v3378 = vpop.f32.mrb[0].mxu0
      %v3379 = vadd.f32 %v3276, %v3378
      %v3380 = vpop.f32.mrb[0].mxu0
      %v3381 = vadd.f32 %v3276, %v3380
      %3382 = vmatprep.mubr.bf16.mxu0 0
      %3383 = vmatmul.mubr.bf16.gmra.mrb[0].mxu0 %v3325
      %v3384 = vpop.f32.mrb[0].mxu0
      %v3385 = vadd.f32 %v3281, %v3384
      %v3386 = vpop.f32.mrb[0].mxu0
      %v3387 = vadd.f32 %v3281, %v3386
      %v3388 = vpop.f32.mrb[0].mxu0
      %v3389 = vadd.f32 %v3286, %v3388
      %v3390 = vpop.f32.mrb[0].mxu0
      %v3391 = vadd.f32 %v3286, %v3390
      %3392 = vmatprep.mubr.bf16.mxu0 0
      %3393 = vmatmul.mubr.bf16.gmra.mrb[0].mxu0 %v3328
      %v3394 = vpop.f32.mrb[0].mxu0
      %v3395 = vadd.f32 %v3291, %v3394
      %v3396 = vpop.f32.mrb[0].mxu0
      %v3397 = vadd.f32 %v3291, %v3396
      %v3398 = vpop.f32.mrb[0].mxu0
      %v3399 = vadd.f32 %v3296, %v3398
      %v3400 = vpop.f32.mrb[0].mxu0
      %v3401 = vadd.f32 %v3296, %v3400
      %3402 = vdwg.mxu0
      %v3403 = vmul.f32 %v3365, 0.5
      %v3404 = vmul.f32 %v3367, 0.5
      %v3405 = vmul.f32 %v3369, 0.5
      %v3406 = vmul.f32 %v3371, 0.5
      %v3407 = vmul.f32 %v3375, 0.5
      %v3408 = vmul.f32 %v3377, 0.5
      %v3409 = vmul.f32 %v3379, 0.5
      %v3410 = vmul.f32 %v3381, 0.5
      %v3411 = vmul.f32 %v3385, 0.5
      %v3412 = vmul.f32 %v3387, 0.5
      %v3413 = vmul.f32 %v3389, 0.5
      %v3414 = vmul.f32 %v3391, 0.5
      %v3415 = vmul.f32 %v3395, 0.5
      %v3416 = vmul.f32 %v3397, 0.5
      %v3417 = vmul.f32 %v3399, 0.5
      %v3418 = vmul.f32 %v3401, 0.5
      %v3419 = vtanh.pop %v3403
      %v3420 = vtanh.pop %v3404
      %v3421 = vtanh.pop %v3405
      %v3422 = vtanh.pop %v3406
      %v3423 = vtanh.pop %v3407
      %v3424 = vtanh.pop %v3408
      %v3425 = vtanh.pop %v3409
      %v3426 = vtanh.pop %v3410
      %v3427 = vtanh.pop %v3411
      %v3428 = vtanh.pop %v3412
      %v3429 = vtanh.pop %v3413
      %v3430 = vtanh.pop %v3414
      %v3431 = vtanh.pop %v3415
      %v3432 = vtanh.pop %v3416
      %v3433 = vtanh.pop %v3417
      %v3434 = vtanh.pop %v3418
      %v3435 = vmul.f32 %v3419, 0.5
      %v3436 = vmul.f32 %v3420, 0.5
      %v3437 = vmul.f32 %v3421, 0.5
      %v3438 = vmul.f32 %v3422, 0.5
      %v3439 = vmul.f32 %v3423, 0.5
      %v3440 = vmul.f32 %v3424, 0.5
      %v3441 = vmul.f32 %v3425, 0.5
      %v3442 = vmul.f32 %v3426, 0.5
      %v3443 = vmul.f32 %v3427, 0.5
      %v3444 = vmul.f32 %v3428, 0.5
      %v3445 = vmul.f32 %v3429, 0.5
      %v3446 = vmul.f32 %v3430, 0.5
      %v3447 = vmul.f32 %v3431, 0.5
      %v3448 = vmul.f32 %v3432, 0.5
      %v3449 = vmul.f32 %v3433, 0.5
      %v3450 = vmul.f32 %v3434, 0.5
      %v3451 = vadd.f32 %v3435, 0.5
      %v3452 = vadd.f32 %v3436, 0.5
      %v3453 = vadd.f32 %v3437, 0.5
      %v3454 = vadd.f32 %v3438, 0.5
      %v3455 = vadd.f32 %v3439, 0.5
      %v3456 = vadd.f32 %v3440, 0.5
      %v3457 = vadd.f32 %v3441, 0.5
      %v3458 = vadd.f32 %v3442, 0.5
      %v3459 = vadd.f32 %v3443, 0.5
      %v3460 = vadd.f32 %v3444, 0.5
      %v3461 = vadd.f32 %v3445, 0.5
      %v3462 = vadd.f32 %v3446, 0.5
      %v3463 = vadd.f32 %v3447, 0.5
      %v3464 = vadd.f32 %v3448, 0.5
      %v3465 = vadd.f32 %v3449, 0.5
      %v3466 = vadd.f32 %v3450, 0.5
      %v3467 = vmul.f32 %v3365, %v3451
      %v3468 = vmul.f32 %v3367, %v3452
      %v3469 = vmul.f32 %v3369, %v3453
      %v3470 = vmul.f32 %v3371, %v3454
      %v3471 = vmul.f32 %v3375, %v3455
      %v3472 = vmul.f32 %v3377, %v3456
      %v3473 = vmul.f32 %v3379, %v3457
      %v3474 = vmul.f32 %v3381, %v3458
      %v3475 = vmul.f32 %v3385, %v3459
      %v3476 = vmul.f32 %v3387, %v3460
      %v3477 = vmul.f32 %v3389, %v3461
      %v3478 = vmul.f32 %v3391, %v3462
      %v3479 = vmul.f32 %v3395, %v3463
      %v3480 = vmul.f32 %v3397, %v3464
      %v3481 = vmul.f32 %v3399, %v3465
      %v3482 = vmul.f32 %v3401, %v3466
      %s3483 = scalar_lea.vmem %s11, 16
      %v3484 = vld [vmem:[%s3483] sm:$0xf]
      %v3485 = vld [vmem:[%s3483 + $0x4] sm:$0xf]
      %v3486 = vld [vmem:[%s3483 + $0x8] sm:$0xf]
      %v3487 = vld [vmem:[%s3483 + $0xc] sm:$0xf]
      %v3488 = vpack.c.bf16 %v3469, %v3467
      %v3489 = vpack.c.bf16 %v3470, %v3468
      %v3490 = vpack.c.bf16 %v3473, %v3471
      %v3491 = vpack.c.bf16 %v3474, %v3472
      %v3492 = vpack.c.bf16 %v3477, %v3475
      %v3493 = vpack.c.bf16 %v3478, %v3476
      %v3494 = vpack.c.bf16 %v3481, %v3479
      %v3495 = vpack.c.bf16 %v3482, %v3480
      %v3500 = vunpack.c.l.b16 %v3484
      %v3501 = vunpack.c.l.b16 %v3485
      %v3502 = vunpack.c.l.b16 %v3486
      %v3503 = vunpack.c.l.b16 %v3487
      %v3504 = vpack.c.b16 %v3501, %v3500
      %v3505 = vpack.c.b16 %v3503, %v3502
      %v3507 = vsel %vm2517, %v3504, 0
      %v3510 = vsel %vm2517, %v3505, 0
      %3512 = vmatprep.subr.bf16.mxu0 %v3489
      %3513 = vmatpush1.bf16.msra.mxu0 %v3488
      %3514 = vmatprep.subr.bf16.mxu0 %v3491
      %3515 = vmatpush1.bf16.msra.mxu0 %v3490
      %3516 = vmatprep.subr.bf16.mxu0 %v3493
      %3517 = vmatpush1.bf16.msra.mxu0 %v3492
      %3518 = vmatprep.subr.bf16.mxu0 %v3495
      %3519 = vmatpush1.bf16.msra.mxu0 %v3494
      %3520 = vmatprep.subr.bf16.mxu0 0
      %3521 = vmatpush1.bf16.msra.mxu0 0
      %3522 = vmatprep.subr.bf16.mxu0 0
      %3523 = vmatpush1.bf16.msra.mxu0 0
      %3524 = vmatprep.subr.bf16.mxu0 0
      %3525 = vmatpush1.bf16.msra.mxu0 0
      %3526 = vmatprep.subr.bf16.mxu0 0
      %3527 = vmatpush1.bf16.msra.mxu0 0
      %3528 = vmatprep.subr.bf16.mxu0 0
      %3529 = vmatpush1.bf16.msra.mxu0 0
      %3530 = vmatprep.subr.bf16.mxu0 0
      %3531 = vmatpush1.bf16.msra.mxu0 0
      %3532 = vmatprep.subr.bf16.mxu0 0
      %3533 = vmatpush1.bf16.msra.mxu0 0
      %3534 = vmatprep.subr.bf16.mxu0 0
      %3535 = vmatpush1.bf16.msra.mxu0 0
      %3536 = vmatprep.subr.bf16.mxu0 0
      %3537 = vmatpush1.bf16.msra.mxu0 0
      %3538 = vmatprep.subr.bf16.mxu0 0
      %3539 = vmatpush1.bf16.msra.mxu0 0
      %3540 = vmatprep.subr.bf16.mxu0 0
      %3541 = vmatpush1.bf16.msra.mxu0 0
      %3542 = vmatprep.subr.bf16.mxu0 0
      %3543 = vmatpush1.bf16.msra.mxu0 0
      %3544 = vmatprep.mubr.bf16.mxu0 0
      %3545 = vmatmul.mubr.bf16.gmra.mrb[0].mxu0 %v3507
      %v3546 = vpop.f32.mrb[0].mxu0
      %v3547 = vadd.f32 0.0, %v3546
      %v3548 = vpop.f32.mrb[0].mxu0
      %v3549 = vadd.f32 0.0, %v3548
      %v3550 = vpop.f32.mrb[0].mxu0
      %v3551 = vadd.f32 0.0, %v3550
      %v3552 = vpop.f32.mrb[0].mxu0
      %v3553 = vadd.f32 0.0, %v3552
      %3554 = vmatprep.mubr.bf16.mxu0 0
      %3555 = vmatmul.mubr.bf16.gmra.mrb[0].mxu0 %v3510
      %v3556 = vpop.f32.mrb[0].mxu0
      %v3557 = vadd.f32 0.0, %v3556
      %v3558 = vpop.f32.mrb[0].mxu0
      %v3559 = vadd.f32 0.0, %v3558
      %v3560 = vpop.f32.mrb[0].mxu0
      %v3561 = vadd.f32 0.0, %v3560
      %v3562 = vpop.f32.mrb[0].mxu0
      %v3563 = vadd.f32 0.0, %v3562
      %3564 = vdwg.mxu0
      %v3565 = vadd.f32 %v3164, %v3547
      %v3566 = vadd.f32 %v3165, %v3549
      %v3567 = vadd.f32 %v3166, %v3551
      %v3568 = vadd.f32 %v3167, %v3553
      %v3569 = vadd.f32 %v3168, %v3557
      %v3570 = vadd.f32 %v3169, %v3559
      %v3571 = vadd.f32 %v3170, %v3561
      %v3572 = vadd.f32 %v3171, %v3563
      %s3573 = scalar_lea.vmem %s12, 32
      %v3574 = vld [vmem:[%s3573] sm:$0xff]
      %v3575 = vld [vmem:[%s3573 + $0x8] sm:$0xff]
      %v3576 = vld [vmem:[%s3573 + $0x10] sm:$0xff]
      %v3577 = vld [vmem:[%s3573 + $0x18] sm:$0xff]
      %3579 = vset.pattern.permute.xlu0 0
      %3580 = vperm.xlu0 %3579, %v3574
      %v3581 = vpop.permute.xlu0 %3580
      %3584 = vset.pattern.permute.xlu0 0
      %3585 = vperm.xlu0 %3584, %v3575
      %v3586 = vpop.permute.xlu0 %3585
      %3589 = vset.pattern.permute.xlu0 0
      %3590 = vperm.xlu0 %3589, %v3576
      %v3591 = vpop.permute.xlu0 %3590
      %3594 = vset.pattern.permute.xlu0 0
      %3595 = vperm.xlu0 %3594, %v3577
      %v3596 = vpop.permute.xlu0 %3595
      %v3598 = vadd.f32 %v3565, %v3581
      %v3599 = vadd.f32 %v3566, %v3581
      %v3600 = vadd.f32 %v3567, %v3586
      %v3601 = vadd.f32 %v3568, %v3586
      %v3602 = vadd.f32 %v3569, %v3591
      %v3603 = vadd.f32 %v3570, %v3591
      %v3604 = vadd.f32 %v3571, %v3596
      %v3605 = vadd.f32 %v3572, %v3596
      %v3606 = vadd.f32 %v3598, %v3599
      %v3607 = vadd.f32 %v3606, %v3600
      %v3608 = vadd.f32 %v3607, %v3601
      %v3609 = vadd.f32 %v3608, %v3602
      %v3610 = vadd.f32 %v3609, %v3603
      %v3611 = vadd.f32 %v3610, %v3604
      %v3612 = vadd.f32 %v3611, %v3605
      %3613 = vadd.xlane.f32.xlu0 %v3612
      %v3614 = vpop.xlane.xlu0 %3613
      %v3615 = vrot.slane %v3614, 4
      %v3616 = vadd.f32 %v3614, %v3615
      %v3617 = vrot.slane %v3616, 2
      %v3618 = vadd.f32 %v3616, %v3617
      %v3619 = vrot.slane %v3618, 1
      %v3620 = vadd.f32 %v3618, %v3619
      %s3621 = vtos %v3620
      %v3622 = vstv %s3621
      %v3623 = vmul.f32 %v3622, %v1642
      %v3624 = vmul.f32 %v3598, %v3598
      %v3625 = vmul.f32 %v3599, %v3599
      %v3626 = vmul.f32 %v3600, %v3600
      %v3627 = vmul.f32 %v3601, %v3601
      %v3628 = vmul.f32 %v3602, %v3602
      %v3629 = vmul.f32 %v3603, %v3603
      %v3630 = vmul.f32 %v3604, %v3604
      %v3631 = vmul.f32 %v3605, %v3605
      %v3632 = vadd.f32 %v3624, %v3625
      %v3633 = vadd.f32 %v3632, %v3626
      %v3634 = vadd.f32 %v3633, %v3627
      %v3635 = vadd.f32 %v3634, %v3628
      %v3636 = vadd.f32 %v3635, %v3629
      %v3637 = vadd.f32 %v3636, %v3630
      %v3638 = vadd.f32 %v3637, %v3631
      %3639 = vadd.xlane.f32.xlu0 %v3638
      %v3640 = vpop.xlane.xlu0 %3639
      %v3641 = vrot.slane %v3640, 4
      %v3642 = vadd.f32 %v3640, %v3641
      %v3643 = vrot.slane %v3642, 2
      %v3644 = vadd.f32 %v3642, %v3643
      %v3645 = vrot.slane %v3644, 1
      %v3646 = vadd.f32 %v3644, %v3645
      %s3647 = vtos %v3646
      %v3648 = vstv %s3647
      %v3649 = vmul.f32 %v3648, %v1642
      %v3650 = vsub.f32 %v3598, %v3623
      %v3651 = vsub.f32 %v3599, %v3623
      %v3652 = vsub.f32 %v3600, %v3623
      %v3653 = vsub.f32 %v3601, %v3623
      %v3654 = vsub.f32 %v3602, %v3623
      %v3655 = vsub.f32 %v3603, %v3623
      %v3656 = vsub.f32 %v3604, %v3623
      %v3657 = vsub.f32 %v3605, %v3623
      %v3658 = vmul.f32 %v3623, %v3623
      %v3659 = vsub.f32 %v3649, %v3658
      %v3660 = vadd.f32 %v3659, 1e-05
      %v3661 = vrsqrt.pop %v3660
      %v3662 = vmul.f32 %v3650, %v3661
      %v3663 = vmul.f32 %v3651, %v3661
      %v3664 = vmul.f32 %v3652, %v3661
      %v3665 = vmul.f32 %v3653, %v3661
      %v3666 = vmul.f32 %v3654, %v3661
      %v3667 = vmul.f32 %v3655, %v3661
      %v3668 = vmul.f32 %v3656, %v3661
      %v3669 = vmul.f32 %v3657, %v3661
      %v3670 = vpack.c.bf16 %v3664, %v3662
      %v3671 = vpack.c.bf16 %v3665, %v3663
      %v3672 = vpack.c.bf16 %v3668, %v3666
      %v3673 = vpack.c.bf16 %v3669, %v3667
      %v3674 = vld [vmem:[%s13] sm:$0xf]
      %v3675 = vld [vmem:[%s13 + $0x4] sm:$0xf]
      %v3676 = vld [vmem:[%s13 + $0x8] sm:$0xf]
      %v3677 = vld [vmem:[%s13 + $0xc] sm:$0xf]
      %v3678 = vld [vmem:[%s14] sm:$0xff]
      %v3679 = vld [vmem:[%s14 + $0x8] sm:$0xff]
      %v3680 = vld [vmem:[%s14 + $0x10] sm:$0xff]
      %v3681 = vld [vmem:[%s14 + $0x18] sm:$0xff]
      %3683 = vset.pattern.permute.xlu0 0
      %3684 = vperm.xlu0 %3683, %v3678
      %v3685 = vpop.permute.xlu0 %3684
      %3688 = vset.pattern.permute.xlu0 0
      %3689 = vperm.xlu0 %3688, %v3679
      %v3690 = vpop.permute.xlu0 %3689
      %3693 = vset.pattern.permute.xlu0 0
      %3694 = vperm.xlu0 %3693, %v3680
      %v3695 = vpop.permute.xlu0 %3694
      %3698 = vset.pattern.permute.xlu0 0
      %3699 = vperm.xlu0 %3698, %v3681
      %v3700 = vpop.permute.xlu0 %3699
      %v3706 = vunpack.c.l.b16 %v3674
      %v3707 = vunpack.c.l.b16 %v3675
      %v3708 = vunpack.c.l.b16 %v3676
      %v3709 = vunpack.c.l.b16 %v3677
      %v3710 = vpack.c.b16 %v3707, %v3706
      %v3711 = vpack.c.b16 %v3709, %v3708
      %v3713 = vsel %vm1510, %v3710, 0
      %v3716 = vsel %vm1510, %v3711, 0
      %3718 = vmatprep.subr.bf16.mxu0 %v3671
      %3719 = vmatpush1.bf16.msra.mxu0 %v3670
      %3720 = vmatprep.subr.bf16.mxu0 %v3673
      %3721 = vmatpush1.bf16.msra.mxu0 %v3672
      %3722 = vmatprep.subr.bf16.mxu0 0
      %3723 = vmatpush1.bf16.msra.mxu0 0
      %3724 = vmatprep.subr.bf16.mxu0 0
      %3725 = vmatpush1.bf16.msra.mxu0 0
      %3726 = vmatprep.subr.bf16.mxu0 0
      %3727 = vmatpush1.bf16.msra.mxu0 0
      %3728 = vmatprep.subr.bf16.mxu0 0
      %3729 = vmatpush1.bf16.msra.mxu0 0
      %3730 = vmatprep.subr.bf16.mxu0 0
      %3731 = vmatpush1.bf16.msra.mxu0 0
      %3732 = vmatprep.subr.bf16.mxu0 0
      %3733 = vmatpush1.bf16.msra.mxu0 0
      %3734 = vmatprep.subr.bf16.mxu0 0
      %3735 = vmatpush1.bf16.msra.mxu0 0
      %3736 = vmatprep.subr.bf16.mxu0 0
      %3737 = vmatpush1.bf16.msra.mxu0 0
      %3738 = vmatprep.subr.bf16.mxu0 0
      %3739 = vmatpush1.bf16.msra.mxu0 0
      %3740 = vmatprep.subr.bf16.mxu0 0
      %3741 = vmatpush1.bf16.msra.mxu0 0
      %3742 = vmatprep.subr.bf16.mxu0 0
      %3743 = vmatpush1.bf16.msra.mxu0 0
      %3744 = vmatprep.subr.bf16.mxu0 0
      %3745 = vmatpush1.bf16.msra.mxu0 0
      %3746 = vmatprep.subr.bf16.mxu0 0
      %3747 = vmatpush1.bf16.msra.mxu0 0
      %3748 = vmatprep.subr.bf16.mxu0 0
      %3749 = vmatpush1.bf16.msra.mxu0 0
      %3750 = vmatprep.mubr.bf16.mxu0 0
      %3751 = vmatmul.mubr.bf16.gmra.mrb[0].mxu0 %v3713
      %v3752 = vpop.f32.mrb[0].mxu0
      %v3753 = vadd.f32 %v3685, %v3752
      %v3754 = vpop.f32.mrb[0].mxu0
      %v3755 = vadd.f32 %v3685, %v3754
      %v3756 = vpop.f32.mrb[0].mxu0
      %v3757 = vadd.f32 %v3690, %v3756
      %v3758 = vpop.f32.mrb[0].mxu0
      %v3759 = vadd.f32 %v3690, %v3758
      %3760 = vmatprep.mubr.bf16.mxu0 0
      %3761 = vmatmul.mubr.bf16.gmra.mrb[0].mxu0 %v3716
      %v3762 = vpop.f32.mrb[0].mxu0
      %v3763 = vadd.f32 %v3695, %v3762
      %v3764 = vpop.f32.mrb[0].mxu0
      %v3765 = vadd.f32 %v3695, %v3764
      %v3766 = vpop.f32.mrb[0].mxu0
      %v3767 = vadd.f32 %v3700, %v3766
      %v3768 = vpop.f32.mrb[0].mxu0
      %v3769 = vadd.f32 %v3700, %v3768
      %3770 = vdwg.mxu0
      %3771 = vst [vmem:[%s494] sm:$0xff] %v3753
      %3772 = vst [vmem:[%s494 + $0x8] sm:$0xff] %v3755
      %3773 = vst [vmem:[%s494 + $0x10] sm:$0xff] %v3757
      %3774 = vst [vmem:[%s494 + $0x18] sm:$0xff] %v3759
      %3775 = vst [vmem:[%s494 + $0x20] sm:$0xff] %v3763
      %3776 = vst [vmem:[%s494 + $0x28] sm:$0xff] %v3765
      %3777 = vst [vmem:[%s494 + $0x30] sm:$0xff] %v3767
      %3778 = vst [vmem:[%s494 + $0x38] sm:$0xff] %v3769
      %p3779 = scmp.lt.s32.totalorder %s26, 1
      %s3780 = scalar_select %p3779, %s26, 1
      %s3781 = smul.addr %s3780, 8
      %s3782 = smul.addr %s3781, 8
      %s3783 = scalar_lea.vmem %s15, %s3782
      // Predicated region
      $region81: #{mobilevit_v2_block.1} parent=79 // pred_check
        %p3784 = pneg %p364
      $region82: #{mobilevit_v2_block.1} parent=79 // pred_check_branch
        %3786 = sbr.rel (%p3784) target = $region84
      $region83: #{mobilevit_v2_block.1} parent=79 // pred_region
        _
      $region84: #{mobilevit_v2_block.1} parent=79 // pred_fallthru
        _
    $region80: #{mobilevit_v2_block.1} parent=5 // pred_fallthru
      _
    %p3787 = scmp.le.s32.totalorder 2, %s21
    // Predicated region
    $region85: #{mobilevit_v2_block.1} parent=5 // pred_check
      %p3788 = pneg %p3787
    $region86: #{mobilevit_v2_block.1} parent=5 // pred_check_branch
      %3790 = sbr.rel (%p3788) target = $region88
    $region87: #{mobilevit_v2_block.1} parent=5 // pred_region
      %s3791 = ssub.s32 %s21, 2
      // Predicated region
      $region89: #{mobilevit_v2_block.1} parent=87 // pred_check
        %p3792 = pneg %p370
      $region90: #{mobilevit_v2_block.1} parent=87 // pred_check_branch
        %3794 = sbr.rel (%p3792) target = $region92
      $region91: #{mobilevit_v2_block.1} parent=87 // pred_region
        %p3795 = scmp.lt.s32.totalorder %s27, 1
        %s3796 = scalar_select %p3795, %s27, 1
        %s3797 = smul.addr %s3796, 8
        %s3798 = smul.addr %s3797, 8
        %s3799 = scalar_lea.vmem %s15, %s3798
      $region92: #{mobilevit_v2_block.1} parent=87 // pred_fallthru
        _
    $region88: #{mobilevit_v2_block.1} parent=5 // pred_fallthru
      _
  $region6: #{mobilevit_v2_block.1} parent=0 // loop_footer
    %s25 = sadd.s32 1, %s21
  $region7: #{mobilevit_v2_block.1} parent=0 // loop_footer_branch
    %20 = sbr.rel target = $region3
  $region8: #{mobilevit_v2_block.1} parent=0 // loop_exit
    _

</llo_original>
